<compile_context>
chip_gen: v7x
topology: tpu7x:2x2x1
jax: 0.10.0
libtpu: 0.0.40
codegen_flags: <defaults>
</compile_context>

<pallas_src>
import functools

import jax
import jax.numpy as jnp
from jax.experimental import pallas as pl
from jax.experimental.pallas import tpu as pltpu

NEG_INF = -1e30
LN_EPS = 1e-5


def _full_spec(shape):
    # full-array block (no grid) -> the (8,128) tiling constraint does not apply
    return pl.BlockSpec(shape, lambda: (0,) * len(shape))


# ----------------------------------------------------------------------------
# Fused forward kernel
# ----------------------------------------------------------------------------
def fused_gat_kernel(x_ref, mask_ref, gsrc_ref, gdst_ref, pool_ref,
                     w1_ref, a1_ref, b1_ref, g1_ref, be1_ref,
                     w2_ref, a2_ref, b2_ref, g2_ref, be2_ref,
                     w3_ref, a3_ref, b3_ref,
                     wf1_ref, bf1_ref, wf2_ref, bf2_ref,
                     out_ref, al1_ref, al2_ref, al3_ref,
                     s1_ref, s2_ref, s3_ref,
                     *, heads1, f1, heads2, f2, heads3, f3):
    mask = mask_ref[...]        # [N, N] additive bias: 0 on edges, -1e30 else
    gsrc = gsrc_ref[...]        # [E, N] one-hot src gather
    gdst = gdst_ref[...]        # [E, N] one-hot dst gather

    def dot_bf16(a, b):
        # MXU matmul: bf16 operands, f32 accumulation
        return jnp.dot(a.astype(jnp.bfloat16), b.astype(jnp.bfloat16),
                       preferred_element_type=jnp.float32)

    def dot_f32(a, b):
        return jnp.dot(a, b, preferred_element_type=jnp.float32)

    def ln_relu(xv, g, b):
        mu = jnp.mean(xv, axis=1, keepdims=True)
        var = jnp.mean((xv - mu) ** 2, axis=1, keepdims=True)
        y = (xv - mu) * jax.lax.rsqrt(var + LN_EPS) * g + b
        return jnp.maximum(y, 0.0)

    def gat_conv(x_in, w_ref, acat_ref, bias_ref, s_ref, al_ref, heads, f_out):
        xp = dot_bf16(x_in, w_ref[...])            # [N, H*F]  node projection
        # attention-score reductions on the MXU: one block-diagonal matmul
        sc = dot_f32(xp, acat_ref[...])            # [N, 2H]
        a_src_n = sc[:, :heads]                    # [N, H]  per-node src score
        a_dst_n = sc[:, heads:]                    # [N, H]  per-node dst score
        a_src_t = jnp.transpose(a_src_n)           # [H, N]  one transpose/layer
        bias = bias_ref[...]                       # [1, H*F]

        m_cols, invd_cols = [], []
        for h in range(heads):
            cs = slice(h * f_out, (h + 1) * f_out)
            # e[dst, src] = a_dst[dst] + a_src[src]
            e = a_dst_n[:, h:h + 1] + a_src_t[h:h + 1, :]
            e = jnp.maximum(e, 0.2 * e) + mask     # LeakyReLU(0.2) + edge mask
            m = jnp.max(e, axis=1, keepdims=True)  # [N, 1]
            p = jnp.exp(e - m)                     # masked lanes underflow to 0
            inv_d = pl.reciprocal(jnp.sum(p, axis=1, keepdims=True), approx=True)
            alpha = p * inv_d                      # [N, N] softmax over src
            # aggregate + bias, written straight into the output slab slice
            s_ref[:, cs] = dot_f32(alpha, xp[:, cs]) + bias[:, cs]
            m_cols.append(m)
            invd_cols.append(inv_d)

        # per-edge attention coefficients (PyG return_attention_weights=True),
        # reconstructed from per-node stats via one-hot MXU gathers -- the
        # dense [H, N, N] alpha never leaves VMEM.
        m_all = jnp.concatenate(m_cols, axis=1)        # [N, H]
        invd_all = jnp.concatenate(invd_cols, axis=1)  # [N, H]
        s_e = dot_f32(gsrc, a_src_n) + dot_f32(gdst, a_dst_n)    # [E, H]
        s_e = jnp.maximum(s_e, 0.2 * s_e)
        al_ref[...] = (jnp.exp(s_e - dot_f32(gdst, m_all))
                       * dot_f32(gdst, invd_all))
        return s_ref[...]

    x0 = x_ref[...]

    # conv1 -> norm1 -> relu
    h1o = gat_conv(x0, w1_ref, a1_ref, b1_ref, s1_ref, al1_ref, heads1, f1)
    x1 = ln_relu(h1o, g1_ref[...], be1_ref[...])
    # conv2 -> norm2 -> relu
    h2o = gat_conv(x1, w2_ref, a2_ref, b2_ref, s2_ref, al2_ref, heads2, f2)
    x2 = ln_relu(h2o, g2_ref[...], be2_ref[...])
    # conv3 -> relu -> residual -> mean pool -> fc1 -> relu -> fc2
    h3o = gat_conv(x2, w3_ref, a3_ref, b3_ref, s3_ref, al3_ref, heads3, f3)
    x_res = x0 + jnp.maximum(h3o, 0.0)
    pooled = dot_f32(pool_ref[...], x_res)               # [B, D]
    hfc = jnp.maximum(dot_bf16(pooled, wf1_ref[...]) + bf1_ref[...], 0.0)
    out_ref[...] = dot_bf16(hfc, wf2_ref[...]) + bf2_ref[...]


# ----------------------------------------------------------------------------
# Wrapper: one pallas_call for the whole forward
# ----------------------------------------------------------------------------
def build_att_cat(att_src, att_dst):
    """Block-diagonal [H*F, 2H] matrix so xp @ A gives all per-head scores."""
    h, f = att_src.shape
    a = jnp.zeros((h * f, 2 * h), jnp.float32)
    for i in range(h):
        a = a.at[i * f:(i + 1) * f, i].set(att_src[i])
        a = a.at[i * f:(i + 1) * f, h + i].set(att_dst[i])
    return a


def gat_fused(x, mask_bias, gsrc, gdst, pool, params):
    n = x.shape[0]
    e = gsrc.shape[0]
    b = pool.shape[0]
    c1, c2, c3 = params["conv1"], params["conv2"], params["conv3"]
    heads1, f1 = c1["att_src"].shape
    heads2, f2 = c2["att_src"].shape
    heads3, f3 = c3["att_src"].shape
    out_ch = params["fc2"]["w"].shape[1]

    a1cat = build_att_cat(c1["att_src"], c1["att_dst"])
    a2cat = build_att_cat(c2["att_src"], c2["att_dst"])
    a3cat = build_att_cat(c3["att_src"], c3["att_dst"])

    inputs = (x, mask_bias, gsrc, gdst, pool,
              c1["w"], a1cat, c1["bias"], params["norm1"]["g"], params["norm1"]["b"],
              c2["w"], a2cat, c2["bias"], params["norm2"]["g"], params["norm2"]["b"],
              c3["w"], a3cat, c3["bias"],
              params["fc1"]["w"], params["fc1"]["b"],
              params["fc2"]["w"], params["fc2"]["b"])

    out_shapes = (jax.ShapeDtypeStruct((b, out_ch), jnp.float32),
                  jax.ShapeDtypeStruct((e, heads1), jnp.float32),
                  jax.ShapeDtypeStruct((e, heads2), jnp.float32),
                  jax.ShapeDtypeStruct((e, heads3), jnp.float32))

    kernel = functools.partial(fused_gat_kernel,
                               heads1=heads1, f1=f1,
                               heads2=heads2, f2=f2,
                               heads3=heads3, f3=f3)

    return pl.pallas_call(
        kernel,
        out_shape=out_shapes,
        in_specs=[_full_spec(a.shape) for a in inputs],
        out_specs=tuple(_full_spec(s.shape) for s in out_shapes),
        scratch_shapes=[pltpu.VMEM((n, heads1 * f1), jnp.float32),
                        pltpu.VMEM((n, heads2 * f2), jnp.float32),
                        pltpu.VMEM((n, heads3 * f3), jnp.float32)],
    )(*inputs)


@functools.partial(jax.jit, static_argnames=("num_graphs",))
def gat_forward(params, x, edge_index_full, batch, *, num_graphs):
    n = x.shape[0]
    src, dst = edge_index_full[0], edge_index_full[1]

    # additive softmax mask: 0 on edges (self loops included), -1e30 elsewhere
    # NOTE: duplicate edges collapse to a single entry.
    mask_bias = jnp.full((n, n), NEG_INF, jnp.float32).at[dst, src].set(0.0)

    # one-hot gather matrices for the per-edge attention readout (MXU gathers)
    node_ids = jnp.arange(n, dtype=jnp.int32)
    gsrc = (src[:, None] == node_ids[None, :]).astype(jnp.float32)   # [E, N]
    gdst = (dst[:, None] == node_ids[None, :]).astype(jnp.float32)   # [E, N]

    # global_mean_pool as a matmul: P[g, n] = 1/|g| if batch[n] == g
    one_hot = (batch[None, :] == jnp.arange(num_graphs)[:, None]).astype(jnp.float32)
    pool = one_hot / jnp.sum(one_hot, axis=1, keepdims=True)

    out, a1, a2, a3 = gat_fused(x, mask_bias, gsrc, gdst, pool, params)
    return (out,
            (edge_index_full, a1),
            (edge_index_full, a2),
            (edge_index_full, a3))


# ----------------------------------------------------------------------------
# Deterministic parameter construction
# ----------------------------------------------------------------------------
def make_params(key, in_ch, h1, h2, h3, out_ch, num_heads):
    ks = jax.random.split(key, 16)

    def conv_params(k, fin, fout, heads):
        k1, k2, k3 = jax.random.split(k, 3)
        return {
            "w": 0.2 * jax.random.normal(k1, (fin, heads * fout), jnp.float32),
            "att_src": 0.2 * jax.random.normal(k2, (heads, fout), jnp.float32),
            "att_dst": 0.2 * jax.random.normal(k3, (heads, fout), jnp.float32),
            "bias": jnp.zeros((1, heads * fout), jnp.float32),
        }

    return {
        "conv1": conv_params(ks[0], in_ch, h1, num_heads),
        "norm1": {"g": jnp.ones((1, h1 * num_heads), jnp.float32),
                  "b": jnp.zeros((1, h1 * num_heads), jnp.float32)},
        "conv2": conv_params(ks[1], h1 * num_heads, h2, num_heads),
        "norm2": {"g": jnp.ones((1, h2 * num_heads), jnp.float32),
                  "b": jnp.zeros((1, h2 * num_heads), jnp.float32)},
        "conv3": conv_params(ks[2], h2 * num_heads, h3, 6),
        # TODO(synk): norm3 exists in __init__ but is never used in forward -> omitted
        "fc1": {"w": 0.2 * jax.random.normal(ks[3], (h3 * 6, 32), jnp.float32),
                "b": jnp.zeros((1, 32), jnp.float32)},
        "fc2": {"w": 0.2 * jax.random.normal(ks[4], (32, out_ch), jnp.float32),
                "b": jnp.zeros((1, out_ch), jnp.float32)},
    }


if __name__ == "__main__":
    # residual `x + x3` requires in_channels == hidden3_channels * 6
    IN_CH, H1, H2, H3, OUT_CH, HEADS = 12, 4, 4, 2, 3, 4
    NODES_PER_GRAPH, NUM_GRAPHS = 8, 2
    N = NODES_PER_GRAPH * NUM_GRAPHS

    key = jax.random.PRNGKey(0)
    k_x, k_p = jax.random.split(key)

    # node features
    x = jax.random.normal(k_x, (N, IN_CH), jnp.float32)

    # bidirectional ring within each graph (no cross-graph edges)
    srcs, dsts = [], []
    for g in range(NUM_GRAPHS):
        off = g * NODES_PER_GRAPH
        for i in range(NODES_PER_GRAPH):
            j = (i + 1) % NODES_PER_GRAPH
            srcs += [off + i, off + j]
            dsts += [off + j, off + i]
    edge_index = jnp.array([srcs, dsts], dtype=jnp.int32)          # [2, E]
    # GATConv(add_self_loops=True): append self loops (PyG appends them last)
    loops = jnp.arange(N, dtype=jnp.int32)
    edge_index_full = jnp.concatenate(
        [edge_index, jnp.stack([loops, loops])], axis=1)           # [2, E+N]

    batch = jnp.repeat(jnp.arange(NUM_GRAPHS, dtype=jnp.int32), NODES_PER_GRAPH)

    params = make_params(k_p, IN_CH, H1, H2, H3, OUT_CH, HEADS)

    out, attn1, attn2, attn3 = gat_forward(params, x, edge_index_full, batch,
                                           num_graphs=NUM_GRAPHS)
    jax.block_until_ready(out)
    jax.block_until_ready(attn1[1])
    jax.block_until_ready(attn2[1])
    jax.block_until_ready(attn3[1])

    assert out.shape == (NUM_GRAPHS, OUT_CH)
    assert attn1[1].shape == (edge_index_full.shape[1], HEADS)
    assert attn2[1].shape == (edge_index_full.shape[1], HEADS)
    assert attn3[1].shape == (edge_index_full.shape[1], 6)
    assert bool(jnp.all(jnp.isfinite(out)))
    print("KERNEL_OK")
</pallas_src>

<mosaic_0001>
module attributes {stable_mosaic.version = 11 : i64} {
  func.func @fused_gat_kernel(%arg0: memref<16x12xf32, #tpu.memory_space<vmem>>, %arg1: memref<16x16xf32, #tpu.memory_space<vmem>>, %arg2: memref<48x16xf32, #tpu.memory_space<vmem>>, %arg3: memref<48x16xf32, #tpu.memory_space<vmem>>, %arg4: memref<2x16xf32, #tpu.memory_space<vmem>>, %arg5: memref<12x16xf32, #tpu.memory_space<vmem>>, %arg6: memref<16x8xf32, #tpu.memory_space<vmem>>, %arg7: memref<1x16xf32, #tpu.memory_space<vmem>>, %arg8: memref<1x16xf32, #tpu.memory_space<vmem>>, %arg9: memref<1x16xf32, #tpu.memory_space<vmem>>, %arg10: memref<16x16xf32, #tpu.memory_space<vmem>>, %arg11: memref<16x8xf32, #tpu.memory_space<vmem>>, %arg12: memref<1x16xf32, #tpu.memory_space<vmem>>, %arg13: memref<1x16xf32, #tpu.memory_space<vmem>>, %arg14: memref<1x16xf32, #tpu.memory_space<vmem>>, %arg15: memref<16x12xf32, #tpu.memory_space<vmem>>, %arg16: memref<12x12xf32, #tpu.memory_space<vmem>>, %arg17: memref<1x12xf32, #tpu.memory_space<vmem>>, %arg18: memref<12x32xf32, #tpu.memory_space<vmem>>, %arg19: memref<1x32xf32, #tpu.memory_space<vmem>>, %arg20: memref<32x3xf32, #tpu.memory_space<vmem>>, %arg21: memref<1x3xf32, #tpu.memory_space<vmem>>, %arg22: memref<2x3xf32, #tpu.memory_space<vmem>>, %arg23: memref<48x4xf32, #tpu.memory_space<vmem>>, %arg24: memref<48x4xf32, #tpu.memory_space<vmem>>, %arg25: memref<48x6xf32, #tpu.memory_space<vmem>>, %arg26: memref<16x16xf32, #tpu.memory_space<vmem>>, %arg27: memref<16x16xf32, #tpu.memory_space<vmem>>, %arg28: memref<16x12xf32, #tpu.memory_space<vmem>>) attributes {dimension_semantics = [], scalar_prefetch = 0 : i64, scratch_operands = 3 : i64, tpu.core_type = #tpu.core_type<tc>} {
    %c0 = arith.constant 0 : index
    %c0_0 = arith.constant 0 : index
    %0 = vector.load %arg1[%c0, %c0_0] : memref<16x16xf32, #tpu.memory_space<vmem>>, vector<16x16xf32>
    %c0_1 = arith.constant 0 : index
    %c0_2 = arith.constant 0 : index
    %1 = vector.load %arg2[%c0_1, %c0_2] : memref<48x16xf32, #tpu.memory_space<vmem>>, vector<48x16xf32>
    %c0_3 = arith.constant 0 : index
    %c0_4 = arith.constant 0 : index
    %2 = vector.load %arg3[%c0_3, %c0_4] : memref<48x16xf32, #tpu.memory_space<vmem>>, vector<48x16xf32>
    %c0_5 = arith.constant 0 : index
    %c0_6 = arith.constant 0 : index
    %3 = vector.load %arg0[%c0_5, %c0_6] : memref<16x12xf32, #tpu.memory_space<vmem>>, vector<16x12xf32>
    %c0_7 = arith.constant 0 : index
    %c0_8 = arith.constant 0 : index
    %4 = vector.load %arg5[%c0_7, %c0_8] : memref<12x16xf32, #tpu.memory_space<vmem>>, vector<12x16xf32>
    %5 = arith.truncf %3 : vector<16x12xf32> to vector<16x12xbf16>
    %6 = arith.truncf %4 : vector<12x16xf32> to vector<12x16xbf16>
    %cst = arith.constant dense<0.000000e+00> : vector<16x16xf32>
    %7 = tpu.matmul %5, %6, %cst {dimension_numbers = #tpu.dot_dimension_numbers<[1], [0], [0], [1], [0, 0, 1, 1], [], []>} : vector<16x12xbf16>, vector<12x16xbf16>, vector<16x16xf32> -> vector<16x16xf32>
    %c0_9 = arith.constant 0 : index
    %c0_10 = arith.constant 0 : index
    %8 = vector.load %arg6[%c0_9, %c0_10] : memref<16x8xf32, #tpu.memory_space<vmem>>, vector<16x8xf32>
    %cst_11 = arith.constant dense<0.000000e+00> : vector<16x8xf32>
    %9 = tpu.matmul %7, %8, %cst_11 {dimension_numbers = #tpu.dot_dimension_numbers<[1], [0], [0], [1], [0, 0, 1, 1], [], []>} : vector<16x16xf32>, vector<16x8xf32>, vector<16x8xf32> -> vector<16x8xf32>
    %10 = vector.extract_strided_slice %9 {offsets = [0, 0], sizes = [16, 4], strides = [1, 1]} : vector<16x8xf32> to vector<16x4xf32>
    %11 = vector.extract_strided_slice %9 {offsets = [0, 4], sizes = [16, 4], strides = [1, 1]} : vector<16x8xf32> to vector<16x4xf32>
    %12 = tpu.transpose %10, [1, 0] : vector<16x4xf32> -> vector<4x16xf32>
    %c0_12 = arith.constant 0 : index
    %c0_13 = arith.constant 0 : index
    %13 = vector.load %arg7[%c0_12, %c0_13] : memref<1x16xf32, #tpu.memory_space<vmem>>, vector<1x16xf32>
    %14 = vector.extract_strided_slice %11 {offsets = [0, 0], sizes = [16, 1], strides = [1, 1]} : vector<16x4xf32> to vector<16x1xf32>
    %15 = vector.extract_strided_slice %12 {offsets = [0, 0], sizes = [1, 16], strides = [1, 1]} : vector<4x16xf32> to vector<1x16xf32>
    %16 = vector.broadcast %14 : vector<16x1xf32> to vector<16x16xf32>
    %17 = vector.broadcast %15 : vector<1x16xf32> to vector<16x16xf32>
    %18 = arith.addf %16, %17 : vector<16x16xf32>
    %cst_14 = arith.constant 2.000000e-01 : f32
    %19 = vector.broadcast %cst_14 : f32 to vector<16x16xf32>
    %20 = arith.mulf %19, %18 : vector<16x16xf32>
    %21 = arith.maximumf %18, %20 : vector<16x16xf32>
    %22 = arith.addf %21, %0 : vector<16x16xf32>
    %cst_15 = arith.constant dense<0xFF800000> : vector<16xf32>
    %23 = vector.multi_reduction <maximumf>, %22, %cst_15 [1] : vector<16x16xf32> to vector<16xf32>
    %24 = vector.shape_cast %23 : vector<16xf32> to vector<16x1xf32>
    %25 = vector.broadcast %24 : vector<16x1xf32> to vector<16x16xf32>
    %26 = arith.subf %22, %25 : vector<16x16xf32>
    %27 = math.exp %26 : vector<16x16xf32>
    %cst_16 = arith.constant dense<0.000000e+00> : vector<16xf32>
    %28 = vector.multi_reduction <add>, %27, %cst_16 [1] : vector<16x16xf32> to vector<16xf32>
    %29 = vector.shape_cast %28 : vector<16xf32> to vector<16x1xf32>
    %30 = tpu.reciprocal %29 {approx = true} : vector<16x1xf32> -> vector<16x1xf32>
    %31 = vector.broadcast %30 : vector<16x1xf32> to vector<16x16xf32>
    %32 = arith.mulf %27, %31 : vector<16x16xf32>
    %33 = vector.extract_strided_slice %7 {offsets = [0, 0], sizes = [16, 4], strides = [1, 1]} : vector<16x16xf32> to vector<16x4xf32>
    %cst_17 = arith.constant dense<0.000000e+00> : vector<16x4xf32>
    %34 = tpu.matmul %32, %33, %cst_17 {dimension_numbers = #tpu.dot_dimension_numbers<[1], [0], [0], [1], [0, 0, 1, 1], [], []>} : vector<16x16xf32>, vector<16x4xf32>, vector<16x4xf32> -> vector<16x4xf32>
    %35 = vector.extract_strided_slice %13 {offsets = [0, 0], sizes = [1, 4], strides = [1, 1]} : vector<1x16xf32> to vector<1x4xf32>
    %36 = vector.broadcast %35 : vector<1x4xf32> to vector<16x4xf32>
    %37 = arith.addf %34, %36 : vector<16x4xf32>
    %c0_18 = arith.constant 0 : index
    %c0_19 = arith.constant 0 : index
    %38 = vector.load %arg26[%c0_18, %c0_19] : memref<16x16xf32, #tpu.memory_space<vmem>>, vector<16x4xf32>
    tpu.vector_store %arg26[%c0_18, %c0_19], %37 {strides = array<i32>} : memref<16x16xf32, #tpu.memory_space<vmem>>, vector<16x4xf32>,
    %39 = vector.extract_strided_slice %11 {offsets = [0, 1], sizes = [16, 1], strides = [1, 1]} : vector<16x4xf32> to vector<16x1xf32>
    %40 = vector.extract_strided_slice %12 {offsets = [1, 0], sizes = [1, 16], strides = [1, 1]} : vector<4x16xf32> to vector<1x16xf32>
    %41 = vector.broadcast %39 : vector<16x1xf32> to vector<16x16xf32>
    %42 = vector.broadcast %40 : vector<1x16xf32> to vector<16x16xf32>
    %43 = arith.addf %41, %42 : vector<16x16xf32>
    %cst_20 = arith.constant 2.000000e-01 : f32
    %44 = vector.broadcast %cst_20 : f32 to vector<16x16xf32>
    %45 = arith.mulf %44, %43 : vector<16x16xf32>
    %46 = arith.maximumf %43, %45 : vector<16x16xf32>
    %47 = arith.addf %46, %0 : vector<16x16xf32>
    %cst_21 = arith.constant dense<0xFF800000> : vector<16xf32>
    %48 = vector.multi_reduction <maximumf>, %47, %cst_21 [1] : vector<16x16xf32> to vector<16xf32>
    %49 = vector.shape_cast %48 : vector<16xf32> to vector<16x1xf32>
    %50 = vector.broadcast %49 : vector<16x1xf32> to vector<16x16xf32>
    %51 = arith.subf %47, %50 : vector<16x16xf32>
    %52 = math.exp %51 : vector<16x16xf32>
    %cst_22 = arith.constant dense<0.000000e+00> : vector<16xf32>
    %53 = vector.multi_reduction <add>, %52, %cst_22 [1] : vector<16x16xf32> to vector<16xf32>
    %54 = vector.shape_cast %53 : vector<16xf32> to vector<16x1xf32>
    %55 = tpu.reciprocal %54 {approx = true} : vector<16x1xf32> -> vector<16x1xf32>
    %56 = vector.broadcast %55 : vector<16x1xf32> to vector<16x16xf32>
    %57 = arith.mulf %52, %56 : vector<16x16xf32>
    %58 = vector.extract_strided_slice %7 {offsets = [0, 4], sizes = [16, 4], strides = [1, 1]} : vector<16x16xf32> to vector<16x4xf32>
    %cst_23 = arith.constant dense<0.000000e+00> : vector<16x4xf32>
    %59 = tpu.matmul %57, %58, %cst_23 {dimension_numbers = #tpu.dot_dimension_numbers<[1], [0], [0], [1], [0, 0, 1, 1], [], []>} : vector<16x16xf32>, vector<16x4xf32>, vector<16x4xf32> -> vector<16x4xf32>
    %60 = vector.extract_strided_slice %13 {offsets = [0, 4], sizes = [1, 4], strides = [1, 1]} : vector<1x16xf32> to vector<1x4xf32>
    %61 = vector.broadcast %60 : vector<1x4xf32> to vector<16x4xf32>
    %62 = arith.addf %59, %61 : vector<16x4xf32>
    %c0_24 = arith.constant 0 : index
    %c4 = arith.constant 4 : index
    %63 = vector.load %arg26[%c0_24, %c4] : memref<16x16xf32, #tpu.memory_space<vmem>>, vector<16x4xf32>
    tpu.vector_store %arg26[%c0_24, %c4], %62 {strides = array<i32>} : memref<16x16xf32, #tpu.memory_space<vmem>>, vector<16x4xf32>,
    %64 = vector.extract_strided_slice %11 {offsets = [0, 2], sizes = [16, 1], strides = [1, 1]} : vector<16x4xf32> to vector<16x1xf32>
    %65 = vector.extract_strided_slice %12 {offsets = [2, 0], sizes = [1, 16], strides = [1, 1]} : vector<4x16xf32> to vector<1x16xf32>
    %66 = vector.broadcast %64 : vector<16x1xf32> to vector<16x16xf32>
    %67 = vector.broadcast %65 : vector<1x16xf32> to vector<16x16xf32>
    %68 = arith.addf %66, %67 : vector<16x16xf32>
    %cst_25 = arith.constant 2.000000e-01 : f32
    %69 = vector.broadcast %cst_25 : f32 to vector<16x16xf32>
    %70 = arith.mulf %69, %68 : vector<16x16xf32>
    %71 = arith.maximumf %68, %70 : vector<16x16xf32>
    %72 = arith.addf %71, %0 : vector<16x16xf32>
    %cst_26 = arith.constant dense<0xFF800000> : vector<16xf32>
    %73 = vector.multi_reduction <maximumf>, %72, %cst_26 [1] : vector<16x16xf32> to vector<16xf32>
    %74 = vector.shape_cast %73 : vector<16xf32> to vector<16x1xf32>
    %75 = vector.broadcast %74 : vector<16x1xf32> to vector<16x16xf32>
    %76 = arith.subf %72, %75 : vector<16x16xf32>
    %77 = math.exp %76 : vector<16x16xf32>
    %cst_27 = arith.constant dense<0.000000e+00> : vector<16xf32>
    %78 = vector.multi_reduction <add>, %77, %cst_27 [1] : vector<16x16xf32> to vector<16xf32>
    %79 = vector.shape_cast %78 : vector<16xf32> to vector<16x1xf32>
    %80 = tpu.reciprocal %79 {approx = true} : vector<16x1xf32> -> vector<16x1xf32>
    %81 = vector.broadcast %80 : vector<16x1xf32> to vector<16x16xf32>
    %82 = arith.mulf %77, %81 : vector<16x16xf32>
    %83 = vector.extract_strided_slice %7 {offsets = [0, 8], sizes = [16, 4], strides = [1, 1]} : vector<16x16xf32> to vector<16x4xf32>
    %cst_28 = arith.constant dense<0.000000e+00> : vector<16x4xf32>
    %84 = tpu.matmul %82, %83, %cst_28 {dimension_numbers = #tpu.dot_dimension_numbers<[1], [0], [0], [1], [0, 0, 1, 1], [], []>} : vector<16x16xf32>, vector<16x4xf32>, vector<16x4xf32> -> vector<16x4xf32>
    %85 = vector.extract_strided_slice %13 {offsets = [0, 8], sizes = [1, 4], strides = [1, 1]} : vector<1x16xf32> to vector<1x4xf32>
    %86 = vector.broadcast %85 : vector<1x4xf32> to vector<16x4xf32>
    %87 = arith.addf %84, %86 : vector<16x4xf32>
    %c0_29 = arith.constant 0 : index
    %c8 = arith.constant 8 : index
    %88 = vector.load %arg26[%c0_29, %c8] : memref<16x16xf32, #tpu.memory_space<vmem>>, vector<16x4xf32>
    tpu.vector_store %arg26[%c0_29, %c8], %87 {strides = array<i32>} : memref<16x16xf32, #tpu.memory_space<vmem>>, vector<16x4xf32>,
    %89 = vector.extract_strided_slice %11 {offsets = [0, 3], sizes = [16, 1], strides = [1, 1]} : vector<16x4xf32> to vector<16x1xf32>
    %90 = vector.extract_strided_slice %12 {offsets = [3, 0], sizes = [1, 16], strides = [1, 1]} : vector<4x16xf32> to vector<1x16xf32>
    %91 = vector.broadcast %89 : vector<16x1xf32> to vector<16x16xf32>
    %92 = vector.broadcast %90 : vector<1x16xf32> to vector<16x16xf32>
    %93 = arith.addf %91, %92 : vector<16x16xf32>
    %cst_30 = arith.constant 2.000000e-01 : f32
    %94 = vector.broadcast %cst_30 : f32 to vector<16x16xf32>
    %95 = arith.mulf %94, %93 : vector<16x16xf32>
    %96 = arith.maximumf %93, %95 : vector<16x16xf32>
    %97 = arith.addf %96, %0 : vector<16x16xf32>
    %cst_31 = arith.constant dense<0xFF800000> : vector<16xf32>
    %98 = vector.multi_reduction <maximumf>, %97, %cst_31 [1] : vector<16x16xf32> to vector<16xf32>
    %99 = vector.shape_cast %98 : vector<16xf32> to vector<16x1xf32>
    %100 = vector.broadcast %99 : vector<16x1xf32> to vector<16x16xf32>
    %101 = arith.subf %97, %100 : vector<16x16xf32>
    %102 = math.exp %101 : vector<16x16xf32>
    %cst_32 = arith.constant dense<0.000000e+00> : vector<16xf32>
    %103 = vector.multi_reduction <add>, %102, %cst_32 [1] : vector<16x16xf32> to vector<16xf32>
    %104 = vector.shape_cast %103 : vector<16xf32> to vector<16x1xf32>
    %105 = tpu.reciprocal %104 {approx = true} : vector<16x1xf32> -> vector<16x1xf32>
    %106 = vector.broadcast %105 : vector<16x1xf32> to vector<16x16xf32>
    %107 = arith.mulf %102, %106 : vector<16x16xf32>
    %108 = vector.extract_strided_slice %7 {offsets = [0, 12], sizes = [16, 4], strides = [1, 1]} : vector<16x16xf32> to vector<16x4xf32>
    %cst_33 = arith.constant dense<0.000000e+00> : vector<16x4xf32>
    %109 = tpu.matmul %107, %108, %cst_33 {dimension_numbers = #tpu.dot_dimension_numbers<[1], [0], [0], [1], [0, 0, 1, 1], [], []>} : vector<16x16xf32>, vector<16x4xf32>, vector<16x4xf32> -> vector<16x4xf32>
    %110 = vector.extract_strided_slice %13 {offsets = [0, 12], sizes = [1, 4], strides = [1, 1]} : vector<1x16xf32> to vector<1x4xf32>
    %111 = vector.broadcast %110 : vector<1x4xf32> to vector<16x4xf32>
    %112 = arith.addf %109, %111 : vector<16x4xf32>
    %c0_34 = arith.constant 0 : index
    %c12 = arith.constant 12 : index
    %113 = vector.load %arg26[%c0_34, %c12] : memref<16x16xf32, #tpu.memory_space<vmem>>, vector<16x4xf32>
    tpu.vector_store %arg26[%c0_34, %c12], %112 {strides = array<i32>} : memref<16x16xf32, #tpu.memory_space<vmem>>, vector<16x4xf32>,
    %114 = tpu.concatenate %24, %49, %74, %99 in 1 : vector<16x1xf32>, vector<16x1xf32>, vector<16x1xf32>, vector<16x1xf32> -> vector<16x4xf32>
    %115 = tpu.concatenate %30, %55, %80, %105 in 1 : vector<16x1xf32>, vector<16x1xf32>, vector<16x1xf32>, vector<16x1xf32> -> vector<16x4xf32>
    %cst_35 = arith.constant dense<0.000000e+00> : vector<48x4xf32>
    %116 = tpu.matmul %1, %10, %cst_35 {dimension_numbers = #tpu.dot_dimension_numbers<[1], [0], [0], [1], [0, 0, 1, 1], [], []>} : vector<48x16xf32>, vector<16x4xf32>, vector<48x4xf32> -> vector<48x4xf32>
    %cst_36 = arith.constant dense<0.000000e+00> : vector<48x4xf32>
    %117 = tpu.matmul %2, %11, %cst_36 {dimension_numbers = #tpu.dot_dimension_numbers<[1], [0], [0], [1], [0, 0, 1, 1], [], []>} : vector<48x16xf32>, vector<16x4xf32>, vector<48x4xf32> -> vector<48x4xf32>
    %118 = arith.addf %116, %117 : vector<48x4xf32>
    %cst_37 = arith.constant 2.000000e-01 : f32
    %119 = vector.broadcast %cst_37 : f32 to vector<48x4xf32>
    %120 = arith.mulf %119, %118 : vector<48x4xf32>
    %121 = arith.maximumf %118, %120 : vector<48x4xf32>
    %cst_38 = arith.constant dense<0.000000e+00> : vector<48x4xf32>
    %122 = tpu.matmul %2, %114, %cst_38 {dimension_numbers = #tpu.dot_dimension_numbers<[1], [0], [0], [1], [0, 0, 1, 1], [], []>} : vector<48x16xf32>, vector<16x4xf32>, vector<48x4xf32> -> vector<48x4xf32>
    %123 = arith.subf %121, %122 : vector<48x4xf32>
    %124 = math.exp %123 : vector<48x4xf32>
    %cst_39 = arith.constant dense<0.000000e+00> : vector<48x4xf32>
    %125 = tpu.matmul %2, %115, %cst_39 {dimension_numbers = #tpu.dot_dimension_numbers<[1], [0], [0], [1], [0, 0, 1, 1], [], []>} : vector<48x16xf32>, vector<16x4xf32>, vector<48x4xf32> -> vector<48x4xf32>
    %126 = arith.mulf %124, %125 : vector<48x4xf32>
    %c0_40 = arith.constant 0 : index
    %c0_41 = arith.constant 0 : index
    %127 = vector.load %arg23[%c0_40, %c0_41] : memref<48x4xf32, #tpu.memory_space<vmem>>, vector<48x4xf32>
    tpu.vector_store %arg23[%c0_40, %c0_41], %126 {strides = array<i32>} : memref<48x4xf32, #tpu.memory_space<vmem>>, vector<48x4xf32>,
    %c0_42 = arith.constant 0 : index
    %c0_43 = arith.constant 0 : index
    %128 = vector.load %arg26[%c0_42, %c0_43] : memref<16x16xf32, #tpu.memory_space<vmem>>, vector<16x16xf32>
    %c0_44 = arith.constant 0 : index
    %c0_45 = arith.constant 0 : index
    %129 = vector.load %arg8[%c0_44, %c0_45] : memref<1x16xf32, #tpu.memory_space<vmem>>, vector<1x16xf32>
    %c0_46 = arith.constant 0 : index
    %c0_47 = arith.constant 0 : index
    %130 = vector.load %arg9[%c0_46, %c0_47] : memref<1x16xf32, #tpu.memory_space<vmem>>, vector<1x16xf32>
    %cst_48 = arith.constant dense<0.000000e+00> : vector<16xf32>
    %131 = vector.multi_reduction <add>, %128, %cst_48 [1] : vector<16x16xf32> to vector<16xf32>
    %132 = vector.shape_cast %131 : vector<16xf32> to vector<16x1xf32>
    %cst_49 = arith.constant 1.600000e+01 : f32
    %133 = vector.broadcast %cst_49 : f32 to vector<16x1xf32>
    %134 = arith.divf %132, %133 : vector<16x1xf32>
    %135 = vector.broadcast %134 : vector<16x1xf32> to vector<16x16xf32>
    %136 = arith.subf %128, %135 : vector<16x16xf32>
    %137 = arith.mulf %136, %136 : vector<16x16xf32>
    %cst_50 = arith.constant dense<0.000000e+00> : vector<16xf32>
    %138 = vector.multi_reduction <add>, %137, %cst_50 [1] : vector<16x16xf32> to vector<16xf32>
    %139 = vector.shape_cast %138 : vector<16xf32> to vector<16x1xf32>
    %cst_51 = arith.constant 1.600000e+01 : f32
    %140 = vector.broadcast %cst_51 : f32 to vector<16x1xf32>
    %141 = arith.divf %139, %140 : vector<16x1xf32>
    %142 = vector.broadcast %134 : vector<16x1xf32> to vector<16x16xf32>
    %143 = arith.subf %128, %142 : vector<16x16xf32>
    %cst_52 = arith.constant 9.99999974E-6 : f32
    %144 = vector.broadcast %cst_52 : f32 to vector<16x1xf32>
    %145 = arith.addf %141, %144 : vector<16x1xf32>
    %146 = math.rsqrt %145 : vector<16x1xf32>
    %147 = vector.broadcast %146 : vector<16x1xf32> to vector<16x16xf32>
    %148 = arith.mulf %143, %147 : vector<16x16xf32>
    %149 = vector.broadcast %129 : vector<1x16xf32> to vector<16x16xf32>
    %150 = arith.mulf %148, %149 : vector<16x16xf32>
    %151 = vector.broadcast %130 : vector<1x16xf32> to vector<16x16xf32>
    %152 = arith.addf %150, %151 : vector<16x16xf32>
    %cst_53 = arith.constant 0.000000e+00 : f32
    %153 = vector.broadcast %cst_53 : f32 to vector<16x16xf32>
    %154 = arith.maximumf %152, %153 : vector<16x16xf32>
    %c0_54 = arith.constant 0 : index
    %c0_55 = arith.constant 0 : index
    %155 = vector.load %arg10[%c0_54, %c0_55] : memref<16x16xf32, #tpu.memory_space<vmem>>, vector<16x16xf32>
    %156 = arith.truncf %154 : vector<16x16xf32> to vector<16x16xbf16>
    %157 = arith.truncf %155 : vector<16x16xf32> to vector<16x16xbf16>
    %cst_56 = arith.constant dense<0.000000e+00> : vector<16x16xf32>
    %158 = tpu.matmul %156, %157, %cst_56 {dimension_numbers = #tpu.dot_dimension_numbers<[1], [0], [0], [1], [0, 0, 1, 1], [], []>} : vector<16x16xbf16>, vector<16x16xbf16>, vector<16x16xf32> -> vector<16x16xf32>
    %c0_57 = arith.constant 0 : index
    %c0_58 = arith.constant 0 : index
    %159 = vector.load %arg11[%c0_57, %c0_58] : memref<16x8xf32, #tpu.memory_space<vmem>>, vector<16x8xf32>
    %cst_59 = arith.constant dense<0.000000e+00> : vector<16x8xf32>
    %160 = tpu.matmul %158, %159, %cst_59 {dimension_numbers = #tpu.dot_dimension_numbers<[1], [0], [0], [1], [0, 0, 1, 1], [], []>} : vector<16x16xf32>, vector<16x8xf32>, vector<16x8xf32> -> vector<16x8xf32>
    %161 = vector.extract_strided_slice %160 {offsets = [0, 0], sizes = [16, 4], strides = [1, 1]} : vector<16x8xf32> to vector<16x4xf32>
    %162 = vector.extract_strided_slice %160 {offsets = [0, 4], sizes = [16, 4], strides = [1, 1]} : vector<16x8xf32> to vector<16x4xf32>
    %163 = tpu.transpose %161, [1, 0] : vector<16x4xf32> -> vector<4x16xf32>
    %c0_60 = arith.constant 0 : index
    %c0_61 = arith.constant 0 : index
    %164 = vector.load %arg12[%c0_60, %c0_61] : memref<1x16xf32, #tpu.memory_space<vmem>>, vector<1x16xf32>
    %165 = vector.extract_strided_slice %162 {offsets = [0, 0], sizes = [16, 1], strides = [1, 1]} : vector<16x4xf32> to vector<16x1xf32>
    %166 = vector.extract_strided_slice %163 {offsets = [0, 0], sizes = [1, 16], strides = [1, 1]} : vector<4x16xf32> to vector<1x16xf32>
    %167 = vector.broadcast %165 : vector<16x1xf32> to vector<16x16xf32>
    %168 = vector.broadcast %166 : vector<1x16xf32> to vector<16x16xf32>
    %169 = arith.addf %167, %168 : vector<16x16xf32>
    %cst_62 = arith.constant 2.000000e-01 : f32
    %170 = vector.broadcast %cst_62 : f32 to vector<16x16xf32>
    %171 = arith.mulf %170, %169 : vector<16x16xf32>
    %172 = arith.maximumf %169, %171 : vector<16x16xf32>
    %173 = arith.addf %172, %0 : vector<16x16xf32>
    %cst_63 = arith.constant dense<0xFF800000> : vector<16xf32>
    %174 = vector.multi_reduction <maximumf>, %173, %cst_63 [1] : vector<16x16xf32> to vector<16xf32>
    %175 = vector.shape_cast %174 : vector<16xf32> to vector<16x1xf32>
    %176 = vector.broadcast %175 : vector<16x1xf32> to vector<16x16xf32>
    %177 = arith.subf %173, %176 : vector<16x16xf32>
    %178 = math.exp %177 : vector<16x16xf32>
    %cst_64 = arith.constant dense<0.000000e+00> : vector<16xf32>
    %179 = vector.multi_reduction <add>, %178, %cst_64 [1] : vector<16x16xf32> to vector<16xf32>
    %180 = vector.shape_cast %179 : vector<16xf32> to vector<16x1xf32>
    %181 = tpu.reciprocal %180 {approx = true} : vector<16x1xf32> -> vector<16x1xf32>
    %182 = vector.broadcast %181 : vector<16x1xf32> to vector<16x16xf32>
    %183 = arith.mulf %178, %182 : vector<16x16xf32>
    %184 = vector.extract_strided_slice %158 {offsets = [0, 0], sizes = [16, 4], strides = [1, 1]} : vector<16x16xf32> to vector<16x4xf32>
    %cst_65 = arith.constant dense<0.000000e+00> : vector<16x4xf32>
    %185 = tpu.matmul %183, %184, %cst_65 {dimension_numbers = #tpu.dot_dimension_numbers<[1], [0], [0], [1], [0, 0, 1, 1], [], []>} : vector<16x16xf32>, vector<16x4xf32>, vector<16x4xf32> -> vector<16x4xf32>
    %186 = vector.extract_strided_slice %164 {offsets = [0, 0], sizes = [1, 4], strides = [1, 1]} : vector<1x16xf32> to vector<1x4xf32>
    %187 = vector.broadcast %186 : vector<1x4xf32> to vector<16x4xf32>
    %188 = arith.addf %185, %187 : vector<16x4xf32>
    %c0_66 = arith.constant 0 : index
    %c0_67 = arith.constant 0 : index
    %189 = vector.load %arg27[%c0_66, %c0_67] : memref<16x16xf32, #tpu.memory_space<vmem>>, vector<16x4xf32>
    tpu.vector_store %arg27[%c0_66, %c0_67], %188 {strides = array<i32>} : memref<16x16xf32, #tpu.memory_space<vmem>>, vector<16x4xf32>,
    %190 = vector.extract_strided_slice %162 {offsets = [0, 1], sizes = [16, 1], strides = [1, 1]} : vector<16x4xf32> to vector<16x1xf32>
    %191 = vector.extract_strided_slice %163 {offsets = [1, 0], sizes = [1, 16], strides = [1, 1]} : vector<4x16xf32> to vector<1x16xf32>
    %192 = vector.broadcast %190 : vector<16x1xf32> to vector<16x16xf32>
    %193 = vector.broadcast %191 : vector<1x16xf32> to vector<16x16xf32>
    %194 = arith.addf %192, %193 : vector<16x16xf32>
    %cst_68 = arith.constant 2.000000e-01 : f32
    %195 = vector.broadcast %cst_68 : f32 to vector<16x16xf32>
    %196 = arith.mulf %195, %194 : vector<16x16xf32>
    %197 = arith.maximumf %194, %196 : vector<16x16xf32>
    %198 = arith.addf %197, %0 : vector<16x16xf32>
    %cst_69 = arith.constant dense<0xFF800000> : vector<16xf32>
    %199 = vector.multi_reduction <maximumf>, %198, %cst_69 [1] : vector<16x16xf32> to vector<16xf32>
    %200 = vector.shape_cast %199 : vector<16xf32> to vector<16x1xf32>
    %201 = vector.broadcast %200 : vector<16x1xf32> to vector<16x16xf32>
    %202 = arith.subf %198, %201 : vector<16x16xf32>
    %203 = math.exp %202 : vector<16x16xf32>
    %cst_70 = arith.constant dense<0.000000e+00> : vector<16xf32>
    %204 = vector.multi_reduction <add>, %203, %cst_70 [1] : vector<16x16xf32> to vector<16xf32>
    %205 = vector.shape_cast %204 : vector<16xf32> to vector<16x1xf32>
    %206 = tpu.reciprocal %205 {approx = true} : vector<16x1xf32> -> vector<16x1xf32>
    %207 = vector.broadcast %206 : vector<16x1xf32> to vector<16x16xf32>
    %208 = arith.mulf %203, %207 : vector<16x16xf32>
    %209 = vector.extract_strided_slice %158 {offsets = [0, 4], sizes = [16, 4], strides = [1, 1]} : vector<16x16xf32> to vector<16x4xf32>
    %cst_71 = arith.constant dense<0.000000e+00> : vector<16x4xf32>
    %210 = tpu.matmul %208, %209, %cst_71 {dimension_numbers = #tpu.dot_dimension_numbers<[1], [0], [0], [1], [0, 0, 1, 1], [], []>} : vector<16x16xf32>, vector<16x4xf32>, vector<16x4xf32> -> vector<16x4xf32>
    %211 = vector.extract_strided_slice %164 {offsets = [0, 4], sizes = [1, 4], strides = [1, 1]} : vector<1x16xf32> to vector<1x4xf32>
    %212 = vector.broadcast %211 : vector<1x4xf32> to vector<16x4xf32>
    %213 = arith.addf %210, %212 : vector<16x4xf32>
    %c0_72 = arith.constant 0 : index
    %c4_73 = arith.constant 4 : index
    %214 = vector.load %arg27[%c0_72, %c4_73] : memref<16x16xf32, #tpu.memory_space<vmem>>, vector<16x4xf32>
    tpu.vector_store %arg27[%c0_72, %c4_73], %213 {strides = array<i32>} : memref<16x16xf32, #tpu.memory_space<vmem>>, vector<16x4xf32>,
    %215 = vector.extract_strided_slice %162 {offsets = [0, 2], sizes = [16, 1], strides = [1, 1]} : vector<16x4xf32> to vector<16x1xf32>
    %216 = vector.extract_strided_slice %163 {offsets = [2, 0], sizes = [1, 16], strides = [1, 1]} : vector<4x16xf32> to vector<1x16xf32>
    %217 = vector.broadcast %215 : vector<16x1xf32> to vector<16x16xf32>
    %218 = vector.broadcast %216 : vector<1x16xf32> to vector<16x16xf32>
    %219 = arith.addf %217, %218 : vector<16x16xf32>
    %cst_74 = arith.constant 2.000000e-01 : f32
    %220 = vector.broadcast %cst_74 : f32 to vector<16x16xf32>
    %221 = arith.mulf %220, %219 : vector<16x16xf32>
    %222 = arith.maximumf %219, %221 : vector<16x16xf32>
    %223 = arith.addf %222, %0 : vector<16x16xf32>
    %cst_75 = arith.constant dense<0xFF800000> : vector<16xf32>
    %224 = vector.multi_reduction <maximumf>, %223, %cst_75 [1] : vector<16x16xf32> to vector<16xf32>
    %225 = vector.shape_cast %224 : vector<16xf32> to vector<16x1xf32>
    %226 = vector.broadcast %225 : vector<16x1xf32> to vector<16x16xf32>
    %227 = arith.subf %223, %226 : vector<16x16xf32>
    %228 = math.exp %227 : vector<16x16xf32>
    %cst_76 = arith.constant dense<0.000000e+00> : vector<16xf32>
    %229 = vector.multi_reduction <add>, %228, %cst_76 [1] : vector<16x16xf32> to vector<16xf32>
    %230 = vector.shape_cast %229 : vector<16xf32> to vector<16x1xf32>
    %231 = tpu.reciprocal %230 {approx = true} : vector<16x1xf32> -> vector<16x1xf32>
    %232 = vector.broadcast %231 : vector<16x1xf32> to vector<16x16xf32>
    %233 = arith.mulf %228, %232 : vector<16x16xf32>
    %234 = vector.extract_strided_slice %158 {offsets = [0, 8], sizes = [16, 4], strides = [1, 1]} : vector<16x16xf32> to vector<16x4xf32>
    %cst_77 = arith.constant dense<0.000000e+00> : vector<16x4xf32>
    %235 = tpu.matmul %233, %234, %cst_77 {dimension_numbers = #tpu.dot_dimension_numbers<[1], [0], [0], [1], [0, 0, 1, 1], [], []>} : vector<16x16xf32>, vector<16x4xf32>, vector<16x4xf32> -> vector<16x4xf32>
    %236 = vector.extract_strided_slice %164 {offsets = [0, 8], sizes = [1, 4], strides = [1, 1]} : vector<1x16xf32> to vector<1x4xf32>
    %237 = vector.broadcast %236 : vector<1x4xf32> to vector<16x4xf32>
    %238 = arith.addf %235, %237 : vector<16x4xf32>
    %c0_78 = arith.constant 0 : index
    %c8_79 = arith.constant 8 : index
    %239 = vector.load %arg27[%c0_78, %c8_79] : memref<16x16xf32, #tpu.memory_space<vmem>>, vector<16x4xf32>
    tpu.vector_store %arg27[%c0_78, %c8_79], %238 {strides = array<i32>} : memref<16x16xf32, #tpu.memory_space<vmem>>, vector<16x4xf32>,
    %240 = vector.extract_strided_slice %162 {offsets = [0, 3], sizes = [16, 1], strides = [1, 1]} : vector<16x4xf32> to vector<16x1xf32>
    %241 = vector.extract_strided_slice %163 {offsets = [3, 0], sizes = [1, 16], strides = [1, 1]} : vector<4x16xf32> to vector<1x16xf32>
    %242 = vector.broadcast %240 : vector<16x1xf32> to vector<16x16xf32>
    %243 = vector.broadcast %241 : vector<1x16xf32> to vector<16x16xf32>
    %244 = arith.addf %242, %243 : vector<16x16xf32>
    %cst_80 = arith.constant 2.000000e-01 : f32
    %245 = vector.broadcast %cst_80 : f32 to vector<16x16xf32>
    %246 = arith.mulf %245, %244 : vector<16x16xf32>
    %247 = arith.maximumf %244, %246 : vector<16x16xf32>
    %248 = arith.addf %247, %0 : vector<16x16xf32>
    %cst_81 = arith.constant dense<0xFF800000> : vector<16xf32>
    %249 = vector.multi_reduction <maximumf>, %248, %cst_81 [1] : vector<16x16xf32> to vector<16xf32>
    %250 = vector.shape_cast %249 : vector<16xf32> to vector<16x1xf32>
    %251 = vector.broadcast %250 : vector<16x1xf32> to vector<16x16xf32>
    %252 = arith.subf %248, %251 : vector<16x16xf32>
    %253 = math.exp %252 : vector<16x16xf32>
    %cst_82 = arith.constant dense<0.000000e+00> : vector<16xf32>
    %254 = vector.multi_reduction <add>, %253, %cst_82 [1] : vector<16x16xf32> to vector<16xf32>
    %255 = vector.shape_cast %254 : vector<16xf32> to vector<16x1xf32>
    %256 = tpu.reciprocal %255 {approx = true} : vector<16x1xf32> -> vector<16x1xf32>
    %257 = vector.broadcast %256 : vector<16x1xf32> to vector<16x16xf32>
    %258 = arith.mulf %253, %257 : vector<16x16xf32>
    %259 = vector.extract_strided_slice %158 {offsets = [0, 12], sizes = [16, 4], strides = [1, 1]} : vector<16x16xf32> to vector<16x4xf32>
    %cst_83 = arith.constant dense<0.000000e+00> : vector<16x4xf32>
    %260 = tpu.matmul %258, %259, %cst_83 {dimension_numbers = #tpu.dot_dimension_numbers<[1], [0], [0], [1], [0, 0, 1, 1], [], []>} : vector<16x16xf32>, vector<16x4xf32>, vector<16x4xf32> -> vector<16x4xf32>
    %261 = vector.extract_strided_slice %164 {offsets = [0, 12], sizes = [1, 4], strides = [1, 1]} : vector<1x16xf32> to vector<1x4xf32>
    %262 = vector.broadcast %261 : vector<1x4xf32> to vector<16x4xf32>
    %263 = arith.addf %260, %262 : vector<16x4xf32>
    %c0_84 = arith.constant 0 : index
    %c12_85 = arith.constant 12 : index
    %264 = vector.load %arg27[%c0_84, %c12_85] : memref<16x16xf32, #tpu.memory_space<vmem>>, vector<16x4xf32>
    tpu.vector_store %arg27[%c0_84, %c12_85], %263 {strides = array<i32>} : memref<16x16xf32, #tpu.memory_space<vmem>>, vector<16x4xf32>,
    %265 = tpu.concatenate %175, %200, %225, %250 in 1 : vector<16x1xf32>, vector<16x1xf32>, vector<16x1xf32>, vector<16x1xf32> -> vector<16x4xf32>
    %266 = tpu.concatenate %181, %206, %231, %256 in 1 : vector<16x1xf32>, vector<16x1xf32>, vector<16x1xf32>, vector<16x1xf32> -> vector<16x4xf32>
    %cst_86 = arith.constant dense<0.000000e+00> : vector<48x4xf32>
    %267 = tpu.matmul %1, %161, %cst_86 {dimension_numbers = #tpu.dot_dimension_numbers<[1], [0], [0], [1], [0, 0, 1, 1], [], []>} : vector<48x16xf32>, vector<16x4xf32>, vector<48x4xf32> -> vector<48x4xf32>
    %cst_87 = arith.constant dense<0.000000e+00> : vector<48x4xf32>
    %268 = tpu.matmul %2, %162, %cst_87 {dimension_numbers = #tpu.dot_dimension_numbers<[1], [0], [0], [1], [0, 0, 1, 1], [], []>} : vector<48x16xf32>, vector<16x4xf32>, vector<48x4xf32> -> vector<48x4xf32>
    %269 = arith.addf %267, %268 : vector<48x4xf32>
    %cst_88 = arith.constant 2.000000e-01 : f32
    %270 = vector.broadcast %cst_88 : f32 to vector<48x4xf32>
    %271 = arith.mulf %270, %269 : vector<48x4xf32>
    %272 = arith.maximumf %269, %271 : vector<48x4xf32>
    %cst_89 = arith.constant dense<0.000000e+00> : vector<48x4xf32>
    %273 = tpu.matmul %2, %265, %cst_89 {dimension_numbers = #tpu.dot_dimension_numbers<[1], [0], [0], [1], [0, 0, 1, 1], [], []>} : vector<48x16xf32>, vector<16x4xf32>, vector<48x4xf32> -> vector<48x4xf32>
    %274 = arith.subf %272, %273 : vector<48x4xf32>
    %275 = math.exp %274 : vector<48x4xf32>
    %cst_90 = arith.constant dense<0.000000e+00> : vector<48x4xf32>
    %276 = tpu.matmul %2, %266, %cst_90 {dimension_numbers = #tpu.dot_dimension_numbers<[1], [0], [0], [1], [0, 0, 1, 1], [], []>} : vector<48x16xf32>, vector<16x4xf32>, vector<48x4xf32> -> vector<48x4xf32>
    %277 = arith.mulf %275, %276 : vector<48x4xf32>
    %c0_91 = arith.constant 0 : index
    %c0_92 = arith.constant 0 : index
    %278 = vector.load %arg24[%c0_91, %c0_92] : memref<48x4xf32, #tpu.memory_space<vmem>>, vector<48x4xf32>
    tpu.vector_store %arg24[%c0_91, %c0_92], %277 {strides = array<i32>} : memref<48x4xf32, #tpu.memory_space<vmem>>, vector<48x4xf32>,
    %c0_93 = arith.constant 0 : index
    %c0_94 = arith.constant 0 : index
    %279 = vector.load %arg27[%c0_93, %c0_94] : memref<16x16xf32, #tpu.memory_space<vmem>>, vector<16x16xf32>
    %c0_95 = arith.constant 0 : index
    %c0_96 = arith.constant 0 : index
    %280 = vector.load %arg13[%c0_95, %c0_96] : memref<1x16xf32, #tpu.memory_space<vmem>>, vector<1x16xf32>
    %c0_97 = arith.constant 0 : index
    %c0_98 = arith.constant 0 : index
    %281 = vector.load %arg14[%c0_97, %c0_98] : memref<1x16xf32, #tpu.memory_space<vmem>>, vector<1x16xf32>
    %cst_99 = arith.constant dense<0.000000e+00> : vector<16xf32>
    %282 = vector.multi_reduction <add>, %279, %cst_99 [1] : vector<16x16xf32> to vector<16xf32>
    %283 = vector.shape_cast %282 : vector<16xf32> to vector<16x1xf32>
    %cst_100 = arith.constant 1.600000e+01 : f32
    %284 = vector.broadcast %cst_100 : f32 to vector<16x1xf32>
    %285 = arith.divf %283, %284 : vector<16x1xf32>
    %286 = vector.broadcast %285 : vector<16x1xf32> to vector<16x16xf32>
    %287 = arith.subf %279, %286 : vector<16x16xf32>
    %288 = arith.mulf %287, %287 : vector<16x16xf32>
    %cst_101 = arith.constant dense<0.000000e+00> : vector<16xf32>
    %289 = vector.multi_reduction <add>, %288, %cst_101 [1] : vector<16x16xf32> to vector<16xf32>
    %290 = vector.shape_cast %289 : vector<16xf32> to vector<16x1xf32>
    %cst_102 = arith.constant 1.600000e+01 : f32
    %291 = vector.broadcast %cst_102 : f32 to vector<16x1xf32>
    %292 = arith.divf %290, %291 : vector<16x1xf32>
    %293 = vector.broadcast %285 : vector<16x1xf32> to vector<16x16xf32>
    %294 = arith.subf %279, %293 : vector<16x16xf32>
    %cst_103 = arith.constant 9.99999974E-6 : f32
    %295 = vector.broadcast %cst_103 : f32 to vector<16x1xf32>
    %296 = arith.addf %292, %295 : vector<16x1xf32>
    %297 = math.rsqrt %296 : vector<16x1xf32>
    %298 = vector.broadcast %297 : vector<16x1xf32> to vector<16x16xf32>
    %299 = arith.mulf %294, %298 : vector<16x16xf32>
    %300 = vector.broadcast %280 : vector<1x16xf32> to vector<16x16xf32>
    %301 = arith.mulf %299, %300 : vector<16x16xf32>
    %302 = vector.broadcast %281 : vector<1x16xf32> to vector<16x16xf32>
    %303 = arith.addf %301, %302 : vector<16x16xf32>
    %cst_104 = arith.constant 0.000000e+00 : f32
    %304 = vector.broadcast %cst_104 : f32 to vector<16x16xf32>
    %305 = arith.maximumf %303, %304 : vector<16x16xf32>
    %c0_105 = arith.constant 0 : index
    %c0_106 = arith.constant 0 : index
    %306 = vector.load %arg15[%c0_105, %c0_106] : memref<16x12xf32, #tpu.memory_space<vmem>>, vector<16x12xf32>
    %307 = arith.truncf %305 : vector<16x16xf32> to vector<16x16xbf16>
    %308 = arith.truncf %306 : vector<16x12xf32> to vector<16x12xbf16>
    %cst_107 = arith.constant dense<0.000000e+00> : vector<16x12xf32>
    %309 = tpu.matmul %307, %308, %cst_107 {dimension_numbers = #tpu.dot_dimension_numbers<[1], [0], [0], [1], [0, 0, 1, 1], [], []>} : vector<16x16xbf16>, vector<16x12xbf16>, vector<16x12xf32> -> vector<16x12xf32>
    %c0_108 = arith.constant 0 : index
    %c0_109 = arith.constant 0 : index
    %310 = vector.load %arg16[%c0_108, %c0_109] : memref<12x12xf32, #tpu.memory_space<vmem>>, vector<12x12xf32>
    %cst_110 = arith.constant dense<0.000000e+00> : vector<16x12xf32>
    %311 = tpu.matmul %309, %310, %cst_110 {dimension_numbers = #tpu.dot_dimension_numbers<[1], [0], [0], [1], [0, 0, 1, 1], [], []>} : vector<16x12xf32>, vector<12x12xf32>, vector<16x12xf32> -> vector<16x12xf32>
    %312 = vector.extract_strided_slice %311 {offsets = [0, 0], sizes = [16, 6], strides = [1, 1]} : vector<16x12xf32> to vector<16x6xf32>
    %313 = vector.extract_strided_slice %311 {offsets = [0, 6], sizes = [16, 6], strides = [1, 1]} : vector<16x12xf32> to vector<16x6xf32>
    %314 = tpu.transpose %312, [1, 0] : vector<16x6xf32> -> vector<6x16xf32>
    %c0_111 = arith.constant 0 : index
    %c0_112 = arith.constant 0 : index
    %315 = vector.load %arg17[%c0_111, %c0_112] : memref<1x12xf32, #tpu.memory_space<vmem>>, vector<1x12xf32>
    %316 = vector.extract_strided_slice %313 {offsets = [0, 0], sizes = [16, 1], strides = [1, 1]} : vector<16x6xf32> to vector<16x1xf32>
    %317 = vector.extract_strided_slice %314 {offsets = [0, 0], sizes = [1, 16], strides = [1, 1]} : vector<6x16xf32> to vector<1x16xf32>
    %318 = vector.broadcast %316 : vector<16x1xf32> to vector<16x16xf32>
    %319 = vector.broadcast %317 : vector<1x16xf32> to vector<16x16xf32>
    %320 = arith.addf %318, %319 : vector<16x16xf32>
    %cst_113 = arith.constant 2.000000e-01 : f32
    %321 = vector.broadcast %cst_113 : f32 to vector<16x16xf32>
    %322 = arith.mulf %321, %320 : vector<16x16xf32>
    %323 = arith.maximumf %320, %322 : vector<16x16xf32>
    %324 = arith.addf %323, %0 : vector<16x16xf32>
    %cst_114 = arith.constant dense<0xFF800000> : vector<16xf32>
    %325 = vector.multi_reduction <maximumf>, %324, %cst_114 [1] : vector<16x16xf32> to vector<16xf32>
    %326 = vector.shape_cast %325 : vector<16xf32> to vector<16x1xf32>
    %327 = vector.broadcast %326 : vector<16x1xf32> to vector<16x16xf32>
    %328 = arith.subf %324, %327 : vector<16x16xf32>
    %329 = math.exp %328 : vector<16x16xf32>
    %cst_115 = arith.constant dense<0.000000e+00> : vector<16xf32>
    %330 = vector.multi_reduction <add>, %329, %cst_115 [1] : vector<16x16xf32> to vector<16xf32>
    %331 = vector.shape_cast %330 : vector<16xf32> to vector<16x1xf32>
    %332 = tpu.reciprocal %331 {approx = true} : vector<16x1xf32> -> vector<16x1xf32>
    %333 = vector.broadcast %332 : vector<16x1xf32> to vector<16x16xf32>
    %334 = arith.mulf %329, %333 : vector<16x16xf32>
    %335 = vector.extract_strided_slice %309 {offsets = [0, 0], sizes = [16, 2], strides = [1, 1]} : vector<16x12xf32> to vector<16x2xf32>
    %cst_116 = arith.constant dense<0.000000e+00> : vector<16x2xf32>
    %336 = tpu.matmul %334, %335, %cst_116 {dimension_numbers = #tpu.dot_dimension_numbers<[1], [0], [0], [1], [0, 0, 1, 1], [], []>} : vector<16x16xf32>, vector<16x2xf32>, vector<16x2xf32> -> vector<16x2xf32>
    %337 = vector.extract_strided_slice %315 {offsets = [0, 0], sizes = [1, 2], strides = [1, 1]} : vector<1x12xf32> to vector<1x2xf32>
    %338 = vector.broadcast %337 : vector<1x2xf32> to vector<16x2xf32>
    %339 = arith.addf %336, %338 : vector<16x2xf32>
    %c0_117 = arith.constant 0 : index
    %c0_118 = arith.constant 0 : index
    %340 = vector.load %arg28[%c0_117, %c0_118] : memref<16x12xf32, #tpu.memory_space<vmem>>, vector<16x2xf32>
    tpu.vector_store %arg28[%c0_117, %c0_118], %339 {strides = array<i32>} : memref<16x12xf32, #tpu.memory_space<vmem>>, vector<16x2xf32>,
    %341 = vector.extract_strided_slice %313 {offsets = [0, 1], sizes = [16, 1], strides = [1, 1]} : vector<16x6xf32> to vector<16x1xf32>
    %342 = vector.extract_strided_slice %314 {offsets = [1, 0], sizes = [1, 16], strides = [1, 1]} : vector<6x16xf32> to vector<1x16xf32>
    %343 = vector.broadcast %341 : vector<16x1xf32> to vector<16x16xf32>
    %344 = vector.broadcast %342 : vector<1x16xf32> to vector<16x16xf32>
    %345 = arith.addf %343, %344 : vector<16x16xf32>
    %cst_119 = arith.constant 2.000000e-01 : f32
    %346 = vector.broadcast %cst_119 : f32 to vector<16x16xf32>
    %347 = arith.mulf %346, %345 : vector<16x16xf32>
    %348 = arith.maximumf %345, %347 : vector<16x16xf32>
    %349 = arith.addf %348, %0 : vector<16x16xf32>
    %cst_120 = arith.constant dense<0xFF800000> : vector<16xf32>
    %350 = vector.multi_reduction <maximumf>, %349, %cst_120 [1] : vector<16x16xf32> to vector<16xf32>
    %351 = vector.shape_cast %350 : vector<16xf32> to vector<16x1xf32>
    %352 = vector.broadcast %351 : vector<16x1xf32> to vector<16x16xf32>
    %353 = arith.subf %349, %352 : vector<16x16xf32>
    %354 = math.exp %353 : vector<16x16xf32>
    %cst_121 = arith.constant dense<0.000000e+00> : vector<16xf32>
    %355 = vector.multi_reduction <add>, %354, %cst_121 [1] : vector<16x16xf32> to vector<16xf32>
    %356 = vector.shape_cast %355 : vector<16xf32> to vector<16x1xf32>
    %357 = tpu.reciprocal %356 {approx = true} : vector<16x1xf32> -> vector<16x1xf32>
    %358 = vector.broadcast %357 : vector<16x1xf32> to vector<16x16xf32>
    %359 = arith.mulf %354, %358 : vector<16x16xf32>
    %360 = vector.extract_strided_slice %309 {offsets = [0, 2], sizes = [16, 2], strides = [1, 1]} : vector<16x12xf32> to vector<16x2xf32>
    %cst_122 = arith.constant dense<0.000000e+00> : vector<16x2xf32>
    %361 = tpu.matmul %359, %360, %cst_122 {dimension_numbers = #tpu.dot_dimension_numbers<[1], [0], [0], [1], [0, 0, 1, 1], [], []>} : vector<16x16xf32>, vector<16x2xf32>, vector<16x2xf32> -> vector<16x2xf32>
    %362 = vector.extract_strided_slice %315 {offsets = [0, 2], sizes = [1, 2], strides = [1, 1]} : vector<1x12xf32> to vector<1x2xf32>
    %363 = vector.broadcast %362 : vector<1x2xf32> to vector<16x2xf32>
    %364 = arith.addf %361, %363 : vector<16x2xf32>
    %c0_123 = arith.constant 0 : index
    %c2 = arith.constant 2 : index
    %365 = vector.load %arg28[%c0_123, %c2] : memref<16x12xf32, #tpu.memory_space<vmem>>, vector<16x2xf32>
    tpu.vector_store %arg28[%c0_123, %c2], %364 {strides = array<i32>} : memref<16x12xf32, #tpu.memory_space<vmem>>, vector<16x2xf32>,
    %366 = vector.extract_strided_slice %313 {offsets = [0, 2], sizes = [16, 1], strides = [1, 1]} : vector<16x6xf32> to vector<16x1xf32>
    %367 = vector.extract_strided_slice %314 {offsets = [2, 0], sizes = [1, 16], strides = [1, 1]} : vector<6x16xf32> to vector<1x16xf32>
    %368 = vector.broadcast %366 : vector<16x1xf32> to vector<16x16xf32>
    %369 = vector.broadcast %367 : vector<1x16xf32> to vector<16x16xf32>
    %370 = arith.addf %368, %369 : vector<16x16xf32>
    %cst_124 = arith.constant 2.000000e-01 : f32
    %371 = vector.broadcast %cst_124 : f32 to vector<16x16xf32>
    %372 = arith.mulf %371, %370 : vector<16x16xf32>
    %373 = arith.maximumf %370, %372 : vector<16x16xf32>
    %374 = arith.addf %373, %0 : vector<16x16xf32>
    %cst_125 = arith.constant dense<0xFF800000> : vector<16xf32>
    %375 = vector.multi_reduction <maximumf>, %374, %cst_125 [1] : vector<16x16xf32> to vector<16xf32>
    %376 = vector.shape_cast %375 : vector<16xf32> to vector<16x1xf32>
    %377 = vector.broadcast %376 : vector<16x1xf32> to vector<16x16xf32>
    %378 = arith.subf %374, %377 : vector<16x16xf32>
    %379 = math.exp %378 : vector<16x16xf32>
    %cst_126 = arith.constant dense<0.000000e+00> : vector<16xf32>
    %380 = vector.multi_reduction <add>, %379, %cst_126 [1] : vector<16x16xf32> to vector<16xf32>
    %381 = vector.shape_cast %380 : vector<16xf32> to vector<16x1xf32>
    %382 = tpu.reciprocal %381 {approx = true} : vector<16x1xf32> -> vector<16x1xf32>
    %383 = vector.broadcast %382 : vector<16x1xf32> to vector<16x16xf32>
    %384 = arith.mulf %379, %383 : vector<16x16xf32>
    %385 = vector.extract_strided_slice %309 {offsets = [0, 4], sizes = [16, 2], strides = [1, 1]} : vector<16x12xf32> to vector<16x2xf32>
    %cst_127 = arith.constant dense<0.000000e+00> : vector<16x2xf32>
    %386 = tpu.matmul %384, %385, %cst_127 {dimension_numbers = #tpu.dot_dimension_numbers<[1], [0], [0], [1], [0, 0, 1, 1], [], []>} : vector<16x16xf32>, vector<16x2xf32>, vector<16x2xf32> -> vector<16x2xf32>
    %387 = vector.extract_strided_slice %315 {offsets = [0, 4], sizes = [1, 2], strides = [1, 1]} : vector<1x12xf32> to vector<1x2xf32>
    %388 = vector.broadcast %387 : vector<1x2xf32> to vector<16x2xf32>
    %389 = arith.addf %386, %388 : vector<16x2xf32>
    %c0_128 = arith.constant 0 : index
    %c4_129 = arith.constant 4 : index
    %390 = vector.load %arg28[%c0_128, %c4_129] : memref<16x12xf32, #tpu.memory_space<vmem>>, vector<16x2xf32>
    tpu.vector_store %arg28[%c0_128, %c4_129], %389 {strides = array<i32>} : memref<16x12xf32, #tpu.memory_space<vmem>>, vector<16x2xf32>,
    %391 = vector.extract_strided_slice %313 {offsets = [0, 3], sizes = [16, 1], strides = [1, 1]} : vector<16x6xf32> to vector<16x1xf32>
    %392 = vector.extract_strided_slice %314 {offsets = [3, 0], sizes = [1, 16], strides = [1, 1]} : vector<6x16xf32> to vector<1x16xf32>
    %393 = vector.broadcast %391 : vector<16x1xf32> to vector<16x16xf32>
    %394 = vector.broadcast %392 : vector<1x16xf32> to vector<16x16xf32>
    %395 = arith.addf %393, %394 : vector<16x16xf32>
    %cst_130 = arith.constant 2.000000e-01 : f32
    %396 = vector.broadcast %cst_130 : f32 to vector<16x16xf32>
    %397 = arith.mulf %396, %395 : vector<16x16xf32>
    %398 = arith.maximumf %395, %397 : vector<16x16xf32>
    %399 = arith.addf %398, %0 : vector<16x16xf32>
    %cst_131 = arith.constant dense<0xFF800000> : vector<16xf32>
    %400 = vector.multi_reduction <maximumf>, %399, %cst_131 [1] : vector<16x16xf32> to vector<16xf32>
    %401 = vector.shape_cast %400 : vector<16xf32> to vector<16x1xf32>
    %402 = vector.broadcast %401 : vector<16x1xf32> to vector<16x16xf32>
    %403 = arith.subf %399, %402 : vector<16x16xf32>
    %404 = math.exp %403 : vector<16x16xf32>
    %cst_132 = arith.constant dense<0.000000e+00> : vector<16xf32>
    %405 = vector.multi_reduction <add>, %404, %cst_132 [1] : vector<16x16xf32> to vector<16xf32>
    %406 = vector.shape_cast %405 : vector<16xf32> to vector<16x1xf32>
    %407 = tpu.reciprocal %406 {approx = true} : vector<16x1xf32> -> vector<16x1xf32>
    %408 = vector.broadcast %407 : vector<16x1xf32> to vector<16x16xf32>
    %409 = arith.mulf %404, %408 : vector<16x16xf32>
    %410 = vector.extract_strided_slice %309 {offsets = [0, 6], sizes = [16, 2], strides = [1, 1]} : vector<16x12xf32> to vector<16x2xf32>
    %cst_133 = arith.constant dense<0.000000e+00> : vector<16x2xf32>
    %411 = tpu.matmul %409, %410, %cst_133 {dimension_numbers = #tpu.dot_dimension_numbers<[1], [0], [0], [1], [0, 0, 1, 1], [], []>} : vector<16x16xf32>, vector<16x2xf32>, vector<16x2xf32> -> vector<16x2xf32>
    %412 = vector.extract_strided_slice %315 {offsets = [0, 6], sizes = [1, 2], strides = [1, 1]} : vector<1x12xf32> to vector<1x2xf32>
    %413 = vector.broadcast %412 : vector<1x2xf32> to vector<16x2xf32>
    %414 = arith.addf %411, %413 : vector<16x2xf32>
    %c0_134 = arith.constant 0 : index
    %c6 = arith.constant 6 : index
    %415 = vector.load %arg28[%c0_134, %c6] : memref<16x12xf32, #tpu.memory_space<vmem>>, vector<16x2xf32>
    tpu.vector_store %arg28[%c0_134, %c6], %414 {strides = array<i32>} : memref<16x12xf32, #tpu.memory_space<vmem>>, vector<16x2xf32>,
    %416 = vector.extract_strided_slice %313 {offsets = [0, 4], sizes = [16, 1], strides = [1, 1]} : vector<16x6xf32> to vector<16x1xf32>
    %417 = vector.extract_strided_slice %314 {offsets = [4, 0], sizes = [1, 16], strides = [1, 1]} : vector<6x16xf32> to vector<1x16xf32>
    %418 = vector.broadcast %416 : vector<16x1xf32> to vector<16x16xf32>
    %419 = vector.broadcast %417 : vector<1x16xf32> to vector<16x16xf32>
    %420 = arith.addf %418, %419 : vector<16x16xf32>
    %cst_135 = arith.constant 2.000000e-01 : f32
    %421 = vector.broadcast %cst_135 : f32 to vector<16x16xf32>
    %422 = arith.mulf %421, %420 : vector<16x16xf32>
    %423 = arith.maximumf %420, %422 : vector<16x16xf32>
    %424 = arith.addf %423, %0 : vector<16x16xf32>
    %cst_136 = arith.constant dense<0xFF800000> : vector<16xf32>
    %425 = vector.multi_reduction <maximumf>, %424, %cst_136 [1] : vector<16x16xf32> to vector<16xf32>
    %426 = vector.shape_cast %425 : vector<16xf32> to vector<16x1xf32>
    %427 = vector.broadcast %426 : vector<16x1xf32> to vector<16x16xf32>
    %428 = arith.subf %424, %427 : vector<16x16xf32>
    %429 = math.exp %428 : vector<16x16xf32>
    %cst_137 = arith.constant dense<0.000000e+00> : vector<16xf32>
    %430 = vector.multi_reduction <add>, %429, %cst_137 [1] : vector<16x16xf32> to vector<16xf32>
    %431 = vector.shape_cast %430 : vector<16xf32> to vector<16x1xf32>
    %432 = tpu.reciprocal %431 {approx = true} : vector<16x1xf32> -> vector<16x1xf32>
    %433 = vector.broadcast %432 : vector<16x1xf32> to vector<16x16xf32>
    %434 = arith.mulf %429, %433 : vector<16x16xf32>
    %435 = vector.extract_strided_slice %309 {offsets = [0, 8], sizes = [16, 2], strides = [1, 1]} : vector<16x12xf32> to vector<16x2xf32>
    %cst_138 = arith.constant dense<0.000000e+00> : vector<16x2xf32>
    %436 = tpu.matmul %434, %435, %cst_138 {dimension_numbers = #tpu.dot_dimension_numbers<[1], [0], [0], [1], [0, 0, 1, 1], [], []>} : vector<16x16xf32>, vector<16x2xf32>, vector<16x2xf32> -> vector<16x2xf32>
    %437 = vector.extract_strided_slice %315 {offsets = [0, 8], sizes = [1, 2], strides = [1, 1]} : vector<1x12xf32> to vector<1x2xf32>
    %438 = vector.broadcast %437 : vector<1x2xf32> to vector<16x2xf32>
    %439 = arith.addf %436, %438 : vector<16x2xf32>
    %c0_139 = arith.constant 0 : index
    %c8_140 = arith.constant 8 : index
    %440 = vector.load %arg28[%c0_139, %c8_140] : memref<16x12xf32, #tpu.memory_space<vmem>>, vector<16x2xf32>
    tpu.vector_store %arg28[%c0_139, %c8_140], %439 {strides = array<i32>} : memref<16x12xf32, #tpu.memory_space<vmem>>, vector<16x2xf32>,
    %441 = vector.extract_strided_slice %313 {offsets = [0, 5], sizes = [16, 1], strides = [1, 1]} : vector<16x6xf32> to vector<16x1xf32>
    %442 = vector.extract_strided_slice %314 {offsets = [5, 0], sizes = [1, 16], strides = [1, 1]} : vector<6x16xf32> to vector<1x16xf32>
    %443 = vector.broadcast %441 : vector<16x1xf32> to vector<16x16xf32>
    %444 = vector.broadcast %442 : vector<1x16xf32> to vector<16x16xf32>
    %445 = arith.addf %443, %444 : vector<16x16xf32>
    %cst_141 = arith.constant 2.000000e-01 : f32
    %446 = vector.broadcast %cst_141 : f32 to vector<16x16xf32>
    %447 = arith.mulf %446, %445 : vector<16x16xf32>
    %448 = arith.maximumf %445, %447 : vector<16x16xf32>
    %449 = arith.addf %448, %0 : vector<16x16xf32>
    %cst_142 = arith.constant dense<0xFF800000> : vector<16xf32>
    %450 = vector.multi_reduction <maximumf>, %449, %cst_142 [1] : vector<16x16xf32> to vector<16xf32>
    %451 = vector.shape_cast %450 : vector<16xf32> to vector<16x1xf32>
    %452 = vector.broadcast %451 : vector<16x1xf32> to vector<16x16xf32>
    %453 = arith.subf %449, %452 : vector<16x16xf32>
    %454 = math.exp %453 : vector<16x16xf32>
    %cst_143 = arith.constant dense<0.000000e+00> : vector<16xf32>
    %455 = vector.multi_reduction <add>, %454, %cst_143 [1] : vector<16x16xf32> to vector<16xf32>
    %456 = vector.shape_cast %455 : vector<16xf32> to vector<16x1xf32>
    %457 = tpu.reciprocal %456 {approx = true} : vector<16x1xf32> -> vector<16x1xf32>
    %458 = vector.broadcast %457 : vector<16x1xf32> to vector<16x16xf32>
    %459 = arith.mulf %454, %458 : vector<16x16xf32>
    %460 = vector.extract_strided_slice %309 {offsets = [0, 10], sizes = [16, 2], strides = [1, 1]} : vector<16x12xf32> to vector<16x2xf32>
    %cst_144 = arith.constant dense<0.000000e+00> : vector<16x2xf32>
    %461 = tpu.matmul %459, %460, %cst_144 {dimension_numbers = #tpu.dot_dimension_numbers<[1], [0], [0], [1], [0, 0, 1, 1], [], []>} : vector<16x16xf32>, vector<16x2xf32>, vector<16x2xf32> -> vector<16x2xf32>
    %462 = vector.extract_strided_slice %315 {offsets = [0, 10], sizes = [1, 2], strides = [1, 1]} : vector<1x12xf32> to vector<1x2xf32>
    %463 = vector.broadcast %462 : vector<1x2xf32> to vector<16x2xf32>
    %464 = arith.addf %461, %463 : vector<16x2xf32>
    %c0_145 = arith.constant 0 : index
    %c10 = arith.constant 10 : index
    %465 = vector.load %arg28[%c0_145, %c10] : memref<16x12xf32, #tpu.memory_space<vmem>>, vector<16x2xf32>
    tpu.vector_store %arg28[%c0_145, %c10], %464 {strides = array<i32>} : memref<16x12xf32, #tpu.memory_space<vmem>>, vector<16x2xf32>,
    %466 = tpu.concatenate %326, %351, %376, %401, %426, %451 in 1 : vector<16x1xf32>, vector<16x1xf32>, vector<16x1xf32>, vector<16x1xf32>, vector<16x1xf32>, vector<16x1xf32> -> vector<16x6xf32>
    %467 = tpu.concatenate %332, %357, %382, %407, %432, %457 in 1 : vector<16x1xf32>, vector<16x1xf32>, vector<16x1xf32>, vector<16x1xf32>, vector<16x1xf32>, vector<16x1xf32> -> vector<16x6xf32>
    %cst_146 = arith.constant dense<0.000000e+00> : vector<48x6xf32>
    %468 = tpu.matmul %1, %312, %cst_146 {dimension_numbers = #tpu.dot_dimension_numbers<[1], [0], [0], [1], [0, 0, 1, 1], [], []>} : vector<48x16xf32>, vector<16x6xf32>, vector<48x6xf32> -> vector<48x6xf32>
    %cst_147 = arith.constant dense<0.000000e+00> : vector<48x6xf32>
    %469 = tpu.matmul %2, %313, %cst_147 {dimension_numbers = #tpu.dot_dimension_numbers<[1], [0], [0], [1], [0, 0, 1, 1], [], []>} : vector<48x16xf32>, vector<16x6xf32>, vector<48x6xf32> -> vector<48x6xf32>
    %470 = arith.addf %468, %469 : vector<48x6xf32>
    %cst_148 = arith.constant 2.000000e-01 : f32
    %471 = vector.broadcast %cst_148 : f32 to vector<48x6xf32>
    %472 = arith.mulf %471, %470 : vector<48x6xf32>
    %473 = arith.maximumf %470, %472 : vector<48x6xf32>
    %cst_149 = arith.constant dense<0.000000e+00> : vector<48x6xf32>
    %474 = tpu.matmul %2, %466, %cst_149 {dimension_numbers = #tpu.dot_dimension_numbers<[1], [0], [0], [1], [0, 0, 1, 1], [], []>} : vector<48x16xf32>, vector<16x6xf32>, vector<48x6xf32> -> vector<48x6xf32>
    %475 = arith.subf %473, %474 : vector<48x6xf32>
    %476 = math.exp %475 : vector<48x6xf32>
    %cst_150 = arith.constant dense<0.000000e+00> : vector<48x6xf32>
    %477 = tpu.matmul %2, %467, %cst_150 {dimension_numbers = #tpu.dot_dimension_numbers<[1], [0], [0], [1], [0, 0, 1, 1], [], []>} : vector<48x16xf32>, vector<16x6xf32>, vector<48x6xf32> -> vector<48x6xf32>
    %478 = arith.mulf %476, %477 : vector<48x6xf32>
    %c0_151 = arith.constant 0 : index
    %c0_152 = arith.constant 0 : index
    %479 = vector.load %arg25[%c0_151, %c0_152] : memref<48x6xf32, #tpu.memory_space<vmem>>, vector<48x6xf32>
    tpu.vector_store %arg25[%c0_151, %c0_152], %478 {strides = array<i32>} : memref<48x6xf32, #tpu.memory_space<vmem>>, vector<48x6xf32>,
    %c0_153 = arith.constant 0 : index
    %c0_154 = arith.constant 0 : index
    %480 = vector.load %arg28[%c0_153, %c0_154] : memref<16x12xf32, #tpu.memory_space<vmem>>, vector<16x12xf32>
    %cst_155 = arith.constant 0.000000e+00 : f32
    %481 = vector.broadcast %cst_155 : f32 to vector<16x12xf32>
    %482 = arith.maximumf %480, %481 : vector<16x12xf32>
    %483 = arith.addf %3, %482 : vector<16x12xf32>
    %c0_156 = arith.constant 0 : index
    %c0_157 = arith.constant 0 : index
    %484 = vector.load %arg4[%c0_156, %c0_157] : memref<2x16xf32, #tpu.memory_space<vmem>>, vector<2x16xf32>
    %cst_158 = arith.constant dense<0.000000e+00> : vector<2x12xf32>
    %485 = tpu.matmul %484, %483, %cst_158 {dimension_numbers = #tpu.dot_dimension_numbers<[1], [0], [0], [1], [0, 0, 1, 1], [], []>} : vector<2x16xf32>, vector<16x12xf32>, vector<2x12xf32> -> vector<2x12xf32>
    %c0_159 = arith.constant 0 : index
    %c0_160 = arith.constant 0 : index
    %486 = vector.load %arg18[%c0_159, %c0_160] : memref<12x32xf32, #tpu.memory_space<vmem>>, vector<12x32xf32>
    %487 = arith.truncf %485 : vector<2x12xf32> to vector<2x12xbf16>
    %488 = arith.truncf %486 : vector<12x32xf32> to vector<12x32xbf16>
    %cst_161 = arith.constant dense<0.000000e+00> : vector<2x32xf32>
    %489 = tpu.matmul %487, %488, %cst_161 {dimension_numbers = #tpu.dot_dimension_numbers<[1], [0], [0], [1], [0, 0, 1, 1], [], []>} : vector<2x12xbf16>, vector<12x32xbf16>, vector<2x32xf32> -> vector<2x32xf32>
    %c0_162 = arith.constant 0 : index
    %c0_163 = arith.constant 0 : index
    %490 = vector.load %arg19[%c0_162, %c0_163] : memref<1x32xf32, #tpu.memory_space<vmem>>, vector<1x32xf32>
    %491 = vector.broadcast %490 : vector<1x32xf32> to vector<2x32xf32>
    %492 = arith.addf %489, %491 : vector<2x32xf32>
    %cst_164 = arith.constant 0.000000e+00 : f32
    %493 = vector.broadcast %cst_164 : f32 to vector<2x32xf32>
    %494 = arith.maximumf %492, %493 : vector<2x32xf32>
    %c0_165 = arith.constant 0 : index
    %c0_166 = arith.constant 0 : index
    %495 = vector.load %arg20[%c0_165, %c0_166] : memref<32x3xf32, #tpu.memory_space<vmem>>, vector<32x3xf32>
    %496 = arith.truncf %494 : vector<2x32xf32> to vector<2x32xbf16>
    %497 = arith.truncf %495 : vector<32x3xf32> to vector<32x3xbf16>
    %cst_167 = arith.constant dense<0.000000e+00> : vector<2x3xf32>
    %498 = tpu.matmul %496, %497, %cst_167 {dimension_numbers = #tpu.dot_dimension_numbers<[1], [0], [0], [1], [0, 0, 1, 1], [], []>} : vector<2x32xbf16>, vector<32x3xbf16>, vector<2x3xf32> -> vector<2x3xf32>
    %c0_168 = arith.constant 0 : index
    %c0_169 = arith.constant 0 : index
    %499 = vector.load %arg21[%c0_168, %c0_169] : memref<1x3xf32, #tpu.memory_space<vmem>>, vector<1x3xf32>
    %500 = vector.broadcast %499 : vector<1x3xf32> to vector<2x3xf32>
    %501 = arith.addf %498, %500 : vector<2x3xf32>
    %c0_170 = arith.constant 0 : index
    %c0_171 = arith.constant 0 : index
    %502 = vector.load %arg22[%c0_170, %c0_171] : memref<2x3xf32, #tpu.memory_space<vmem>>, vector<2x3xf32>
    tpu.vector_store %arg22[%c0_170, %c0_171], %501 {strides = array<i32>} : memref<2x3xf32, #tpu.memory_space<vmem>>, vector<2x3xf32>,
    return
  }
}

</mosaic_0001>

<llo_original>
// kernel: gat_forward.1
$region0: #{gat_forward.1}
  #allocation0 [shape = 'u32[]', space=smem, size = 0x4, offset = 0x4, fixed_abs, tag = 'smem constant byte address 0x4 - core index']
  #allocation1 [shape = 'u32[144,128]{1,0:T(1,128)}', space=vmem, size = 0x12000, scoped, tag = 'internal scratch']
  #allocation2 [shape = 'f32[16,16]{1,0:T(8,128)}', space=vmem, size = 0x2000, scoped, tag = 'scratch operand']
  #allocation3 [shape = 'f32[16,16]{1,0:T(8,128)}', space=vmem, size = 0x2000, scoped, tag = 'scratch operand']
  #allocation4 [shape = 'f32[16,12]{1,0:T(8,128)}', space=vmem, size = 0x2000, scoped, tag = 'scratch operand']
  %s0 = inlined_call_operand.vmem [shape: f32[16,12], index: 0, kind: input, shape index: {}]
  %s1 = inlined_call_operand.vmem [shape: f32[16,16], index: 1, kind: input, shape index: {}]
  %s2 = inlined_call_operand.vmem [shape: f32[48,16], index: 2, kind: input, shape index: {}]
  %s3 = inlined_call_operand.vmem [shape: f32[48,16], index: 3, kind: input, shape index: {}]
  %s4 = inlined_call_operand.vmem [shape: f32[2,16], index: 4, kind: input, shape index: {}]
  %s5 = inlined_call_operand.vmem [shape: f32[12,16], index: 5, kind: input, shape index: {}]
  %s6 = inlined_call_operand.vmem [shape: f32[16,8], index: 6, kind: input, shape index: {}]
  %s7 = inlined_call_operand.vmem [shape: f32[1,16], index: 7, kind: input, shape index: {}]
  %s8 = inlined_call_operand.vmem [shape: f32[1,16], index: 8, kind: input, shape index: {}]
  %s9 = inlined_call_operand.vmem [shape: f32[1,16], index: 9, kind: input, shape index: {}]
  %s10 = inlined_call_operand.vmem [shape: f32[16,16], index: 10, kind: input, shape index: {}]
  %s11 = inlined_call_operand.vmem [shape: f32[16,8], index: 11, kind: input, shape index: {}]
  %s12 = inlined_call_operand.vmem [shape: f32[1,16], index: 12, kind: input, shape index: {}]
  %s13 = inlined_call_operand.vmem [shape: f32[1,16], index: 13, kind: input, shape index: {}]
  %s14 = inlined_call_operand.vmem [shape: f32[1,16], index: 14, kind: input, shape index: {}]
  %s15 = inlined_call_operand.vmem [shape: f32[16,12], index: 15, kind: input, shape index: {}]
  %s16 = inlined_call_operand.vmem [shape: f32[12,12], index: 16, kind: input, shape index: {}]
  %s17 = inlined_call_operand.vmem [shape: f32[1,12], index: 17, kind: input, shape index: {}]
  %s18 = inlined_call_operand.vmem [shape: f32[12,32], index: 18, kind: input, shape index: {}]
  %s19 = inlined_call_operand.vmem [shape: f32[1,32], index: 19, kind: input, shape index: {}]
  %s20 = inlined_call_operand.vmem [shape: f32[32,3], index: 20, kind: input, shape index: {}]
  %s21 = inlined_call_operand.vmem [shape: f32[1,3], index: 21, kind: input, shape index: {}]
  %s22 = inlined_call_operand.hbm [shape: f32[2,3], index: 22, kind: output, shape index: {0}]
  %s23 = inlined_call_operand.vmem [shape: f32[48,4], index: 23, kind: output, shape index: {1}]
  %s24 = inlined_call_operand.vmem [shape: f32[48,4], index: 24, kind: output, shape index: {2}]
  %s25 = inlined_call_operand.vmem [shape: f32[48,6], index: 25, kind: output, shape index: {3}]
  %26 = xla_tuple %s22, %s23, %s24, %s25
  %s27 = sld [smem:[#allocation0]]
  $region122: #{gat_forward.1} parent=0
    _
  %s29 = ssub.s32 1, %s27
  %s30 = scalar_select 0, %s29, %s27
  $region1: #{gat_forward.1} parent=0
    #allocation5 [shape = 'u8[1024]{0}', space=vmem, size = 0x400, scoped, tag = 'output window, operand 0, single buffered']
    #allocation6 [shape = 's32[1]{0}', space=sflag, size = 0x4, scoped, tag = 'scoped memory for gat_forward.1']
    %31 = vsyncpa [#allocation6], 0
    // Predicated region
    $region2: #{gat_forward.1} parent=1 // pred_check
      _
    $region3: #{gat_forward.1} parent=1 // pred_check_branch
      %33 = sbr.rel (0) target = $region5
    $region4: #{gat_forward.1} parent=1 // pred_region
      _
    $region5: #{gat_forward.1} parent=1 // pred_fallthru
      _
    // Predicated region
    $region6: #{gat_forward.1} parent=1 // pred_check
      _
    $region7: #{gat_forward.1} parent=1 // pred_check_branch
      %35 = sbr.rel (0) target = $region9
    $region8: #{gat_forward.1} parent=1 // pred_region
      _
    $region9: #{gat_forward.1} parent=1 // pred_fallthru
      _
    // Predicated region
    $region10: #{gat_forward.1} parent=1 // pred_check
      _
    $region11: #{gat_forward.1} parent=1 // pred_check_branch
      %37 = sbr.rel (0) target = $region13
    $region12: #{gat_forward.1} parent=1 // pred_region
      _
    $region13: #{gat_forward.1} parent=1 // pred_fallthru
      _
    // Predicated region
    $region14: #{gat_forward.1} parent=1 // pred_check
      _
    $region15: #{gat_forward.1} parent=1 // pred_check_branch
      %39 = sbr.rel (0) target = $region17
    $region16: #{gat_forward.1} parent=1 // pred_region
      _
    $region17: #{gat_forward.1} parent=1 // pred_fallthru
      _
    // Predicated region
    $region18: #{gat_forward.1} parent=1 // pred_check
      _
    $region19: #{gat_forward.1} parent=1 // pred_check_branch
      %41 = sbr.rel (0) target = $region21
    $region20: #{gat_forward.1} parent=1 // pred_region
      _
    $region21: #{gat_forward.1} parent=1 // pred_fallthru
      _
    // Predicated region
    $region22: #{gat_forward.1} parent=1 // pred_check
      _
    $region23: #{gat_forward.1} parent=1 // pred_check_branch
      %43 = sbr.rel (0) target = $region25
    $region24: #{gat_forward.1} parent=1 // pred_region
      _
    $region25: #{gat_forward.1} parent=1 // pred_fallthru
      _
    // Predicated region
    $region26: #{gat_forward.1} parent=1 // pred_check
      _
    $region27: #{gat_forward.1} parent=1 // pred_check_branch
      %45 = sbr.rel (0) target = $region29
    $region28: #{gat_forward.1} parent=1 // pred_region
      _
    $region29: #{gat_forward.1} parent=1 // pred_fallthru
      _
    // Predicated region
    $region30: #{gat_forward.1} parent=1 // pred_check
      _
    $region31: #{gat_forward.1} parent=1 // pred_check_branch
      %47 = sbr.rel (0) target = $region33
    $region32: #{gat_forward.1} parent=1 // pred_region
      _
    $region33: #{gat_forward.1} parent=1 // pred_fallthru
      _
    // Predicated region
    $region34: #{gat_forward.1} parent=1 // pred_check
      _
    $region35: #{gat_forward.1} parent=1 // pred_check_branch
      %49 = sbr.rel (0) target = $region37
    $region36: #{gat_forward.1} parent=1 // pred_region
      _
    $region37: #{gat_forward.1} parent=1 // pred_fallthru
      _
    // Predicated region
    $region38: #{gat_forward.1} parent=1 // pred_check
      _
    $region39: #{gat_forward.1} parent=1 // pred_check_branch
      %51 = sbr.rel (0) target = $region41
    $region40: #{gat_forward.1} parent=1 // pred_region
      _
    $region41: #{gat_forward.1} parent=1 // pred_fallthru
      _
    // Predicated region
    $region42: #{gat_forward.1} parent=1 // pred_check
      _
    $region43: #{gat_forward.1} parent=1 // pred_check_branch
      %53 = sbr.rel (0) target = $region45
    $region44: #{gat_forward.1} parent=1 // pred_region
      _
    $region45: #{gat_forward.1} parent=1 // pred_fallthru
      _
    // Predicated region
    $region46: #{gat_forward.1} parent=1 // pred_check
      _
    $region47: #{gat_forward.1} parent=1 // pred_check_branch
      %55 = sbr.rel (0) target = $region49
    $region48: #{gat_forward.1} parent=1 // pred_region
      _
    $region49: #{gat_forward.1} parent=1 // pred_fallthru
      _
    // Predicated region
    $region50: #{gat_forward.1} parent=1 // pred_check
      _
    $region51: #{gat_forward.1} parent=1 // pred_check_branch
      %57 = sbr.rel (0) target = $region53
    $region52: #{gat_forward.1} parent=1 // pred_region
      _
    $region53: #{gat_forward.1} parent=1 // pred_fallthru
      _
    // Predicated region
    $region54: #{gat_forward.1} parent=1 // pred_check
      _
    $region55: #{gat_forward.1} parent=1 // pred_check_branch
      %59 = sbr.rel (0) target = $region57
    $region56: #{gat_forward.1} parent=1 // pred_region
      _
    $region57: #{gat_forward.1} parent=1 // pred_fallthru
      _
    // Predicated region
    $region58: #{gat_forward.1} parent=1 // pred_check
      _
    $region59: #{gat_forward.1} parent=1 // pred_check_branch
      %61 = sbr.rel (0) target = $region61
    $region60: #{gat_forward.1} parent=1 // pred_region
      _
    $region61: #{gat_forward.1} parent=1 // pred_fallthru
      _
    // Predicated region
    $region62: #{gat_forward.1} parent=1 // pred_check
      _
    $region63: #{gat_forward.1} parent=1 // pred_check_branch
      %63 = sbr.rel (0) target = $region65
    $region64: #{gat_forward.1} parent=1 // pred_region
      _
    $region65: #{gat_forward.1} parent=1 // pred_fallthru
      _
    // Predicated region
    $region66: #{gat_forward.1} parent=1 // pred_check
      _
    $region67: #{gat_forward.1} parent=1 // pred_check_branch
      %65 = sbr.rel (0) target = $region69
    $region68: #{gat_forward.1} parent=1 // pred_region
      _
    $region69: #{gat_forward.1} parent=1 // pred_fallthru
      _
    // Predicated region
    $region70: #{gat_forward.1} parent=1 // pred_check
      _
    $region71: #{gat_forward.1} parent=1 // pred_check_branch
      %67 = sbr.rel (0) target = $region73
    $region72: #{gat_forward.1} parent=1 // pred_region
      _
    $region73: #{gat_forward.1} parent=1 // pred_fallthru
      _
    // Predicated region
    $region74: #{gat_forward.1} parent=1 // pred_check
      _
    $region75: #{gat_forward.1} parent=1 // pred_check_branch
      %69 = sbr.rel (0) target = $region77
    $region76: #{gat_forward.1} parent=1 // pred_region
      _
    $region77: #{gat_forward.1} parent=1 // pred_fallthru
      _
    // Predicated region
    $region78: #{gat_forward.1} parent=1 // pred_check
      _
    $region79: #{gat_forward.1} parent=1 // pred_check_branch
      %71 = sbr.rel (0) target = $region81
    $region80: #{gat_forward.1} parent=1 // pred_region
      _
    $region81: #{gat_forward.1} parent=1 // pred_fallthru
      _
    // Predicated region
    $region82: #{gat_forward.1} parent=1 // pred_check
      _
    $region83: #{gat_forward.1} parent=1 // pred_check_branch
      %73 = sbr.rel (0) target = $region85
    $region84: #{gat_forward.1} parent=1 // pred_region
      _
    $region85: #{gat_forward.1} parent=1 // pred_fallthru
      _
    // Predicated region
    $region86: #{gat_forward.1} parent=1 // pred_check
      _
    $region87: #{gat_forward.1} parent=1 // pred_check_branch
      %75 = sbr.rel (0) target = $region89
    $region88: #{gat_forward.1} parent=1 // pred_region
      _
    $region89: #{gat_forward.1} parent=1 // pred_fallthru
      _
    %v77 = vld [vmem:[%s1] sm:$0xff]
    %v78 = vld [vmem:[%s1 + $0x8] sm:$0xff]
    %v79 = vld [vmem:[%s2] sm:$0xff]
    %v80 = vld [vmem:[%s2 + $0x8] sm:$0xff]
    %v81 = vld [vmem:[%s2 + $0x10] sm:$0xff]
    %v82 = vld [vmem:[%s2 + $0x18] sm:$0xff]
    %v83 = vld [vmem:[%s2 + $0x20] sm:$0xff]
    %v84 = vld [vmem:[%s2 + $0x28] sm:$0xff]
    %v85 = vld [vmem:[%s3] sm:$0xff]
    %v86 = vld [vmem:[%s3 + $0x8] sm:$0xff]
    %v87 = vld [vmem:[%s3 + $0x10] sm:$0xff]
    %v88 = vld [vmem:[%s3 + $0x18] sm:$0xff]
    %v89 = vld [vmem:[%s3 + $0x20] sm:$0xff]
    %v90 = vld [vmem:[%s3 + $0x28] sm:$0xff]
    %v91 = vld [vmem:[%s0] sm:$0xff]
    %v92 = vld [vmem:[%s0 + $0x8] sm:$0xff]
    %v93 = vld [vmem:[%s5] sm:$0xff]
    %v94 = vld [vmem:[%s5 + $0x8] sm:$0xf]
    %v95 = vpack.c.bf16 %v92, %v91
    %v96 = vpack.c.bf16 %v94, %v93
    %vm97 = vcmask 97280
    %v99 = vsel %vm97, %v95, 0
    %vm101 = vcmask 1045504
    %v103 = vsel %vm101, %v96, 0
    %105 = vmatprep.subr.bf16.mxu0 0
    %106 = vmatpush1.bf16.msra.mxu0 %v103
    %107 = vmatprep.subr.bf16.mxu0 0
    %108 = vmatpush1.bf16.msra.mxu0 0
    %109 = vmatprep.subr.bf16.mxu0 0
    %110 = vmatpush1.bf16.msra.mxu0 0
    %111 = vmatprep.subr.bf16.mxu0 0
    %112 = vmatpush1.bf16.msra.mxu0 0
    %113 = vmatprep.subr.bf16.mxu0 0
    %114 = vmatpush1.bf16.msra.mxu0 0
    %115 = vmatprep.subr.bf16.mxu0 0
    %116 = vmatpush1.bf16.msra.mxu0 0
    %117 = vmatprep.subr.bf16.mxu0 0
    %118 = vmatpush1.bf16.msra.mxu0 0
    %119 = vmatprep.subr.bf16.mxu0 0
    %120 = vmatpush1.bf16.msra.mxu0 0
    %121 = vmatprep.subr.bf16.mxu0 0
    %122 = vmatpush1.bf16.msra.mxu0 0
    %123 = vmatprep.subr.bf16.mxu0 0
    %124 = vmatpush1.bf16.msra.mxu0 0
    %125 = vmatprep.subr.bf16.mxu0 0
    %126 = vmatpush1.bf16.msra.mxu0 0
    %127 = vmatprep.subr.bf16.mxu0 0
    %128 = vmatpush1.bf16.msra.mxu0 0
    %129 = vmatprep.subr.bf16.mxu0 0
    %130 = vmatpush1.bf16.msra.mxu0 0
    %131 = vmatprep.subr.bf16.mxu0 0
    %132 = vmatpush1.bf16.msra.mxu0 0
    %133 = vmatprep.subr.bf16.mxu0 0
    %134 = vmatpush1.bf16.msra.mxu0 0
    %135 = vmatprep.subr.bf16.mxu0 0
    %136 = vmatpush1.bf16.msra.mxu0 0
    %137 = vmatprep.mubr.bf16.mxu0 0
    %138 = vmatmul.mubr.bf16.gmra.mrb[0].mxu0 %v99
    %v139 = vpop.f32.mrb[0].mxu0
    %v140 = vadd.f32 0.0, %v139
    %v141 = vpop.f32.mrb[0].mxu0
    %v142 = vpop.f32.mrb[0].mxu0
    %v143 = vadd.f32 0.0, %v142
    %v144 = vpop.f32.mrb[0].mxu0
    %145 = vdwg.mxu0
    %v146 = vld [vmem:[%s6] sm:$0xff]
    %v147 = vld [vmem:[%s6 + $0x8] sm:$0xff]
    %vm148 = vcmask 130048
    %v150 = vsel %vm148, %v140, 0
    %v153 = vsel %vm148, %v143, 0
    %155 = vmatprep.subr.mxu0 0.0
    %156 = vmatpush1.msra.mxu0 %v146
    %157 = vmatprep.subr.mxu0 0.0
    %158 = vmatpush1.msra.mxu0 %v147
    %159 = vmatprep.subr.mxu0 0.0
    %160 = vmatpush1.msra.mxu0 0.0
    %161 = vmatprep.subr.mxu0 0.0
    %162 = vmatpush1.msra.mxu0 0.0
    %163 = vmatprep.subr.mxu0 0.0
    %164 = vmatpush1.msra.mxu0 0.0
    %165 = vmatprep.subr.mxu0 0.0
    %166 = vmatpush1.msra.mxu0 0.0
    %167 = vmatprep.subr.mxu0 0.0
    %168 = vmatpush1.msra.mxu0 0.0
    %169 = vmatprep.subr.mxu0 0.0
    %170 = vmatpush1.msra.mxu0 0.0
    %171 = vmatprep.subr.mxu0 0.0
    %172 = vmatpush1.msra.mxu0 0.0
    %173 = vmatprep.subr.mxu0 0.0
    %174 = vmatpush1.msra.mxu0 0.0
    %175 = vmatprep.subr.mxu0 0.0
    %176 = vmatpush1.msra.mxu0 0.0
    %177 = vmatprep.subr.mxu0 0.0
    %178 = vmatpush1.msra.mxu0 0.0
    %179 = vmatprep.subr.mxu0 0.0
    %180 = vmatpush1.msra.mxu0 0.0
    %181 = vmatprep.subr.mxu0 0.0
    %182 = vmatpush1.msra.mxu0 0.0
    %183 = vmatprep.subr.mxu0 0.0
    %184 = vmatpush1.msra.mxu0 0.0
    %185 = vmatprep.subr.mxu0 0.0
    %186 = vmatpush1.msra.mxu0 0.0
    %187 = vmatprep.subr.mxu0 0.0
    %188 = vmatpush1.msra.mxu0 0.0
    %189 = vmatprep.subr.mxu0 0.0
    %190 = vmatpush1.msra.mxu0 0.0
    %191 = vmatprep.subr.mxu0 0.0
    %192 = vmatpush1.msra.mxu0 0.0
    %193 = vmatprep.subr.mxu0 0.0
    %194 = vmatpush1.msra.mxu0 0.0
    %195 = vmatprep.subr.mxu0 0.0
    %196 = vmatpush1.msra.mxu0 0.0
    %197 = vmatprep.subr.mxu0 0.0
    %198 = vmatpush1.msra.mxu0 0.0
    %199 = vmatprep.subr.mxu0 0.0
    %200 = vmatpush1.msra.mxu0 0.0
    %201 = vmatprep.subr.mxu0 0.0
    %202 = vmatpush1.msra.mxu0 0.0
    %203 = vmatprep.subr.mxu0 0.0
    %204 = vmatpush1.msra.mxu0 0.0
    %205 = vmatprep.subr.mxu0 0.0
    %206 = vmatpush1.msra.mxu0 0.0
    %207 = vmatprep.subr.mxu0 0.0
    %208 = vmatpush1.msra.mxu0 0.0
    %209 = vmatprep.subr.mxu0 0.0
    %210 = vmatpush1.msra.mxu0 0.0
    %211 = vmatprep.subr.mxu0 0.0
    %212 = vmatpush1.msra.mxu0 0.0
    %213 = vmatprep.subr.mxu0 0.0
    %214 = vmatpush1.msra.mxu0 0.0
    %215 = vmatprep.subr.mxu0 0.0
    %216 = vmatpush1.msra.mxu0 0.0
    %217 = vmatprep.subr.mxu0 0.0
    %218 = vmatpush1.msra.mxu0 0.0
    %219 = vmatprep.mubr.f32.mxu0 0.0
    %220 = vmatmul.mubr.f32.gmra.mrb[0].mxu0 %v150
    %v221 = vpop.f32.mrb[0].mxu0
    %v222 = vadd.f32 0.0, %v221
    %v223 = vpop.f32.mrb[0].mxu0
    %224 = vmatprep.mubr.f32.mxu0 0.0
    %225 = vmatmul.mubr.f32.gmra.mrb[0].mxu0 %v153
    %v226 = vpop.f32.mrb[0].mxu0
    %v227 = vadd.f32 0.0, %v226
    %v228 = vpop.f32.mrb[0].mxu0
    %229 = vdwg.mxu0
    %230 = vxpose.xlu0.b32.start [1/16] %v222, 128
    %231 = vxpose.xlu0.b32.cont [2/16] %v227, 128
    %232 = vxpose.xlu0.b32.cont [3/16] 0.0, 128
    %233 = vxpose.xlu0.b32.cont [4/16] 0.0, 128
    %234 = vxpose.xlu0.b32.cont [5/16] 0.0, 128
    %235 = vxpose.xlu0.b32.cont [6/16] 0.0, 128
    %236 = vxpose.xlu0.b32.cont [7/16] 0.0, 128
    %237 = vxpose.xlu0.b32.cont [8/16] 0.0, 128
    %238 = vxpose.xlu0.b32.cont [9/16] 0.0, 128
    %239 = vxpose.xlu0.b32.cont [10/16] 0.0, 128
    %240 = vxpose.xlu0.b32.cont [11/16] 0.0, 128
    %241 = vxpose.xlu0.b32.cont [12/16] 0.0, 128
    %242 = vxpose.xlu0.b32.cont [13/16] 0.0, 128
    %243 = vxpose.xlu0.b32.cont [14/16] 0.0, 128
    %244 = vxpose.xlu0.b32.cont [15/16] 0.0, 128
    %245 = vxpose.xlu0.b32.end [16/16] 0.0, 128
    %v246 = vpop.trf.xlu0
    %v247 = vpop.trf.xlu0
    %v248 = vpop.trf.xlu0
    %v249 = vpop.trf.xlu0
    %v250 = vpop.trf.xlu0
    %v251 = vpop.trf.xlu0
    %v252 = vpop.trf.xlu0
    %v253 = vpop.trf.xlu0
    %v254 = vpop.trf.xlu0
    %v255 = vpop.trf.xlu0
    %v256 = vpop.trf.xlu0
    %v257 = vpop.trf.xlu0
    %v258 = vpop.trf.xlu0
    %v259 = vpop.trf.xlu0
    %v260 = vpop.trf.xlu0
    %v261 = vpop.trf.xlu0
    %v262 = vld [vmem:[%s7] sm:$0x1]
    %264 = vset.pattern.permute.xlu0 4
    %265 = vperm.xlu0 %264, %v222
    %v266 = vpop.permute.xlu0 %265
    %269 = vset.pattern.permute.xlu0 4
    %270 = vperm.xlu0 %269, %v227
    %v271 = vpop.permute.xlu0 %270
    %v273 = vlaneseq
    %v274 = vshrl.u32 %v273, 7
    %v275 = vsub.s32 0, %v274
    %v276 = vrot.slane %v246, %v275
    %v277 = vadd.f32 %v266, %v276
    %v278 = vadd.f32 %v271, %v276
    %v279 = vmul.f32 %v277, 0.2
    %v280 = vmul.f32 %v278, 0.2
    %v281 = vmax.f32 %v277, %v279
    %v282 = vmax.f32 %v278, %v280
    %v283 = vadd.f32 %v281, %v77
    %v284 = vadd.f32 %v282, %v78
    %v285 = vsel %vm148, %v283, -inf
    %286 = vmax.xlane.f32.xlu0 %v285
    %v287 = vpop.xlane.xlu0 %286
    %v288 = vsel %vm148, %v284, -inf
    %289 = vmax.xlane.f32.xlu0 %v288
    %v290 = vpop.xlane.xlu0 %289
    %v291 = vsub.f32 %v283, %v287
    %v292 = vsub.f32 %v284, %v290
    %v293 = vmul.f32 %v291, 1.442695
    %v294 = vpow.pop %v293
    %v295 = vmul.f32 %v292, 1.442695
    %v296 = vpow.pop %v295
    %v297 = vsel %vm148, %v294, 0.0
    %298 = vadd.xlane.f32.xlu0 %v297
    %v299 = vpop.xlane.xlu0 %298
    %v300 = vsel %vm148, %v296, 0.0
    %301 = vadd.xlane.f32.xlu0 %v300
    %v302 = vpop.xlane.xlu0 %301
    %v303 = vrcp.pop %v299
    %v304 = vrcp.pop %v302
    %v305 = vmul.f32 %v294, %v303
    %v306 = vmul.f32 %v296, %v304
    %v308 = vlaneseq
    %v309 = vshrl.u32 %v308, 7
    %v310 = vsub.s32 0, %v309
    %v311 = vrot.slane %v262, %v310
    %v314 = vsel %vm148, %v305, 0
    %v317 = vsel %vm148, %v306, 0
    %319 = vmatprep.subr.mxu0 0.0
    %320 = vmatpush1.msra.mxu0 %v140
    %321 = vmatprep.subr.mxu0 0.0
    %322 = vmatpush1.msra.mxu0 %v143
    %323 = vmatprep.subr.mxu0 0.0
    %324 = vmatpush1.msra.mxu0 0.0
    %325 = vmatprep.subr.mxu0 0.0
    %326 = vmatpush1.msra.mxu0 0.0
    %327 = vmatprep.subr.mxu0 0.0
    %328 = vmatpush1.msra.mxu0 0.0
    %329 = vmatprep.subr.mxu0 0.0
    %330 = vmatpush1.msra.mxu0 0.0
    %331 = vmatprep.subr.mxu0 0.0
    %332 = vmatpush1.msra.mxu0 0.0
    %333 = vmatprep.subr.mxu0 0.0
    %334 = vmatpush1.msra.mxu0 0.0
    %335 = vmatprep.subr.mxu0 0.0
    %336 = vmatpush1.msra.mxu0 0.0
    %337 = vmatprep.subr.mxu0 0.0
    %338 = vmatpush1.msra.mxu0 0.0
    %339 = vmatprep.subr.mxu0 0.0
    %340 = vmatpush1.msra.mxu0 0.0
    %341 = vmatprep.subr.mxu0 0.0
    %342 = vmatpush1.msra.mxu0 0.0
    %343 = vmatprep.subr.mxu0 0.0
    %344 = vmatpush1.msra.mxu0 0.0
    %345 = vmatprep.subr.mxu0 0.0
    %346 = vmatpush1.msra.mxu0 0.0
    %347 = vmatprep.subr.mxu0 0.0
    %348 = vmatpush1.msra.mxu0 0.0
    %349 = vmatprep.subr.mxu0 0.0
    %350 = vmatpush1.msra.mxu0 0.0
    %351 = vmatprep.subr.mxu0 0.0
    %352 = vmatpush1.msra.mxu0 0.0
    %353 = vmatprep.subr.mxu0 0.0
    %354 = vmatpush1.msra.mxu0 0.0
    %355 = vmatprep.subr.mxu0 0.0
    %356 = vmatpush1.msra.mxu0 0.0
    %357 = vmatprep.subr.mxu0 0.0
    %358 = vmatpush1.msra.mxu0 0.0
    %359 = vmatprep.subr.mxu0 0.0
    %360 = vmatpush1.msra.mxu0 0.0
    %361 = vmatprep.subr.mxu0 0.0
    %362 = vmatpush1.msra.mxu0 0.0
    %363 = vmatprep.subr.mxu0 0.0
    %364 = vmatpush1.msra.mxu0 0.0
    %365 = vmatprep.subr.mxu0 0.0
    %366 = vmatpush1.msra.mxu0 0.0
    %367 = vmatprep.subr.mxu0 0.0
    %368 = vmatpush1.msra.mxu0 0.0
    %369 = vmatprep.subr.mxu0 0.0
    %370 = vmatpush1.msra.mxu0 0.0
    %371 = vmatprep.subr.mxu0 0.0
    %372 = vmatpush1.msra.mxu0 0.0
    %373 = vmatprep.subr.mxu0 0.0
    %374 = vmatpush1.msra.mxu0 0.0
    %375 = vmatprep.subr.mxu0 0.0
    %376 = vmatpush1.msra.mxu0 0.0
    %377 = vmatprep.subr.mxu0 0.0
    %378 = vmatpush1.msra.mxu0 0.0
    %379 = vmatprep.subr.mxu0 0.0
    %380 = vmatpush1.msra.mxu0 0.0
    %381 = vmatprep.subr.mxu0 0.0
    %382 = vmatpush1.msra.mxu0 0.0
    %383 = vmatprep.mubr.f32.mxu0 0.0
    %384 = vmatmul.mubr.f32.gmra.mrb[0].mxu0 %v314
    %v385 = vpop.f32.mrb[0].mxu0
    %v386 = vadd.f32 %v311, %v385
    %v387 = vpop.f32.mrb[0].mxu0
    %388 = vmatprep.mubr.f32.mxu0 0.0
    %389 = vmatmul.mubr.f32.gmra.mrb[0].mxu0 %v317
    %v390 = vpop.f32.mrb[0].mxu0
    %v391 = vadd.f32 %v311, %v390
    %v392 = vpop.f32.mrb[0].mxu0
    %393 = vdwg.mxu0
    %vm394 = vcmask 31744
    %395 = vst.msk [vmem:[#allocation2] sm:$0xff] %vm394, %v386
    %396 = vst.msk [vmem:[#allocation2 + $0x8] sm:$0xff] %vm394, %v391
    %397 = vset.pattern.permute.xlu0 5
    %398 = vperm.xlu0 %397, %v222
    %v399 = vpop.permute.xlu0 %398
    %401 = vset.pattern.permute.xlu0 5
    %402 = vperm.xlu0 %401, %v227
    %v403 = vpop.permute.xlu0 %402
    %v405 = vlaneseq
    %v406 = vshrl.u32 %v405, 7
    %v407 = vsub.s32 1, %v406
    %v408 = vrot.slane %v246, %v407
    %v409 = vadd.f32 %v399, %v408
    %v410 = vadd.f32 %v403, %v408
    %v411 = vmul.f32 %v409, 0.2
    %v412 = vmul.f32 %v410, 0.2
    %v413 = vmax.f32 %v409, %v411
    %v414 = vmax.f32 %v410, %v412
    %v415 = vadd.f32 %v413, %v77
    %v416 = vadd.f32 %v414, %v78
    %v417 = vsel %vm148, %v415, -inf
    %418 = vmax.xlane.f32.xlu0 %v417
    %v419 = vpop.xlane.xlu0 %418
    %v420 = vsel %vm148, %v416, -inf
    %421 = vmax.xlane.f32.xlu0 %v420
    %v422 = vpop.xlane.xlu0 %421
    %v423 = vsub.f32 %v415, %v419
    %v424 = vsub.f32 %v416, %v422
    %v425 = vmul.f32 %v423, 1.442695
    %v426 = vpow.pop %v425
    %v427 = vmul.f32 %v424, 1.442695
    %v428 = vpow.pop %v427
    %v429 = vsel %vm148, %v426, 0.0
    %430 = vadd.xlane.f32.xlu0 %v429
    %v431 = vpop.xlane.xlu0 %430
    %v432 = vsel %vm148, %v428, 0.0
    %433 = vadd.xlane.f32.xlu0 %v432
    %v434 = vpop.xlane.xlu0 %433
    %v435 = vrcp.pop %v431
    %v436 = vrcp.pop %v434
    %v437 = vmul.f32 %v426, %v435
    %v438 = vmul.f32 %v428, %v436
    %439 = vrot.lane.b32.xlu0 %v140, 124
    %v440 = vpop.permute.xlu0 %439
    %441 = vrot.lane.b32.xlu0 %v143, 124
    %v442 = vpop.permute.xlu0 %441
    %445 = vrot.lane.b32.xlu0 %v311, 124
    %v446 = vpop.permute.xlu0 %445
    %v449 = vsel %vm148, %v437, 0
    %v452 = vsel %vm148, %v438, 0
    %454 = vmatprep.subr.mxu0 0.0
    %455 = vmatpush1.msra.mxu0 %v440
    %456 = vmatprep.subr.mxu0 0.0
    %457 = vmatpush1.msra.mxu0 %v442
    %458 = vmatprep.subr.mxu0 0.0
    %459 = vmatpush1.msra.mxu0 0.0
    %460 = vmatprep.subr.mxu0 0.0
    %461 = vmatpush1.msra.mxu0 0.0
    %462 = vmatprep.subr.mxu0 0.0
    %463 = vmatpush1.msra.mxu0 0.0
    %464 = vmatprep.subr.mxu0 0.0
    %465 = vmatpush1.msra.mxu0 0.0
    %466 = vmatprep.subr.mxu0 0.0
    %467 = vmatpush1.msra.mxu0 0.0
    %468 = vmatprep.subr.mxu0 0.0
    %469 = vmatpush1.msra.mxu0 0.0
    %470 = vmatprep.subr.mxu0 0.0
    %471 = vmatpush1.msra.mxu0 0.0
    %472 = vmatprep.subr.mxu0 0.0
    %473 = vmatpush1.msra.mxu0 0.0
    %474 = vmatprep.subr.mxu0 0.0
    %475 = vmatpush1.msra.mxu0 0.0
    %476 = vmatprep.subr.mxu0 0.0
    %477 = vmatpush1.msra.mxu0 0.0
    %478 = vmatprep.subr.mxu0 0.0
    %479 = vmatpush1.msra.mxu0 0.0
    %480 = vmatprep.subr.mxu0 0.0
    %481 = vmatpush1.msra.mxu0 0.0
    %482 = vmatprep.subr.mxu0 0.0
    %483 = vmatpush1.msra.mxu0 0.0
    %484 = vmatprep.subr.mxu0 0.0
    %485 = vmatpush1.msra.mxu0 0.0
    %486 = vmatprep.subr.mxu0 0.0
    %487 = vmatpush1.msra.mxu0 0.0
    %488 = vmatprep.subr.mxu0 0.0
    %489 = vmatpush1.msra.mxu0 0.0
    %490 = vmatprep.subr.mxu0 0.0
    %491 = vmatpush1.msra.mxu0 0.0
    %492 = vmatprep.subr.mxu0 0.0
    %493 = vmatpush1.msra.mxu0 0.0
    %494 = vmatprep.subr.mxu0 0.0
    %495 = vmatpush1.msra.mxu0 0.0
    %496 = vmatprep.subr.mxu0 0.0
    %497 = vmatpush1.msra.mxu0 0.0
    %498 = vmatprep.subr.mxu0 0.0
    %499 = vmatpush1.msra.mxu0 0.0
    %500 = vmatprep.subr.mxu0 0.0
    %501 = vmatpush1.msra.mxu0 0.0
    %502 = vmatprep.subr.mxu0 0.0
    %503 = vmatpush1.msra.mxu0 0.0
    %504 = vmatprep.subr.mxu0 0.0
    %505 = vmatpush1.msra.mxu0 0.0
    %506 = vmatprep.subr.mxu0 0.0
    %507 = vmatpush1.msra.mxu0 0.0
    %508 = vmatprep.subr.mxu0 0.0
    %509 = vmatpush1.msra.mxu0 0.0
    %510 = vmatprep.subr.mxu0 0.0
    %511 = vmatpush1.msra.mxu0 0.0
    %512 = vmatprep.subr.mxu0 0.0
    %513 = vmatpush1.msra.mxu0 0.0
    %514 = vmatprep.subr.mxu0 0.0
    %515 = vmatpush1.msra.mxu0 0.0
    %516 = vmatprep.subr.mxu0 0.0
    %517 = vmatpush1.msra.mxu0 0.0
    %518 = vmatprep.mubr.f32.mxu0 0.0
    %519 = vmatmul.mubr.f32.gmra.mrb[0].mxu0 %v449
    %v520 = vpop.f32.mrb[0].mxu0
    %v521 = vadd.f32 %v446, %v520
    %v522 = vpop.f32.mrb[0].mxu0
    %523 = vmatprep.mubr.f32.mxu0 0.0
    %524 = vmatmul.mubr.f32.gmra.mrb[0].mxu0 %v452
    %v525 = vpop.f32.mrb[0].mxu0
    %v526 = vadd.f32 %v446, %v525
    %v527 = vpop.f32.mrb[0].mxu0
    %528 = vdwg.mxu0
    %531 = vrot.lane.b32.xlu0 %v521, 4
    %v532 = vpop.permute.xlu0 %531
    %533 = vrot.lane.b32.xlu0 %v526, 4
    %v534 = vpop.permute.xlu0 %533
    %vm537 = vcmask 64544
    %538 = vst.msk [vmem:[#allocation2] sm:$0xff] %vm537, %v532
    %539 = vst.msk [vmem:[#allocation2 + $0x8] sm:$0xff] %vm537, %v534
    %540 = vset.pattern.permute.xlu0 6
    %541 = vperm.xlu0 %540, %v222
    %v542 = vpop.permute.xlu0 %541
    %544 = vset.pattern.permute.xlu0 6
    %545 = vperm.xlu0 %544, %v227
    %v546 = vpop.permute.xlu0 %545
    %v548 = vlaneseq
    %v549 = vshrl.u32 %v548, 7
    %v550 = vsub.s32 2, %v549
    %v551 = vrot.slane %v246, %v550
    %v552 = vadd.f32 %v542, %v551
    %v553 = vadd.f32 %v546, %v551
    %v554 = vmul.f32 %v552, 0.2
    %v555 = vmul.f32 %v553, 0.2
    %v556 = vmax.f32 %v552, %v554
    %v557 = vmax.f32 %v553, %v555
    %v558 = vadd.f32 %v556, %v77
    %v559 = vadd.f32 %v557, %v78
    %v560 = vsel %vm148, %v558, -inf
    %561 = vmax.xlane.f32.xlu0 %v560
    %v562 = vpop.xlane.xlu0 %561
    %v563 = vsel %vm148, %v559, -inf
    %564 = vmax.xlane.f32.xlu0 %v563
    %v565 = vpop.xlane.xlu0 %564
    %v566 = vsub.f32 %v558, %v562
    %v567 = vsub.f32 %v559, %v565
    %v568 = vmul.f32 %v566, 1.442695
    %v569 = vpow.pop %v568
    %v570 = vmul.f32 %v567, 1.442695
    %v571 = vpow.pop %v570
    %v572 = vsel %vm148, %v569, 0.0
    %573 = vadd.xlane.f32.xlu0 %v572
    %v574 = vpop.xlane.xlu0 %573
    %v575 = vsel %vm148, %v571, 0.0
    %576 = vadd.xlane.f32.xlu0 %v575
    %v577 = vpop.xlane.xlu0 %576
    %v578 = vrcp.pop %v574
    %v579 = vrcp.pop %v577
    %v580 = vmul.f32 %v569, %v578
    %v581 = vmul.f32 %v571, %v579
    %582 = vrot.lane.b32.xlu0 %v140, 120
    %v583 = vpop.permute.xlu0 %582
    %584 = vrot.lane.b32.xlu0 %v143, 120
    %v585 = vpop.permute.xlu0 %584
    %588 = vrot.lane.b32.xlu0 %v311, 120
    %v589 = vpop.permute.xlu0 %588
    %v592 = vsel %vm148, %v580, 0
    %v595 = vsel %vm148, %v581, 0
    %597 = vmatprep.subr.mxu0 0.0
    %598 = vmatpush1.msra.mxu0 %v583
    %599 = vmatprep.subr.mxu0 0.0
    %600 = vmatpush1.msra.mxu0 %v585
    %601 = vmatprep.subr.mxu0 0.0
    %602 = vmatpush1.msra.mxu0 0.0
    %603 = vmatprep.subr.mxu0 0.0
    %604 = vmatpush1.msra.mxu0 0.0
    %605 = vmatprep.subr.mxu0 0.0
    %606 = vmatpush1.msra.mxu0 0.0
    %607 = vmatprep.subr.mxu0 0.0
    %608 = vmatpush1.msra.mxu0 0.0
    %609 = vmatprep.subr.mxu0 0.0
    %610 = vmatpush1.msra.mxu0 0.0
    %611 = vmatprep.subr.mxu0 0.0
    %612 = vmatpush1.msra.mxu0 0.0
    %613 = vmatprep.subr.mxu0 0.0
    %614 = vmatpush1.msra.mxu0 0.0
    %615 = vmatprep.subr.mxu0 0.0
    %616 = vmatpush1.msra.mxu0 0.0
    %617 = vmatprep.subr.mxu0 0.0
    %618 = vmatpush1.msra.mxu0 0.0
    %619 = vmatprep.subr.mxu0 0.0
    %620 = vmatpush1.msra.mxu0 0.0
    %621 = vmatprep.subr.mxu0 0.0
    %622 = vmatpush1.msra.mxu0 0.0
    %623 = vmatprep.subr.mxu0 0.0
    %624 = vmatpush1.msra.mxu0 0.0
    %625 = vmatprep.subr.mxu0 0.0
    %626 = vmatpush1.msra.mxu0 0.0
    %627 = vmatprep.subr.mxu0 0.0
    %628 = vmatpush1.msra.mxu0 0.0
    %629 = vmatprep.subr.mxu0 0.0
    %630 = vmatpush1.msra.mxu0 0.0
    %631 = vmatprep.subr.mxu0 0.0
    %632 = vmatpush1.msra.mxu0 0.0
    %633 = vmatprep.subr.mxu0 0.0
    %634 = vmatpush1.msra.mxu0 0.0
    %635 = vmatprep.subr.mxu0 0.0
    %636 = vmatpush1.msra.mxu0 0.0
    %637 = vmatprep.subr.mxu0 0.0
    %638 = vmatpush1.msra.mxu0 0.0
    %639 = vmatprep.subr.mxu0 0.0
    %640 = vmatpush1.msra.mxu0 0.0
    %641 = vmatprep.subr.mxu0 0.0
    %642 = vmatpush1.msra.mxu0 0.0
    %643 = vmatprep.subr.mxu0 0.0
    %644 = vmatpush1.msra.mxu0 0.0
    %645 = vmatprep.subr.mxu0 0.0
    %646 = vmatpush1.msra.mxu0 0.0
    %647 = vmatprep.subr.mxu0 0.0
    %648 = vmatpush1.msra.mxu0 0.0
    %649 = vmatprep.subr.mxu0 0.0
    %650 = vmatpush1.msra.mxu0 0.0
    %651 = vmatprep.subr.mxu0 0.0
    %652 = vmatpush1.msra.mxu0 0.0
    %653 = vmatprep.subr.mxu0 0.0
    %654 = vmatpush1.msra.mxu0 0.0
    %655 = vmatprep.subr.mxu0 0.0
    %656 = vmatpush1.msra.mxu0 0.0
    %657 = vmatprep.subr.mxu0 0.0
    %658 = vmatpush1.msra.mxu0 0.0
    %659 = vmatprep.subr.mxu0 0.0
    %660 = vmatpush1.msra.mxu0 0.0
    %661 = vmatprep.mubr.f32.mxu0 0.0
    %662 = vmatmul.mubr.f32.gmra.mrb[0].mxu0 %v592
    %v663 = vpop.f32.mrb[0].mxu0
    %v664 = vadd.f32 %v589, %v663
    %v665 = vpop.f32.mrb[0].mxu0
    %666 = vmatprep.mubr.f32.mxu0 0.0
    %667 = vmatmul.mubr.f32.gmra.mrb[0].mxu0 %v595
    %v668 = vpop.f32.mrb[0].mxu0
    %v669 = vadd.f32 %v589, %v668
    %v670 = vpop.f32.mrb[0].mxu0
    %671 = vdwg.mxu0
    %674 = vrot.lane.b32.xlu0 %v664, 8
    %v675 = vpop.permute.xlu0 %674
    %676 = vrot.lane.b32.xlu0 %v669, 8
    %v677 = vpop.permute.xlu0 %676
    %vm680 = vcmask 97344
    %681 = vst.msk [vmem:[#allocation2] sm:$0xff] %vm680, %v675
    %682 = vst.msk [vmem:[#allocation2 + $0x8] sm:$0xff] %vm680, %v677
    %683 = vset.pattern.permute.xlu0 7
    %684 = vperm.xlu0 %683, %v222
    %v685 = vpop.permute.xlu0 %684
    %687 = vset.pattern.permute.xlu0 7
    %688 = vperm.xlu0 %687, %v227
    %v689 = vpop.permute.xlu0 %688
    %v691 = vlaneseq
    %v692 = vshrl.u32 %v691, 7
    %v693 = vsub.s32 3, %v692
    %v694 = vrot.slane %v246, %v693
    %v695 = vadd.f32 %v685, %v694
    %v696 = vadd.f32 %v689, %v694
    %v697 = vmul.f32 %v695, 0.2
    %v698 = vmul.f32 %v696, 0.2
    %v699 = vmax.f32 %v695, %v697
    %v700 = vmax.f32 %v696, %v698
    %v701 = vadd.f32 %v699, %v77
    %v702 = vadd.f32 %v700, %v78
    %v703 = vsel %vm148, %v701, -inf
    %704 = vmax.xlane.f32.xlu0 %v703
    %v705 = vpop.xlane.xlu0 %704
    %v706 = vsel %vm148, %v702, -inf
    %707 = vmax.xlane.f32.xlu0 %v706
    %v708 = vpop.xlane.xlu0 %707
    %v709 = vsub.f32 %v701, %v705
    %v710 = vsub.f32 %v702, %v708
    %v711 = vmul.f32 %v709, 1.442695
    %v712 = vpow.pop %v711
    %v713 = vmul.f32 %v710, 1.442695
    %v714 = vpow.pop %v713
    %v715 = vsel %vm148, %v712, 0.0
    %716 = vadd.xlane.f32.xlu0 %v715
    %v717 = vpop.xlane.xlu0 %716
    %v718 = vsel %vm148, %v714, 0.0
    %719 = vadd.xlane.f32.xlu0 %v718
    %v720 = vpop.xlane.xlu0 %719
    %v721 = vrcp.pop %v717
    %v722 = vrcp.pop %v720
    %v723 = vmul.f32 %v712, %v721
    %v724 = vmul.f32 %v714, %v722
    %725 = vrot.lane.b32.xlu0 %v140, 116
    %v726 = vpop.permute.xlu0 %725
    %727 = vrot.lane.b32.xlu0 %v143, 116
    %v728 = vpop.permute.xlu0 %727
    %731 = vrot.lane.b32.xlu0 %v311, 116
    %v732 = vpop.permute.xlu0 %731
    %v735 = vsel %vm148, %v723, 0
    %v738 = vsel %vm148, %v724, 0
    %740 = vmatprep.subr.mxu0 0.0
    %741 = vmatpush1.msra.mxu0 %v726
    %742 = vmatprep.subr.mxu0 0.0
    %743 = vmatpush1.msra.mxu0 %v728
    %744 = vmatprep.subr.mxu0 0.0
    %745 = vmatpush1.msra.mxu0 0.0
    %746 = vmatprep.subr.mxu0 0.0
    %747 = vmatpush1.msra.mxu0 0.0
    %748 = vmatprep.subr.mxu0 0.0
    %749 = vmatpush1.msra.mxu0 0.0
    %750 = vmatprep.subr.mxu0 0.0
    %751 = vmatpush1.msra.mxu0 0.0
    %752 = vmatprep.subr.mxu0 0.0
    %753 = vmatpush1.msra.mxu0 0.0
    %754 = vmatprep.subr.mxu0 0.0
    %755 = vmatpush1.msra.mxu0 0.0
    %756 = vmatprep.subr.mxu0 0.0
    %757 = vmatpush1.msra.mxu0 0.0
    %758 = vmatprep.subr.mxu0 0.0
    %759 = vmatpush1.msra.mxu0 0.0
    %760 = vmatprep.subr.mxu0 0.0
    %761 = vmatpush1.msra.mxu0 0.0
    %762 = vmatprep.subr.mxu0 0.0
    %763 = vmatpush1.msra.mxu0 0.0
    %764 = vmatprep.subr.mxu0 0.0
    %765 = vmatpush1.msra.mxu0 0.0
    %766 = vmatprep.subr.mxu0 0.0
    %767 = vmatpush1.msra.mxu0 0.0
    %768 = vmatprep.subr.mxu0 0.0
    %769 = vmatpush1.msra.mxu0 0.0
    %770 = vmatprep.subr.mxu0 0.0
    %771 = vmatpush1.msra.mxu0 0.0
    %772 = vmatprep.subr.mxu0 0.0
    %773 = vmatpush1.msra.mxu0 0.0
    %774 = vmatprep.subr.mxu0 0.0
    %775 = vmatpush1.msra.mxu0 0.0
    %776 = vmatprep.subr.mxu0 0.0
    %777 = vmatpush1.msra.mxu0 0.0
    %778 = vmatprep.subr.mxu0 0.0
    %779 = vmatpush1.msra.mxu0 0.0
    %780 = vmatprep.subr.mxu0 0.0
    %781 = vmatpush1.msra.mxu0 0.0
    %782 = vmatprep.subr.mxu0 0.0
    %783 = vmatpush1.msra.mxu0 0.0
    %784 = vmatprep.subr.mxu0 0.0
    %785 = vmatpush1.msra.mxu0 0.0
    %786 = vmatprep.subr.mxu0 0.0
    %787 = vmatpush1.msra.mxu0 0.0
    %788 = vmatprep.subr.mxu0 0.0
    %789 = vmatpush1.msra.mxu0 0.0
    %790 = vmatprep.subr.mxu0 0.0
    %791 = vmatpush1.msra.mxu0 0.0
    %792 = vmatprep.subr.mxu0 0.0
    %793 = vmatpush1.msra.mxu0 0.0
    %794 = vmatprep.subr.mxu0 0.0
    %795 = vmatpush1.msra.mxu0 0.0
    %796 = vmatprep.subr.mxu0 0.0
    %797 = vmatpush1.msra.mxu0 0.0
    %798 = vmatprep.subr.mxu0 0.0
    %799 = vmatpush1.msra.mxu0 0.0
    %800 = vmatprep.subr.mxu0 0.0
    %801 = vmatpush1.msra.mxu0 0.0
    %802 = vmatprep.subr.mxu0 0.0
    %803 = vmatpush1.msra.mxu0 0.0
    %804 = vmatprep.mubr.f32.mxu0 0.0
    %805 = vmatmul.mubr.f32.gmra.mrb[0].mxu0 %v735
    %v806 = vpop.f32.mrb[0].mxu0
    %v807 = vadd.f32 %v732, %v806
    %v808 = vpop.f32.mrb[0].mxu0
    %809 = vmatprep.mubr.f32.mxu0 0.0
    %810 = vmatmul.mubr.f32.gmra.mrb[0].mxu0 %v738
    %v811 = vpop.f32.mrb[0].mxu0
    %v812 = vadd.f32 %v732, %v811
    %v813 = vpop.f32.mrb[0].mxu0
    %814 = vdwg.mxu0
    %817 = vrot.lane.b32.xlu0 %v807, 12
    %v818 = vpop.permute.xlu0 %817
    %819 = vrot.lane.b32.xlu0 %v812, 12
    %v820 = vpop.permute.xlu0 %819
    %vm823 = vcmask 130144
    %824 = vst.msk [vmem:[#allocation2] sm:$0xff] %vm823, %v818
    %825 = vst.msk [vmem:[#allocation2 + $0x8] sm:$0xff] %vm823, %v820
    %vm826 = vcmask 7168
    %v827 = vsel %vm826, %v287, %v419
    %v828 = vsel %vm826, %v290, %v422
    %vm829 = vcmask 15360
    %v830 = vsel %vm829, %v827, %v562
    %v831 = vsel %vm829, %v828, %v565
    %vm832 = vcmask 23552
    %v833 = vsel %vm832, %v830, %v705
    %v834 = vsel %vm832, %v831, %v708
    %v835 = vsel %vm826, %v303, %v435
    %v836 = vsel %vm826, %v304, %v436
    %v837 = vsel %vm829, %v835, %v578
    %v838 = vsel %vm829, %v836, %v579
    %v839 = vsel %vm832, %v837, %v721
    %v840 = vsel %vm832, %v838, %v722
    %841 = vrot.lane.b32.xlu0 %v222, 124
    %v842 = vpop.permute.xlu0 %841
    %843 = vrot.lane.b32.xlu0 %v227, 124
    %v844 = vpop.permute.xlu0 %843
    %v848 = vsel %vm148, %v85, 0
    %v851 = vsel %vm148, %v86, 0
    %v854 = vsel %vm148, %v87, 0
    %v857 = vsel %vm148, %v88, 0
    %v860 = vsel %vm148, %v89, 0
    %v863 = vsel %vm148, %v90, 0
    %865 = vmatprep.subr.mxu0 0.0
    %866 = vmatpush1.msra.mxu0 %v842
    %867 = vmatprep.subr.mxu0 0.0
    %868 = vmatpush1.msra.mxu0 %v844
    %869 = vmatprep.subr.mxu0 0.0
    %870 = vmatpush1.msra.mxu0 0.0
    %871 = vmatprep.subr.mxu0 0.0
    %872 = vmatpush1.msra.mxu0 0.0
    %873 = vmatprep.subr.mxu0 0.0
    %874 = vmatpush1.msra.mxu0 0.0
    %875 = vmatprep.subr.mxu0 0.0
    %876 = vmatpush1.msra.mxu0 0.0
    %877 = vmatprep.subr.mxu0 0.0
    %878 = vmatpush1.msra.mxu0 0.0
    %879 = vmatprep.subr.mxu0 0.0
    %880 = vmatpush1.msra.mxu0 0.0
    %881 = vmatprep.subr.mxu0 0.0
    %882 = vmatpush1.msra.mxu0 0.0
    %883 = vmatprep.subr.mxu0 0.0
    %884 = vmatpush1.msra.mxu0 0.0
    %885 = vmatprep.subr.mxu0 0.0
    %886 = vmatpush1.msra.mxu0 0.0
    %887 = vmatprep.subr.mxu0 0.0
    %888 = vmatpush1.msra.mxu0 0.0
    %889 = vmatprep.subr.mxu0 0.0
    %890 = vmatpush1.msra.mxu0 0.0
    %891 = vmatprep.subr.mxu0 0.0
    %892 = vmatpush1.msra.mxu0 0.0
    %893 = vmatprep.subr.mxu0 0.0
    %894 = vmatpush1.msra.mxu0 0.0
    %895 = vmatprep.subr.mxu0 0.0
    %896 = vmatpush1.msra.mxu0 0.0
    %897 = vmatprep.subr.mxu0 0.0
    %898 = vmatpush1.msra.mxu0 0.0
    %899 = vmatprep.subr.mxu0 0.0
    %900 = vmatpush1.msra.mxu0 0.0
    %901 = vmatprep.subr.mxu0 0.0
    %902 = vmatpush1.msra.mxu0 0.0
    %903 = vmatprep.subr.mxu0 0.0
    %904 = vmatpush1.msra.mxu0 0.0
    %905 = vmatprep.subr.mxu0 0.0
    %906 = vmatpush1.msra.mxu0 0.0
    %907 = vmatprep.subr.mxu0 0.0
    %908 = vmatpush1.msra.mxu0 0.0
    %909 = vmatprep.subr.mxu0 0.0
    %910 = vmatpush1.msra.mxu0 0.0
    %911 = vmatprep.subr.mxu0 0.0
    %912 = vmatpush1.msra.mxu0 0.0
    %913 = vmatprep.subr.mxu0 0.0
    %914 = vmatpush1.msra.mxu0 0.0
    %915 = vmatprep.subr.mxu0 0.0
    %916 = vmatpush1.msra.mxu0 0.0
    %917 = vmatprep.subr.mxu0 0.0
    %918 = vmatpush1.msra.mxu0 0.0
    %919 = vmatprep.subr.mxu0 0.0
    %920 = vmatpush1.msra.mxu0 0.0
    %921 = vmatprep.subr.mxu0 0.0
    %922 = vmatpush1.msra.mxu0 0.0
    %923 = vmatprep.subr.mxu0 0.0
    %924 = vmatpush1.msra.mxu0 0.0
    %925 = vmatprep.subr.mxu0 0.0
    %926 = vmatpush1.msra.mxu0 0.0
    %927 = vmatprep.subr.mxu0 0.0
    %928 = vmatpush1.msra.mxu0 0.0
    %929 = vmatprep.mubr.f32.mxu0 0.0
    %930 = vmatmul.mubr.f32.gmra.mrb[0].mxu0 %v848
    %v931 = vpop.f32.mrb[0].mxu0
    %v932 = vadd.f32 0.0, %v931
    %v933 = vpop.f32.mrb[0].mxu0
    %934 = vmatprep.mubr.f32.mxu0 0.0
    %935 = vmatmul.mubr.f32.gmra.mrb[0].mxu0 %v851
    %v936 = vpop.f32.mrb[0].mxu0
    %v937 = vadd.f32 0.0, %v936
    %v938 = vpop.f32.mrb[0].mxu0
    %939 = vmatprep.mubr.f32.mxu0 0.0
    %940 = vmatmul.mubr.f32.gmra.mrb[0].mxu0 %v854
    %v941 = vpop.f32.mrb[0].mxu0
    %v942 = vadd.f32 0.0, %v941
    %v943 = vpop.f32.mrb[0].mxu0
    %944 = vmatprep.mubr.f32.mxu0 0.0
    %945 = vmatmul.mubr.f32.gmra.mrb[0].mxu0 %v857
    %v946 = vpop.f32.mrb[0].mxu0
    %v947 = vadd.f32 0.0, %v946
    %v948 = vpop.f32.mrb[0].mxu0
    %949 = vmatprep.mubr.f32.mxu0 0.0
    %950 = vmatmul.mubr.f32.gmra.mrb[0].mxu0 %v860
    %v951 = vpop.f32.mrb[0].mxu0
    %v952 = vadd.f32 0.0, %v951
    %v953 = vpop.f32.mrb[0].mxu0
    %954 = vmatprep.mubr.f32.mxu0 0.0
    %955 = vmatmul.mubr.f32.gmra.mrb[0].mxu0 %v863
    %v956 = vpop.f32.mrb[0].mxu0
    %v957 = vadd.f32 0.0, %v956
    %v958 = vpop.f32.mrb[0].mxu0
    %959 = vdwg.mxu0
    %v961 = vsel %vm148, %v79, 0
    %v964 = vsel %vm148, %v80, 0
    %v967 = vsel %vm148, %v81, 0
    %v970 = vsel %vm148, %v82, 0
    %v973 = vsel %vm148, %v83, 0
    %v976 = vsel %vm148, %v84, 0
    %978 = vmatprep.subr.mxu0 0.0
    %979 = vmatpush1.msra.mxu0 %v222
    %980 = vmatprep.subr.mxu0 0.0
    %981 = vmatpush1.msra.mxu0 %v227
    %982 = vmatprep.subr.mxu0 0.0
    %983 = vmatpush1.msra.mxu0 0.0
    %984 = vmatprep.subr.mxu0 0.0
    %985 = vmatpush1.msra.mxu0 0.0
    %986 = vmatprep.subr.mxu0 0.0
    %987 = vmatpush1.msra.mxu0 0.0
    %988 = vmatprep.subr.mxu0 0.0
    %989 = vmatpush1.msra.mxu0 0.0
    %990 = vmatprep.subr.mxu0 0.0
    %991 = vmatpush1.msra.mxu0 0.0
    %992 = vmatprep.subr.mxu0 0.0
    %993 = vmatpush1.msra.mxu0 0.0
    %994 = vmatprep.subr.mxu0 0.0
    %995 = vmatpush1.msra.mxu0 0.0
    %996 = vmatprep.subr.mxu0 0.0
    %997 = vmatpush1.msra.mxu0 0.0
    %998 = vmatprep.subr.mxu0 0.0
    %999 = vmatpush1.msra.mxu0 0.0
    %1000 = vmatprep.subr.mxu0 0.0
    %1001 = vmatpush1.msra.mxu0 0.0
    %1002 = vmatprep.subr.mxu0 0.0
    %1003 = vmatpush1.msra.mxu0 0.0
    %1004 = vmatprep.subr.mxu0 0.0
    %1005 = vmatpush1.msra.mxu0 0.0
    %1006 = vmatprep.subr.mxu0 0.0
    %1007 = vmatpush1.msra.mxu0 0.0
    %1008 = vmatprep.subr.mxu0 0.0
    %1009 = vmatpush1.msra.mxu0 0.0
    %1010 = vmatprep.subr.mxu0 0.0
    %1011 = vmatpush1.msra.mxu0 0.0
    %1012 = vmatprep.subr.mxu0 0.0
    %1013 = vmatpush1.msra.mxu0 0.0
    %1014 = vmatprep.subr.mxu0 0.0
    %1015 = vmatpush1.msra.mxu0 0.0
    %1016 = vmatprep.subr.mxu0 0.0
    %1017 = vmatpush1.msra.mxu0 0.0
    %1018 = vmatprep.subr.mxu0 0.0
    %1019 = vmatpush1.msra.mxu0 0.0
    %1020 = vmatprep.subr.mxu0 0.0
    %1021 = vmatpush1.msra.mxu0 0.0
    %1022 = vmatprep.subr.mxu0 0.0
    %1023 = vmatpush1.msra.mxu0 0.0
    %1024 = vmatprep.subr.mxu0 0.0
    %1025 = vmatpush1.msra.mxu0 0.0
    %1026 = vmatprep.subr.mxu0 0.0
    %1027 = vmatpush1.msra.mxu0 0.0
    %1028 = vmatprep.subr.mxu0 0.0
    %1029 = vmatpush1.msra.mxu0 0.0
    %1030 = vmatprep.subr.mxu0 0.0
    %1031 = vmatpush1.msra.mxu0 0.0
    %1032 = vmatprep.subr.mxu0 0.0
    %1033 = vmatpush1.msra.mxu0 0.0
    %1034 = vmatprep.subr.mxu0 0.0
    %1035 = vmatpush1.msra.mxu0 0.0
    %1036 = vmatprep.subr.mxu0 0.0
    %1037 = vmatpush1.msra.mxu0 0.0
    %1038 = vmatprep.subr.mxu0 0.0
    %1039 = vmatpush1.msra.mxu0 0.0
    %1040 = vmatprep.subr.mxu0 0.0
    %1041 = vmatpush1.msra.mxu0 0.0
    %1042 = vmatprep.mubr.f32.mxu0 0.0
    %1043 = vmatmul.mubr.f32.gmra.mrb[0].mxu0 %v961
    %v1044 = vpop.f32.mrb[0].mxu0
    %v1045 = vadd.f32 %v932, %v1044
    %v1046 = vpop.f32.mrb[0].mxu0
    %1047 = vmatprep.mubr.f32.mxu0 0.0
    %1048 = vmatmul.mubr.f32.gmra.mrb[0].mxu0 %v964
    %v1049 = vpop.f32.mrb[0].mxu0
    %v1050 = vadd.f32 %v937, %v1049
    %v1051 = vpop.f32.mrb[0].mxu0
    %1052 = vmatprep.mubr.f32.mxu0 0.0
    %1053 = vmatmul.mubr.f32.gmra.mrb[0].mxu0 %v967
    %v1054 = vpop.f32.mrb[0].mxu0
    %v1055 = vadd.f32 %v942, %v1054
    %v1056 = vpop.f32.mrb[0].mxu0
    %1057 = vmatprep.mubr.f32.mxu0 0.0
    %1058 = vmatmul.mubr.f32.gmra.mrb[0].mxu0 %v970
    %v1059 = vpop.f32.mrb[0].mxu0
    %v1060 = vadd.f32 %v947, %v1059
    %v1061 = vpop.f32.mrb[0].mxu0
    %1062 = vmatprep.mubr.f32.mxu0 0.0
    %1063 = vmatmul.mubr.f32.gmra.mrb[0].mxu0 %v973
    %v1064 = vpop.f32.mrb[0].mxu0
    %v1065 = vadd.f32 %v952, %v1064
    %v1066 = vpop.f32.mrb[0].mxu0
    %1067 = vmatprep.mubr.f32.mxu0 0.0
    %1068 = vmatmul.mubr.f32.gmra.mrb[0].mxu0 %v976
    %v1069 = vpop.f32.mrb[0].mxu0
    %v1070 = vadd.f32 %v957, %v1069
    %v1071 = vpop.f32.mrb[0].mxu0
    %1072 = vdwg.mxu0
    %v1073 = vmul.f32 %v1045, 0.2
    %v1074 = vmul.f32 %v1050, 0.2
    %v1075 = vmul.f32 %v1055, 0.2
    %v1076 = vmul.f32 %v1060, 0.2
    %v1077 = vmul.f32 %v1065, 0.2
    %v1078 = vmul.f32 %v1070, 0.2
    %v1079 = vmax.f32 %v1045, %v1073
    %v1080 = vmax.f32 %v1050, %v1074
    %v1081 = vmax.f32 %v1055, %v1075
    %v1082 = vmax.f32 %v1060, %v1076
    %v1083 = vmax.f32 %v1065, %v1077
    %v1084 = vmax.f32 %v1070, %v1078
    %1085 = vmatprep.subr.mxu0 0.0
    %1086 = vmatpush1.msra.mxu0 %v833
    %1087 = vmatprep.subr.mxu0 0.0
    %1088 = vmatpush1.msra.mxu0 %v834
    %1089 = vmatprep.subr.mxu0 0.0
    %1090 = vmatpush1.msra.mxu0 0.0
    %1091 = vmatprep.subr.mxu0 0.0
    %1092 = vmatpush1.msra.mxu0 0.0
    %1093 = vmatprep.subr.mxu0 0.0
    %1094 = vmatpush1.msra.mxu0 0.0
    %1095 = vmatprep.subr.mxu0 0.0
    %1096 = vmatpush1.msra.mxu0 0.0
    %1097 = vmatprep.subr.mxu0 0.0
    %1098 = vmatpush1.msra.mxu0 0.0
    %1099 = vmatprep.subr.mxu0 0.0
    %1100 = vmatpush1.msra.mxu0 0.0
    %1101 = vmatprep.subr.mxu0 0.0
    %1102 = vmatpush1.msra.mxu0 0.0
    %1103 = vmatprep.subr.mxu0 0.0
    %1104 = vmatpush1.msra.mxu0 0.0
    %1105 = vmatprep.subr.mxu0 0.0
    %1106 = vmatpush1.msra.mxu0 0.0
    %1107 = vmatprep.subr.mxu0 0.0
    %1108 = vmatpush1.msra.mxu0 0.0
    %1109 = vmatprep.subr.mxu0 0.0
    %1110 = vmatpush1.msra.mxu0 0.0
    %1111 = vmatprep.subr.mxu0 0.0
    %1112 = vmatpush1.msra.mxu0 0.0
    %1113 = vmatprep.subr.mxu0 0.0
    %1114 = vmatpush1.msra.mxu0 0.0
    %1115 = vmatprep.subr.mxu0 0.0
    %1116 = vmatpush1.msra.mxu0 0.0
    %1117 = vmatprep.subr.mxu0 0.0
    %1118 = vmatpush1.msra.mxu0 0.0
    %1119 = vmatprep.subr.mxu0 0.0
    %1120 = vmatpush1.msra.mxu0 0.0
    %1121 = vmatprep.subr.mxu0 0.0
    %1122 = vmatpush1.msra.mxu0 0.0
    %1123 = vmatprep.subr.mxu0 0.0
    %1124 = vmatpush1.msra.mxu0 0.0
    %1125 = vmatprep.subr.mxu0 0.0
    %1126 = vmatpush1.msra.mxu0 0.0
    %1127 = vmatprep.subr.mxu0 0.0
    %1128 = vmatpush1.msra.mxu0 0.0
    %1129 = vmatprep.subr.mxu0 0.0
    %1130 = vmatpush1.msra.mxu0 0.0
    %1131 = vmatprep.subr.mxu0 0.0
    %1132 = vmatpush1.msra.mxu0 0.0
    %1133 = vmatprep.subr.mxu0 0.0
    %1134 = vmatpush1.msra.mxu0 0.0
    %1135 = vmatprep.subr.mxu0 0.0
    %1136 = vmatpush1.msra.mxu0 0.0
    %1137 = vmatprep.subr.mxu0 0.0
    %1138 = vmatpush1.msra.mxu0 0.0
    %1139 = vmatprep.subr.mxu0 0.0
    %1140 = vmatpush1.msra.mxu0 0.0
    %1141 = vmatprep.subr.mxu0 0.0
    %1142 = vmatpush1.msra.mxu0 0.0
    %1143 = vmatprep.subr.mxu0 0.0
    %1144 = vmatpush1.msra.mxu0 0.0
    %1145 = vmatprep.subr.mxu0 0.0
    %1146 = vmatpush1.msra.mxu0 0.0
    %1147 = vmatprep.subr.mxu0 0.0
    %1148 = vmatpush1.msra.mxu0 0.0
    %1149 = vmatprep.mubr.f32.mxu0 0.0
    %1150 = vmatmul.mubr.f32.gmra.mrb[0].mxu0 %v848
    %v1151 = vpop.f32.mrb[0].mxu0
    %v1152 = vadd.f32 0.0, %v1151
    %v1153 = vpop.f32.mrb[0].mxu0
    %1154 = vmatprep.mubr.f32.mxu0 0.0
    %1155 = vmatmul.mubr.f32.gmra.mrb[0].mxu0 %v851
    %v1156 = vpop.f32.mrb[0].mxu0
    %v1157 = vadd.f32 0.0, %v1156
    %v1158 = vpop.f32.mrb[0].mxu0
    %1159 = vmatprep.mubr.f32.mxu0 0.0
    %1160 = vmatmul.mubr.f32.gmra.mrb[0].mxu0 %v854
    %v1161 = vpop.f32.mrb[0].mxu0
    %v1162 = vadd.f32 0.0, %v1161
    %v1163 = vpop.f32.mrb[0].mxu0
    %1164 = vmatprep.mubr.f32.mxu0 0.0
    %1165 = vmatmul.mubr.f32.gmra.mrb[0].mxu0 %v857
    %v1166 = vpop.f32.mrb[0].mxu0
    %v1167 = vadd.f32 0.0, %v1166
    %v1168 = vpop.f32.mrb[0].mxu0
    %1169 = vmatprep.mubr.f32.mxu0 0.0
    %1170 = vmatmul.mubr.f32.gmra.mrb[0].mxu0 %v860
    %v1171 = vpop.f32.mrb[0].mxu0
    %v1172 = vadd.f32 0.0, %v1171
    %v1173 = vpop.f32.mrb[0].mxu0
    %1174 = vmatprep.mubr.f32.mxu0 0.0
    %1175 = vmatmul.mubr.f32.gmra.mrb[0].mxu0 %v863
    %v1176 = vpop.f32.mrb[0].mxu0
    %v1177 = vadd.f32 0.0, %v1176
    %v1178 = vpop.f32.mrb[0].mxu0
    %1179 = vdwg.mxu0
    %v1180 = vsub.f32 %v1079, %v1152
    %v1181 = vsub.f32 %v1080, %v1157
    %v1182 = vsub.f32 %v1081, %v1162
    %v1183 = vsub.f32 %v1082, %v1167
    %v1184 = vsub.f32 %v1083, %v1172
    %v1185 = vsub.f32 %v1084, %v1177
    %v1186 = vmul.f32 %v1180, 1.442695
    %v1187 = vpow.pop %v1186
    %v1188 = vmul.f32 %v1181, 1.442695
    %v1189 = vpow.pop %v1188
    %v1190 = vmul.f32 %v1182, 1.442695
    %v1191 = vpow.pop %v1190
    %v1192 = vmul.f32 %v1183, 1.442695
    %v1193 = vpow.pop %v1192
    %v1194 = vmul.f32 %v1184, 1.442695
    %v1195 = vpow.pop %v1194
    %v1196 = vmul.f32 %v1185, 1.442695
    %v1197 = vpow.pop %v1196
    %1198 = vmatprep.subr.mxu0 0.0
    %1199 = vmatpush1.msra.mxu0 %v839
    %1200 = vmatprep.subr.mxu0 0.0
    %1201 = vmatpush1.msra.mxu0 %v840
    %1202 = vmatprep.subr.mxu0 0.0
    %1203 = vmatpush1.msra.mxu0 0.0
    %1204 = vmatprep.subr.mxu0 0.0
    %1205 = vmatpush1.msra.mxu0 0.0
    %1206 = vmatprep.subr.mxu0 0.0
    %1207 = vmatpush1.msra.mxu0 0.0
    %1208 = vmatprep.subr.mxu0 0.0
    %1209 = vmatpush1.msra.mxu0 0.0
    %1210 = vmatprep.subr.mxu0 0.0
    %1211 = vmatpush1.msra.mxu0 0.0
    %1212 = vmatprep.subr.mxu0 0.0
    %1213 = vmatpush1.msra.mxu0 0.0
    %1214 = vmatprep.subr.mxu0 0.0
    %1215 = vmatpush1.msra.mxu0 0.0
    %1216 = vmatprep.subr.mxu0 0.0
    %1217 = vmatpush1.msra.mxu0 0.0
    %1218 = vmatprep.subr.mxu0 0.0
    %1219 = vmatpush1.msra.mxu0 0.0
    %1220 = vmatprep.subr.mxu0 0.0
    %1221 = vmatpush1.msra.mxu0 0.0
    %1222 = vmatprep.subr.mxu0 0.0
    %1223 = vmatpush1.msra.mxu0 0.0
    %1224 = vmatprep.subr.mxu0 0.0
    %1225 = vmatpush1.msra.mxu0 0.0
    %1226 = vmatprep.subr.mxu0 0.0
    %1227 = vmatpush1.msra.mxu0 0.0
    %1228 = vmatprep.subr.mxu0 0.0
    %1229 = vmatpush1.msra.mxu0 0.0
    %1230 = vmatprep.subr.mxu0 0.0
    %1231 = vmatpush1.msra.mxu0 0.0
    %1232 = vmatprep.subr.mxu0 0.0
    %1233 = vmatpush1.msra.mxu0 0.0
    %1234 = vmatprep.subr.mxu0 0.0
    %1235 = vmatpush1.msra.mxu0 0.0
    %1236 = vmatprep.subr.mxu0 0.0
    %1237 = vmatpush1.msra.mxu0 0.0
    %1238 = vmatprep.subr.mxu0 0.0
    %1239 = vmatpush1.msra.mxu0 0.0
    %1240 = vmatprep.subr.mxu0 0.0
    %1241 = vmatpush1.msra.mxu0 0.0
    %1242 = vmatprep.subr.mxu0 0.0
    %1243 = vmatpush1.msra.mxu0 0.0
    %1244 = vmatprep.subr.mxu0 0.0
    %1245 = vmatpush1.msra.mxu0 0.0
    %1246 = vmatprep.subr.mxu0 0.0
    %1247 = vmatpush1.msra.mxu0 0.0
    %1248 = vmatprep.subr.mxu0 0.0
    %1249 = vmatpush1.msra.mxu0 0.0
    %1250 = vmatprep.subr.mxu0 0.0
    %1251 = vmatpush1.msra.mxu0 0.0
    %1252 = vmatprep.subr.mxu0 0.0
    %1253 = vmatpush1.msra.mxu0 0.0
    %1254 = vmatprep.subr.mxu0 0.0
    %1255 = vmatpush1.msra.mxu0 0.0
    %1256 = vmatprep.subr.mxu0 0.0
    %1257 = vmatpush1.msra.mxu0 0.0
    %1258 = vmatprep.subr.mxu0 0.0
    %1259 = vmatpush1.msra.mxu0 0.0
    %1260 = vmatprep.subr.mxu0 0.0
    %1261 = vmatpush1.msra.mxu0 0.0
    %1262 = vmatprep.mubr.f32.mxu0 0.0
    %1263 = vmatmul.mubr.f32.gmra.mrb[0].mxu0 %v848
    %v1264 = vpop.f32.mrb[0].mxu0
    %v1265 = vadd.f32 0.0, %v1264
    %v1266 = vpop.f32.mrb[0].mxu0
    %1267 = vmatprep.mubr.f32.mxu0 0.0
    %1268 = vmatmul.mubr.f32.gmra.mrb[0].mxu0 %v851
    %v1269 = vpop.f32.mrb[0].mxu0
    %v1270 = vadd.f32 0.0, %v1269
    %v1271 = vpop.f32.mrb[0].mxu0
    %1272 = vmatprep.mubr.f32.mxu0 0.0
    %1273 = vmatmul.mubr.f32.gmra.mrb[0].mxu0 %v854
    %v1274 = vpop.f32.mrb[0].mxu0
    %v1275 = vadd.f32 0.0, %v1274
    %v1276 = vpop.f32.mrb[0].mxu0
    %1277 = vmatprep.mubr.f32.mxu0 0.0
    %1278 = vmatmul.mubr.f32.gmra.mrb[0].mxu0 %v857
    %v1279 = vpop.f32.mrb[0].mxu0
    %v1280 = vadd.f32 0.0, %v1279
    %v1281 = vpop.f32.mrb[0].mxu0
    %1282 = vmatprep.mubr.f32.mxu0 0.0
    %1283 = vmatmul.mubr.f32.gmra.mrb[0].mxu0 %v860
    %v1284 = vpop.f32.mrb[0].mxu0
    %v1285 = vadd.f32 0.0, %v1284
    %v1286 = vpop.f32.mrb[0].mxu0
    %1287 = vmatprep.mubr.f32.mxu0 0.0
    %1288 = vmatmul.mubr.f32.gmra.mrb[0].mxu0 %v863
    %v1289 = vpop.f32.mrb[0].mxu0
    %v1290 = vadd.f32 0.0, %v1289
    %v1291 = vpop.f32.mrb[0].mxu0
    %1292 = vdwg.mxu0
    %v1293 = vmul.f32 %v1187, %v1265
    %v1294 = vmul.f32 %v1189, %v1270
    %v1295 = vmul.f32 %v1191, %v1275
    %v1296 = vmul.f32 %v1193, %v1280
    %v1297 = vmul.f32 %v1195, %v1285
    %v1298 = vmul.f32 %v1197, %v1290
    %1299 = vst.msk [vmem:[%s23] sm:$0xff] %vm394, %v1293
    %1300 = vst.msk [vmem:[%s23 + $0x8] sm:$0xff] %vm394, %v1294
    %1301 = vst.msk [vmem:[%s23 + $0x10] sm:$0xff] %vm394, %v1295
    %1302 = vst.msk [vmem:[%s23 + $0x18] sm:$0xff] %vm394, %v1296
    %1303 = vst.msk [vmem:[%s23 + $0x20] sm:$0xff] %vm394, %v1297
    %1304 = vst.msk [vmem:[%s23 + $0x28] sm:$0xff] %vm394, %v1298
    %v1305 = vld [vmem:[#allocation2] sm:$0xff]
    %v1306 = vld [vmem:[#allocation2 + $0x8] sm:$0xff]
    %v1307 = vld [vmem:[%s8] sm:$0x1]
    %v1308 = vld [vmem:[%s9] sm:$0x1]
    %v1309 = vsel %vm148, %v1305, 0.0
    %1310 = vadd.xlane.f32.xlu0 %v1309
    %v1311 = vpop.xlane.xlu0 %1310
    %v1312 = vsel %vm148, %v1306, 0.0
    %1313 = vadd.xlane.f32.xlu0 %v1312
    %v1314 = vpop.xlane.xlu0 %1313
    %v1315 = vrcp.pop 16.0
    %v1316 = vmul.f32 %v1311, %v1315
    %v1317 = vmul.f32 %v1314, %v1315
    %v1318 = vsub.f32 %v1305, %v1316
    %v1319 = vsub.f32 %v1306, %v1317
    %v1320 = vmul.f32 %v1318, %v1318
    %v1321 = vmul.f32 %v1319, %v1319
    %v1322 = vsel %vm148, %v1320, 0.0
    %1323 = vadd.xlane.f32.xlu0 %v1322
    %v1324 = vpop.xlane.xlu0 %1323
    %v1325 = vsel %vm148, %v1321, 0.0
    %1326 = vadd.xlane.f32.xlu0 %v1325
    %v1327 = vpop.xlane.xlu0 %1326
    %v1328 = vmul.f32 %v1324, %v1315
    %v1329 = vmul.f32 %v1327, %v1315
    %v1330 = vadd.f32 %v1328, 1e-05
    %v1331 = vadd.f32 %v1329, 1e-05
    %v1332 = vrsqrt.pop %v1330
    %v1333 = vrsqrt.pop %v1331
    %v1334 = vmul.f32 %v1318, %v1332
    %v1335 = vmul.f32 %v1319, %v1333
    %v1337 = vlaneseq
    %v1338 = vshrl.u32 %v1337, 7
    %v1339 = vsub.s32 0, %v1338
    %v1340 = vrot.slane %v1307, %v1339
    %v1342 = vmul.f32 %v1334, %v1340
    %v1343 = vmul.f32 %v1335, %v1340
    %v1345 = vlaneseq
    %v1346 = vshrl.u32 %v1345, 7
    %v1347 = vsub.s32 0, %v1346
    %v1348 = vrot.slane %v1308, %v1347
    %v1350 = vadd.f32 %v1342, %v1348
    %v1351 = vadd.f32 %v1343, %v1348
    %v1352 = vmax.f32 %v1350, 0.0
    %v1353 = vmax.f32 %v1351, 0.0
    %v1354 = vld [vmem:[%s10] sm:$0xff]
    %v1355 = vld [vmem:[%s10 + $0x8] sm:$0xff]
    %v1356 = vpack.c.bf16 %v1353, %v1352
    %v1357 = vpack.c.bf16 %v1355, %v1354
    %v1359 = vsel %vm148, %v1356, 0
    %1361 = vmatprep.subr.bf16.mxu0 0
    %1362 = vmatpush1.bf16.msra.mxu0 %v1357
    %1363 = vmatprep.subr.bf16.mxu0 0
    %1364 = vmatpush1.bf16.msra.mxu0 0
    %1365 = vmatprep.subr.bf16.mxu0 0
    %1366 = vmatpush1.bf16.msra.mxu0 0
    %1367 = vmatprep.subr.bf16.mxu0 0
    %1368 = vmatpush1.bf16.msra.mxu0 0
    %1369 = vmatprep.subr.bf16.mxu0 0
    %1370 = vmatpush1.bf16.msra.mxu0 0
    %1371 = vmatprep.subr.bf16.mxu0 0
    %1372 = vmatpush1.bf16.msra.mxu0 0
    %1373 = vmatprep.subr.bf16.mxu0 0
    %1374 = vmatpush1.bf16.msra.mxu0 0
    %1375 = vmatprep.subr.bf16.mxu0 0
    %1376 = vmatpush1.bf16.msra.mxu0 0
    %1377 = vmatprep.subr.bf16.mxu0 0
    %1378 = vmatpush1.bf16.msra.mxu0 0
    %1379 = vmatprep.subr.bf16.mxu0 0
    %1380 = vmatpush1.bf16.msra.mxu0 0
    %1381 = vmatprep.subr.bf16.mxu0 0
    %1382 = vmatpush1.bf16.msra.mxu0 0
    %1383 = vmatprep.subr.bf16.mxu0 0
    %1384 = vmatpush1.bf16.msra.mxu0 0
    %1385 = vmatprep.subr.bf16.mxu0 0
    %1386 = vmatpush1.bf16.msra.mxu0 0
    %1387 = vmatprep.subr.bf16.mxu0 0
    %1388 = vmatpush1.bf16.msra.mxu0 0
    %1389 = vmatprep.subr.bf16.mxu0 0
    %1390 = vmatpush1.bf16.msra.mxu0 0
    %1391 = vmatprep.subr.bf16.mxu0 0
    %1392 = vmatpush1.bf16.msra.mxu0 0
    %1393 = vmatprep.mubr.bf16.mxu0 0
    %1394 = vmatmul.mubr.bf16.gmra.mrb[0].mxu0 %v1359
    %v1395 = vpop.f32.mrb[0].mxu0
    %v1396 = vadd.f32 0.0, %v1395
    %v1397 = vpop.f32.mrb[0].mxu0
    %v1398 = vpop.f32.mrb[0].mxu0
    %v1399 = vadd.f32 0.0, %v1398
    %v1400 = vpop.f32.mrb[0].mxu0
    %1401 = vdwg.mxu0
    %v1402 = vld [vmem:[%s11] sm:$0xff]
    %v1403 = vld [vmem:[%s11 + $0x8] sm:$0xff]
    %v1405 = vsel %vm148, %v1396, 0
    %v1408 = vsel %vm148, %v1399, 0
    %1410 = vmatprep.subr.mxu0 0.0
    %1411 = vmatpush1.msra.mxu0 %v1402
    %1412 = vmatprep.subr.mxu0 0.0
    %1413 = vmatpush1.msra.mxu0 %v1403
    %1414 = vmatprep.subr.mxu0 0.0
    %1415 = vmatpush1.msra.mxu0 0.0
    %1416 = vmatprep.subr.mxu0 0.0
    %1417 = vmatpush1.msra.mxu0 0.0
    %1418 = vmatprep.subr.mxu0 0.0
    %1419 = vmatpush1.msra.mxu0 0.0
    %1420 = vmatprep.subr.mxu0 0.0
    %1421 = vmatpush1.msra.mxu0 0.0
    %1422 = vmatprep.subr.mxu0 0.0
    %1423 = vmatpush1.msra.mxu0 0.0
    %1424 = vmatprep.subr.mxu0 0.0
    %1425 = vmatpush1.msra.mxu0 0.0
    %1426 = vmatprep.subr.mxu0 0.0
    %1427 = vmatpush1.msra.mxu0 0.0
    %1428 = vmatprep.subr.mxu0 0.0
    %1429 = vmatpush1.msra.mxu0 0.0
    %1430 = vmatprep.subr.mxu0 0.0
    %1431 = vmatpush1.msra.mxu0 0.0
    %1432 = vmatprep.subr.mxu0 0.0
    %1433 = vmatpush1.msra.mxu0 0.0
    %1434 = vmatprep.subr.mxu0 0.0
    %1435 = vmatpush1.msra.mxu0 0.0
    %1436 = vmatprep.subr.mxu0 0.0
    %1437 = vmatpush1.msra.mxu0 0.0
    %1438 = vmatprep.subr.mxu0 0.0
    %1439 = vmatpush1.msra.mxu0 0.0
    %1440 = vmatprep.subr.mxu0 0.0
    %1441 = vmatpush1.msra.mxu0 0.0
    %1442 = vmatprep.subr.mxu0 0.0
    %1443 = vmatpush1.msra.mxu0 0.0
    %1444 = vmatprep.subr.mxu0 0.0
    %1445 = vmatpush1.msra.mxu0 0.0
    %1446 = vmatprep.subr.mxu0 0.0
    %1447 = vmatpush1.msra.mxu0 0.0
    %1448 = vmatprep.subr.mxu0 0.0
    %1449 = vmatpush1.msra.mxu0 0.0
    %1450 = vmatprep.subr.mxu0 0.0
    %1451 = vmatpush1.msra.mxu0 0.0
    %1452 = vmatprep.subr.mxu0 0.0
    %1453 = vmatpush1.msra.mxu0 0.0
    %1454 = vmatprep.subr.mxu0 0.0
    %1455 = vmatpush1.msra.mxu0 0.0
    %1456 = vmatprep.subr.mxu0 0.0
    %1457 = vmatpush1.msra.mxu0 0.0
    %1458 = vmatprep.subr.mxu0 0.0
    %1459 = vmatpush1.msra.mxu0 0.0
    %1460 = vmatprep.subr.mxu0 0.0
    %1461 = vmatpush1.msra.mxu0 0.0
    %1462 = vmatprep.subr.mxu0 0.0
    %1463 = vmatpush1.msra.mxu0 0.0
    %1464 = vmatprep.subr.mxu0 0.0
    %1465 = vmatpush1.msra.mxu0 0.0
    %1466 = vmatprep.subr.mxu0 0.0
    %1467 = vmatpush1.msra.mxu0 0.0
    %1468 = vmatprep.subr.mxu0 0.0
    %1469 = vmatpush1.msra.mxu0 0.0
    %1470 = vmatprep.subr.mxu0 0.0
    %1471 = vmatpush1.msra.mxu0 0.0
    %1472 = vmatprep.subr.mxu0 0.0
    %1473 = vmatpush1.msra.mxu0 0.0
    %1474 = vmatprep.mubr.f32.mxu0 0.0
    %1475 = vmatmul.mubr.f32.gmra.mrb[0].mxu0 %v1405
    %v1476 = vpop.f32.mrb[0].mxu0
    %v1477 = vadd.f32 0.0, %v1476
    %v1478 = vpop.f32.mrb[0].mxu0
    %1479 = vmatprep.mubr.f32.mxu0 0.0
    %1480 = vmatmul.mubr.f32.gmra.mrb[0].mxu0 %v1408
    %v1481 = vpop.f32.mrb[0].mxu0
    %v1482 = vadd.f32 0.0, %v1481
    %v1483 = vpop.f32.mrb[0].mxu0
    %1484 = vdwg.mxu0
    %1485 = vxpose.xlu0.b32.start [1/16] %v1477, 128
    %1486 = vxpose.xlu0.b32.cont [2/16] %v1482, 128
    %1487 = vxpose.xlu0.b32.cont [3/16] 0.0, 128
    %1488 = vxpose.xlu0.b32.cont [4/16] 0.0, 128
    %1489 = vxpose.xlu0.b32.cont [5/16] 0.0, 128
    %1490 = vxpose.xlu0.b32.cont [6/16] 0.0, 128
    %1491 = vxpose.xlu0.b32.cont [7/16] 0.0, 128
    %1492 = vxpose.xlu0.b32.cont [8/16] 0.0, 128
    %1493 = vxpose.xlu0.b32.cont [9/16] 0.0, 128
    %1494 = vxpose.xlu0.b32.cont [10/16] 0.0, 128
    %1495 = vxpose.xlu0.b32.cont [11/16] 0.0, 128
    %1496 = vxpose.xlu0.b32.cont [12/16] 0.0, 128
    %1497 = vxpose.xlu0.b32.cont [13/16] 0.0, 128
    %1498 = vxpose.xlu0.b32.cont [14/16] 0.0, 128
    %1499 = vxpose.xlu0.b32.cont [15/16] 0.0, 128
    %1500 = vxpose.xlu0.b32.end [16/16] 0.0, 128
    %v1501 = vpop.trf.xlu0
    %v1502 = vpop.trf.xlu0
    %v1503 = vpop.trf.xlu0
    %v1504 = vpop.trf.xlu0
    %v1505 = vpop.trf.xlu0
    %v1506 = vpop.trf.xlu0
    %v1507 = vpop.trf.xlu0
    %v1508 = vpop.trf.xlu0
    %v1509 = vpop.trf.xlu0
    %v1510 = vpop.trf.xlu0
    %v1511 = vpop.trf.xlu0
    %v1512 = vpop.trf.xlu0
    %v1513 = vpop.trf.xlu0
    %v1514 = vpop.trf.xlu0
    %v1515 = vpop.trf.xlu0
    %v1516 = vpop.trf.xlu0
    %v1517 = vld [vmem:[%s12] sm:$0x1]
    %1519 = vset.pattern.permute.xlu0 4
    %1520 = vperm.xlu0 %1519, %v1477
    %v1521 = vpop.permute.xlu0 %1520
    %1524 = vset.pattern.permute.xlu0 4
    %1525 = vperm.xlu0 %1524, %v1482
    %v1526 = vpop.permute.xlu0 %1525
    %v1528 = vlaneseq
    %v1529 = vshrl.u32 %v1528, 7
    %v1530 = vsub.s32 0, %v1529
    %v1531 = vrot.slane %v1501, %v1530
    %v1532 = vadd.f32 %v1521, %v1531
    %v1533 = vadd.f32 %v1526, %v1531
    %v1534 = vmul.f32 %v1532, 0.2
    %v1535 = vmul.f32 %v1533, 0.2
    %v1536 = vmax.f32 %v1532, %v1534
    %v1537 = vmax.f32 %v1533, %v1535
    %v1538 = vadd.f32 %v1536, %v77
    %v1539 = vadd.f32 %v1537, %v78
    %v1540 = vsel %vm148, %v1538, -inf
    %1541 = vmax.xlane.f32.xlu0 %v1540
    %v1542 = vpop.xlane.xlu0 %1541
    %v1543 = vsel %vm148, %v1539, -inf
    %1544 = vmax.xlane.f32.xlu0 %v1543
    %v1545 = vpop.xlane.xlu0 %1544
    %v1546 = vsub.f32 %v1538, %v1542
    %v1547 = vsub.f32 %v1539, %v1545
    %v1548 = vmul.f32 %v1546, 1.442695
    %v1549 = vpow.pop %v1548
    %v1550 = vmul.f32 %v1547, 1.442695
    %v1551 = vpow.pop %v1550
    %v1552 = vsel %vm148, %v1549, 0.0
    %1553 = vadd.xlane.f32.xlu0 %v1552
    %v1554 = vpop.xlane.xlu0 %1553
    %v1555 = vsel %vm148, %v1551, 0.0
    %1556 = vadd.xlane.f32.xlu0 %v1555
    %v1557 = vpop.xlane.xlu0 %1556
    %v1558 = vrcp.pop %v1554
    %v1559 = vrcp.pop %v1557
    %v1560 = vmul.f32 %v1549, %v1558
    %v1561 = vmul.f32 %v1551, %v1559
    %v1563 = vlaneseq
    %v1564 = vshrl.u32 %v1563, 7
    %v1565 = vsub.s32 0, %v1564
    %v1566 = vrot.slane %v1517, %v1565
    %v1569 = vsel %vm148, %v1560, 0
    %v1572 = vsel %vm148, %v1561, 0
    %1574 = vmatprep.subr.mxu0 0.0
    %1575 = vmatpush1.msra.mxu0 %v1396
    %1576 = vmatprep.subr.mxu0 0.0
    %1577 = vmatpush1.msra.mxu0 %v1399
    %1578 = vmatprep.subr.mxu0 0.0
    %1579 = vmatpush1.msra.mxu0 0.0
    %1580 = vmatprep.subr.mxu0 0.0
    %1581 = vmatpush1.msra.mxu0 0.0
    %1582 = vmatprep.subr.mxu0 0.0
    %1583 = vmatpush1.msra.mxu0 0.0
    %1584 = vmatprep.subr.mxu0 0.0
    %1585 = vmatpush1.msra.mxu0 0.0
    %1586 = vmatprep.subr.mxu0 0.0
    %1587 = vmatpush1.msra.mxu0 0.0
    %1588 = vmatprep.subr.mxu0 0.0
    %1589 = vmatpush1.msra.mxu0 0.0
    %1590 = vmatprep.subr.mxu0 0.0
    %1591 = vmatpush1.msra.mxu0 0.0
    %1592 = vmatprep.subr.mxu0 0.0
    %1593 = vmatpush1.msra.mxu0 0.0
    %1594 = vmatprep.subr.mxu0 0.0
    %1595 = vmatpush1.msra.mxu0 0.0
    %1596 = vmatprep.subr.mxu0 0.0
    %1597 = vmatpush1.msra.mxu0 0.0
    %1598 = vmatprep.subr.mxu0 0.0
    %1599 = vmatpush1.msra.mxu0 0.0
    %1600 = vmatprep.subr.mxu0 0.0
    %1601 = vmatpush1.msra.mxu0 0.0
    %1602 = vmatprep.subr.mxu0 0.0
    %1603 = vmatpush1.msra.mxu0 0.0
    %1604 = vmatprep.subr.mxu0 0.0
    %1605 = vmatpush1.msra.mxu0 0.0
    %1606 = vmatprep.subr.mxu0 0.0
    %1607 = vmatpush1.msra.mxu0 0.0
    %1608 = vmatprep.subr.mxu0 0.0
    %1609 = vmatpush1.msra.mxu0 0.0
    %1610 = vmatprep.subr.mxu0 0.0
    %1611 = vmatpush1.msra.mxu0 0.0
    %1612 = vmatprep.subr.mxu0 0.0
    %1613 = vmatpush1.msra.mxu0 0.0
    %1614 = vmatprep.subr.mxu0 0.0
    %1615 = vmatpush1.msra.mxu0 0.0
    %1616 = vmatprep.subr.mxu0 0.0
    %1617 = vmatpush1.msra.mxu0 0.0
    %1618 = vmatprep.subr.mxu0 0.0
    %1619 = vmatpush1.msra.mxu0 0.0
    %1620 = vmatprep.subr.mxu0 0.0
    %1621 = vmatpush1.msra.mxu0 0.0
    %1622 = vmatprep.subr.mxu0 0.0
    %1623 = vmatpush1.msra.mxu0 0.0
    %1624 = vmatprep.subr.mxu0 0.0
    %1625 = vmatpush1.msra.mxu0 0.0
    %1626 = vmatprep.subr.mxu0 0.0
    %1627 = vmatpush1.msra.mxu0 0.0
    %1628 = vmatprep.subr.mxu0 0.0
    %1629 = vmatpush1.msra.mxu0 0.0
    %1630 = vmatprep.subr.mxu0 0.0
    %1631 = vmatpush1.msra.mxu0 0.0
    %1632 = vmatprep.subr.mxu0 0.0
    %1633 = vmatpush1.msra.mxu0 0.0
    %1634 = vmatprep.subr.mxu0 0.0
    %1635 = vmatpush1.msra.mxu0 0.0
    %1636 = vmatprep.subr.mxu0 0.0
    %1637 = vmatpush1.msra.mxu0 0.0
    %1638 = vmatprep.mubr.f32.mxu0 0.0
    %1639 = vmatmul.mubr.f32.gmra.mrb[0].mxu0 %v1569
    %v1640 = vpop.f32.mrb[0].mxu0
    %v1641 = vadd.f32 %v1566, %v1640
    %v1642 = vpop.f32.mrb[0].mxu0
    %1643 = vmatprep.mubr.f32.mxu0 0.0
    %1644 = vmatmul.mubr.f32.gmra.mrb[0].mxu0 %v1572
    %v1645 = vpop.f32.mrb[0].mxu0
    %v1646 = vadd.f32 %v1566, %v1645
    %v1647 = vpop.f32.mrb[0].mxu0
    %1648 = vdwg.mxu0
    %1649 = vst.msk [vmem:[#allocation3] sm:$0xff] %vm394, %v1641
    %1650 = vst.msk [vmem:[#allocation3 + $0x8] sm:$0xff] %vm394, %v1646
    %1651 = vset.pattern.permute.xlu0 5
    %1652 = vperm.xlu0 %1651, %v1477
    %v1653 = vpop.permute.xlu0 %1652
    %1655 = vset.pattern.permute.xlu0 5
    %1656 = vperm.xlu0 %1655, %v1482
    %v1657 = vpop.permute.xlu0 %1656
    %v1659 = vlaneseq
    %v1660 = vshrl.u32 %v1659, 7
    %v1661 = vsub.s32 1, %v1660
    %v1662 = vrot.slane %v1501, %v1661
    %v1663 = vadd.f32 %v1653, %v1662
    %v1664 = vadd.f32 %v1657, %v1662
    %v1665 = vmul.f32 %v1663, 0.2
    %v1666 = vmul.f32 %v1664, 0.2
    %v1667 = vmax.f32 %v1663, %v1665
    %v1668 = vmax.f32 %v1664, %v1666
    %v1669 = vadd.f32 %v1667, %v77
    %v1670 = vadd.f32 %v1668, %v78
    %v1671 = vsel %vm148, %v1669, -inf
    %1672 = vmax.xlane.f32.xlu0 %v1671
    %v1673 = vpop.xlane.xlu0 %1672
    %v1674 = vsel %vm148, %v1670, -inf
    %1675 = vmax.xlane.f32.xlu0 %v1674
    %v1676 = vpop.xlane.xlu0 %1675
    %v1677 = vsub.f32 %v1669, %v1673
    %v1678 = vsub.f32 %v1670, %v1676
    %v1679 = vmul.f32 %v1677, 1.442695
    %v1680 = vpow.pop %v1679
    %v1681 = vmul.f32 %v1678, 1.442695
    %v1682 = vpow.pop %v1681
    %v1683 = vsel %vm148, %v1680, 0.0
    %1684 = vadd.xlane.f32.xlu0 %v1683
    %v1685 = vpop.xlane.xlu0 %1684
    %v1686 = vsel %vm148, %v1682, 0.0
    %1687 = vadd.xlane.f32.xlu0 %v1686
    %v1688 = vpop.xlane.xlu0 %1687
    %v1689 = vrcp.pop %v1685
    %v1690 = vrcp.pop %v1688
    %v1691 = vmul.f32 %v1680, %v1689
    %v1692 = vmul.f32 %v1682, %v1690
    %1693 = vrot.lane.b32.xlu0 %v1396, 124
    %v1694 = vpop.permute.xlu0 %1693
    %1695 = vrot.lane.b32.xlu0 %v1399, 124
    %v1696 = vpop.permute.xlu0 %1695
    %1699 = vrot.lane.b32.xlu0 %v1566, 124
    %v1700 = vpop.permute.xlu0 %1699
    %v1703 = vsel %vm148, %v1691, 0
    %v1706 = vsel %vm148, %v1692, 0
    %1708 = vmatprep.subr.mxu0 0.0
    %1709 = vmatpush1.msra.mxu0 %v1694
    %1710 = vmatprep.subr.mxu0 0.0
    %1711 = vmatpush1.msra.mxu0 %v1696
    %1712 = vmatprep.subr.mxu0 0.0
    %1713 = vmatpush1.msra.mxu0 0.0
    %1714 = vmatprep.subr.mxu0 0.0
    %1715 = vmatpush1.msra.mxu0 0.0
    %1716 = vmatprep.subr.mxu0 0.0
    %1717 = vmatpush1.msra.mxu0 0.0
    %1718 = vmatprep.subr.mxu0 0.0
    %1719 = vmatpush1.msra.mxu0 0.0
    %1720 = vmatprep.subr.mxu0 0.0
    %1721 = vmatpush1.msra.mxu0 0.0
    %1722 = vmatprep.subr.mxu0 0.0
    %1723 = vmatpush1.msra.mxu0 0.0
    %1724 = vmatprep.subr.mxu0 0.0
    %1725 = vmatpush1.msra.mxu0 0.0
    %1726 = vmatprep.subr.mxu0 0.0
    %1727 = vmatpush1.msra.mxu0 0.0
    %1728 = vmatprep.subr.mxu0 0.0
    %1729 = vmatpush1.msra.mxu0 0.0
    %1730 = vmatprep.subr.mxu0 0.0
    %1731 = vmatpush1.msra.mxu0 0.0
    %1732 = vmatprep.subr.mxu0 0.0
    %1733 = vmatpush1.msra.mxu0 0.0
    %1734 = vmatprep.subr.mxu0 0.0
    %1735 = vmatpush1.msra.mxu0 0.0
    %1736 = vmatprep.subr.mxu0 0.0
    %1737 = vmatpush1.msra.mxu0 0.0
    %1738 = vmatprep.subr.mxu0 0.0
    %1739 = vmatpush1.msra.mxu0 0.0
    %1740 = vmatprep.subr.mxu0 0.0
    %1741 = vmatpush1.msra.mxu0 0.0
    %1742 = vmatprep.subr.mxu0 0.0
    %1743 = vmatpush1.msra.mxu0 0.0
    %1744 = vmatprep.subr.mxu0 0.0
    %1745 = vmatpush1.msra.mxu0 0.0
    %1746 = vmatprep.subr.mxu0 0.0
    %1747 = vmatpush1.msra.mxu0 0.0
    %1748 = vmatprep.subr.mxu0 0.0
    %1749 = vmatpush1.msra.mxu0 0.0
    %1750 = vmatprep.subr.mxu0 0.0
    %1751 = vmatpush1.msra.mxu0 0.0
    %1752 = vmatprep.subr.mxu0 0.0
    %1753 = vmatpush1.msra.mxu0 0.0
    %1754 = vmatprep.subr.mxu0 0.0
    %1755 = vmatpush1.msra.mxu0 0.0
    %1756 = vmatprep.subr.mxu0 0.0
    %1757 = vmatpush1.msra.mxu0 0.0
    %1758 = vmatprep.subr.mxu0 0.0
    %1759 = vmatpush1.msra.mxu0 0.0
    %1760 = vmatprep.subr.mxu0 0.0
    %1761 = vmatpush1.msra.mxu0 0.0
    %1762 = vmatprep.subr.mxu0 0.0
    %1763 = vmatpush1.msra.mxu0 0.0
    %1764 = vmatprep.subr.mxu0 0.0
    %1765 = vmatpush1.msra.mxu0 0.0
    %1766 = vmatprep.subr.mxu0 0.0
    %1767 = vmatpush1.msra.mxu0 0.0
    %1768 = vmatprep.subr.mxu0 0.0
    %1769 = vmatpush1.msra.mxu0 0.0
    %1770 = vmatprep.subr.mxu0 0.0
    %1771 = vmatpush1.msra.mxu0 0.0
    %1772 = vmatprep.mubr.f32.mxu0 0.0
    %1773 = vmatmul.mubr.f32.gmra.mrb[0].mxu0 %v1703
    %v1774 = vpop.f32.mrb[0].mxu0
    %v1775 = vadd.f32 %v1700, %v1774
    %v1776 = vpop.f32.mrb[0].mxu0
    %1777 = vmatprep.mubr.f32.mxu0 0.0
    %1778 = vmatmul.mubr.f32.gmra.mrb[0].mxu0 %v1706
    %v1779 = vpop.f32.mrb[0].mxu0
    %v1780 = vadd.f32 %v1700, %v1779
    %v1781 = vpop.f32.mrb[0].mxu0
    %1782 = vdwg.mxu0
    %1785 = vrot.lane.b32.xlu0 %v1775, 4
    %v1786 = vpop.permute.xlu0 %1785
    %1787 = vrot.lane.b32.xlu0 %v1780, 4
    %v1788 = vpop.permute.xlu0 %1787
    %1791 = vst.msk [vmem:[#allocation3] sm:$0xff] %vm537, %v1786
    %1792 = vst.msk [vmem:[#allocation3 + $0x8] sm:$0xff] %vm537, %v1788
    %1793 = vset.pattern.permute.xlu0 6
    %1794 = vperm.xlu0 %1793, %v1477
    %v1795 = vpop.permute.xlu0 %1794
    %1797 = vset.pattern.permute.xlu0 6
    %1798 = vperm.xlu0 %1797, %v1482
    %v1799 = vpop.permute.xlu0 %1798
    %v1801 = vlaneseq
    %v1802 = vshrl.u32 %v1801, 7
    %v1803 = vsub.s32 2, %v1802
    %v1804 = vrot.slane %v1501, %v1803
    %v1805 = vadd.f32 %v1795, %v1804
    %v1806 = vadd.f32 %v1799, %v1804
    %v1807 = vmul.f32 %v1805, 0.2
    %v1808 = vmul.f32 %v1806, 0.2
    %v1809 = vmax.f32 %v1805, %v1807
    %v1810 = vmax.f32 %v1806, %v1808
    %v1811 = vadd.f32 %v1809, %v77
    %v1812 = vadd.f32 %v1810, %v78
    %v1813 = vsel %vm148, %v1811, -inf
    %1814 = vmax.xlane.f32.xlu0 %v1813
    %v1815 = vpop.xlane.xlu0 %1814
    %v1816 = vsel %vm148, %v1812, -inf
    %1817 = vmax.xlane.f32.xlu0 %v1816
    %v1818 = vpop.xlane.xlu0 %1817
    %v1819 = vsub.f32 %v1811, %v1815
    %v1820 = vsub.f32 %v1812, %v1818
    %v1821 = vmul.f32 %v1819, 1.442695
    %v1822 = vpow.pop %v1821
    %v1823 = vmul.f32 %v1820, 1.442695
    %v1824 = vpow.pop %v1823
    %v1825 = vsel %vm148, %v1822, 0.0
    %1826 = vadd.xlane.f32.xlu0 %v1825
    %v1827 = vpop.xlane.xlu0 %1826
    %v1828 = vsel %vm148, %v1824, 0.0
    %1829 = vadd.xlane.f32.xlu0 %v1828
    %v1830 = vpop.xlane.xlu0 %1829
    %v1831 = vrcp.pop %v1827
    %v1832 = vrcp.pop %v1830
    %v1833 = vmul.f32 %v1822, %v1831
    %v1834 = vmul.f32 %v1824, %v1832
    %1835 = vrot.lane.b32.xlu0 %v1396, 120
    %v1836 = vpop.permute.xlu0 %1835
    %1837 = vrot.lane.b32.xlu0 %v1399, 120
    %v1838 = vpop.permute.xlu0 %1837
    %1841 = vrot.lane.b32.xlu0 %v1566, 120
    %v1842 = vpop.permute.xlu0 %1841
    %v1845 = vsel %vm148, %v1833, 0
    %v1848 = vsel %vm148, %v1834, 0
    %1850 = vmatprep.subr.mxu0 0.0
    %1851 = vmatpush1.msra.mxu0 %v1836
    %1852 = vmatprep.subr.mxu0 0.0
    %1853 = vmatpush1.msra.mxu0 %v1838
    %1854 = vmatprep.subr.mxu0 0.0
    %1855 = vmatpush1.msra.mxu0 0.0
    %1856 = vmatprep.subr.mxu0 0.0
    %1857 = vmatpush1.msra.mxu0 0.0
    %1858 = vmatprep.subr.mxu0 0.0
    %1859 = vmatpush1.msra.mxu0 0.0
    %1860 = vmatprep.subr.mxu0 0.0
    %1861 = vmatpush1.msra.mxu0 0.0
    %1862 = vmatprep.subr.mxu0 0.0
    %1863 = vmatpush1.msra.mxu0 0.0
    %1864 = vmatprep.subr.mxu0 0.0
    %1865 = vmatpush1.msra.mxu0 0.0
    %1866 = vmatprep.subr.mxu0 0.0
    %1867 = vmatpush1.msra.mxu0 0.0
    %1868 = vmatprep.subr.mxu0 0.0
    %1869 = vmatpush1.msra.mxu0 0.0
    %1870 = vmatprep.subr.mxu0 0.0
    %1871 = vmatpush1.msra.mxu0 0.0
    %1872 = vmatprep.subr.mxu0 0.0
    %1873 = vmatpush1.msra.mxu0 0.0
    %1874 = vmatprep.subr.mxu0 0.0
    %1875 = vmatpush1.msra.mxu0 0.0
    %1876 = vmatprep.subr.mxu0 0.0
    %1877 = vmatpush1.msra.mxu0 0.0
    %1878 = vmatprep.subr.mxu0 0.0
    %1879 = vmatpush1.msra.mxu0 0.0
    %1880 = vmatprep.subr.mxu0 0.0
    %1881 = vmatpush1.msra.mxu0 0.0
    %1882 = vmatprep.subr.mxu0 0.0
    %1883 = vmatpush1.msra.mxu0 0.0
    %1884 = vmatprep.subr.mxu0 0.0
    %1885 = vmatpush1.msra.mxu0 0.0
    %1886 = vmatprep.subr.mxu0 0.0
    %1887 = vmatpush1.msra.mxu0 0.0
    %1888 = vmatprep.subr.mxu0 0.0
    %1889 = vmatpush1.msra.mxu0 0.0
    %1890 = vmatprep.subr.mxu0 0.0
    %1891 = vmatpush1.msra.mxu0 0.0
    %1892 = vmatprep.subr.mxu0 0.0
    %1893 = vmatpush1.msra.mxu0 0.0
    %1894 = vmatprep.subr.mxu0 0.0
    %1895 = vmatpush1.msra.mxu0 0.0
    %1896 = vmatprep.subr.mxu0 0.0
    %1897 = vmatpush1.msra.mxu0 0.0
    %1898 = vmatprep.subr.mxu0 0.0
    %1899 = vmatpush1.msra.mxu0 0.0
    %1900 = vmatprep.subr.mxu0 0.0
    %1901 = vmatpush1.msra.mxu0 0.0
    %1902 = vmatprep.subr.mxu0 0.0
    %1903 = vmatpush1.msra.mxu0 0.0
    %1904 = vmatprep.subr.mxu0 0.0
    %1905 = vmatpush1.msra.mxu0 0.0
    %1906 = vmatprep.subr.mxu0 0.0
    %1907 = vmatpush1.msra.mxu0 0.0
    %1908 = vmatprep.subr.mxu0 0.0
    %1909 = vmatpush1.msra.mxu0 0.0
    %1910 = vmatprep.subr.mxu0 0.0
    %1911 = vmatpush1.msra.mxu0 0.0
    %1912 = vmatprep.subr.mxu0 0.0
    %1913 = vmatpush1.msra.mxu0 0.0
    %1914 = vmatprep.mubr.f32.mxu0 0.0
    %1915 = vmatmul.mubr.f32.gmra.mrb[0].mxu0 %v1845
    %v1916 = vpop.f32.mrb[0].mxu0
    %v1917 = vadd.f32 %v1842, %v1916
    %v1918 = vpop.f32.mrb[0].mxu0
    %1919 = vmatprep.mubr.f32.mxu0 0.0
    %1920 = vmatmul.mubr.f32.gmra.mrb[0].mxu0 %v1848
    %v1921 = vpop.f32.mrb[0].mxu0
    %v1922 = vadd.f32 %v1842, %v1921
    %v1923 = vpop.f32.mrb[0].mxu0
    %1924 = vdwg.mxu0
    %1927 = vrot.lane.b32.xlu0 %v1917, 8
    %v1928 = vpop.permute.xlu0 %1927
    %1929 = vrot.lane.b32.xlu0 %v1922, 8
    %v1930 = vpop.permute.xlu0 %1929
    %1933 = vst.msk [vmem:[#allocation3] sm:$0xff] %vm680, %v1928
    %1934 = vst.msk [vmem:[#allocation3 + $0x8] sm:$0xff] %vm680, %v1930
    %1935 = vset.pattern.permute.xlu0 7
    %1936 = vperm.xlu0 %1935, %v1477
    %v1937 = vpop.permute.xlu0 %1936
    %1939 = vset.pattern.permute.xlu0 7
    %1940 = vperm.xlu0 %1939, %v1482
    %v1941 = vpop.permute.xlu0 %1940
    %v1943 = vlaneseq
    %v1944 = vshrl.u32 %v1943, 7
    %v1945 = vsub.s32 3, %v1944
    %v1946 = vrot.slane %v1501, %v1945
    %v1947 = vadd.f32 %v1937, %v1946
    %v1948 = vadd.f32 %v1941, %v1946
    %v1949 = vmul.f32 %v1947, 0.2
    %v1950 = vmul.f32 %v1948, 0.2
    %v1951 = vmax.f32 %v1947, %v1949
    %v1952 = vmax.f32 %v1948, %v1950
    %v1953 = vadd.f32 %v1951, %v77
    %v1954 = vadd.f32 %v1952, %v78
    %v1955 = vsel %vm148, %v1953, -inf
    %1956 = vmax.xlane.f32.xlu0 %v1955
    %v1957 = vpop.xlane.xlu0 %1956
    %v1958 = vsel %vm148, %v1954, -inf
    %1959 = vmax.xlane.f32.xlu0 %v1958
    %v1960 = vpop.xlane.xlu0 %1959
    %v1961 = vsub.f32 %v1953, %v1957
    %v1962 = vsub.f32 %v1954, %v1960
    %v1963 = vmul.f32 %v1961, 1.442695
    %v1964 = vpow.pop %v1963
    %v1965 = vmul.f32 %v1962, 1.442695
    %v1966 = vpow.pop %v1965
    %v1967 = vsel %vm148, %v1964, 0.0
    %1968 = vadd.xlane.f32.xlu0 %v1967
    %v1969 = vpop.xlane.xlu0 %1968
    %v1970 = vsel %vm148, %v1966, 0.0
    %1971 = vadd.xlane.f32.xlu0 %v1970
    %v1972 = vpop.xlane.xlu0 %1971
    %v1973 = vrcp.pop %v1969
    %v1974 = vrcp.pop %v1972
    %v1975 = vmul.f32 %v1964, %v1973
    %v1976 = vmul.f32 %v1966, %v1974
    %1977 = vrot.lane.b32.xlu0 %v1396, 116
    %v1978 = vpop.permute.xlu0 %1977
    %1979 = vrot.lane.b32.xlu0 %v1399, 116
    %v1980 = vpop.permute.xlu0 %1979
    %1983 = vrot.lane.b32.xlu0 %v1566, 116
    %v1984 = vpop.permute.xlu0 %1983
    %v1987 = vsel %vm148, %v1975, 0
    %v1990 = vsel %vm148, %v1976, 0
    %1992 = vmatprep.subr.mxu0 0.0
    %1993 = vmatpush1.msra.mxu0 %v1978
    %1994 = vmatprep.subr.mxu0 0.0
    %1995 = vmatpush1.msra.mxu0 %v1980
    %1996 = vmatprep.subr.mxu0 0.0
    %1997 = vmatpush1.msra.mxu0 0.0
    %1998 = vmatprep.subr.mxu0 0.0
    %1999 = vmatpush1.msra.mxu0 0.0
    %2000 = vmatprep.subr.mxu0 0.0
    %2001 = vmatpush1.msra.mxu0 0.0
    %2002 = vmatprep.subr.mxu0 0.0
    %2003 = vmatpush1.msra.mxu0 0.0
    %2004 = vmatprep.subr.mxu0 0.0
    %2005 = vmatpush1.msra.mxu0 0.0
    %2006 = vmatprep.subr.mxu0 0.0
    %2007 = vmatpush1.msra.mxu0 0.0
    %2008 = vmatprep.subr.mxu0 0.0
    %2009 = vmatpush1.msra.mxu0 0.0
    %2010 = vmatprep.subr.mxu0 0.0
    %2011 = vmatpush1.msra.mxu0 0.0
    %2012 = vmatprep.subr.mxu0 0.0
    %2013 = vmatpush1.msra.mxu0 0.0
    %2014 = vmatprep.subr.mxu0 0.0
    %2015 = vmatpush1.msra.mxu0 0.0
    %2016 = vmatprep.subr.mxu0 0.0
    %2017 = vmatpush1.msra.mxu0 0.0
    %2018 = vmatprep.subr.mxu0 0.0
    %2019 = vmatpush1.msra.mxu0 0.0
    %2020 = vmatprep.subr.mxu0 0.0
    %2021 = vmatpush1.msra.mxu0 0.0
    %2022 = vmatprep.subr.mxu0 0.0
    %2023 = vmatpush1.msra.mxu0 0.0
    %2024 = vmatprep.subr.mxu0 0.0
    %2025 = vmatpush1.msra.mxu0 0.0
    %2026 = vmatprep.subr.mxu0 0.0
    %2027 = vmatpush1.msra.mxu0 0.0
    %2028 = vmatprep.subr.mxu0 0.0
    %2029 = vmatpush1.msra.mxu0 0.0
    %2030 = vmatprep.subr.mxu0 0.0
    %2031 = vmatpush1.msra.mxu0 0.0
    %2032 = vmatprep.subr.mxu0 0.0
    %2033 = vmatpush1.msra.mxu0 0.0
    %2034 = vmatprep.subr.mxu0 0.0
    %2035 = vmatpush1.msra.mxu0 0.0
    %2036 = vmatprep.subr.mxu0 0.0
    %2037 = vmatpush1.msra.mxu0 0.0
    %2038 = vmatprep.subr.mxu0 0.0
    %2039 = vmatpush1.msra.mxu0 0.0
    %2040 = vmatprep.subr.mxu0 0.0
    %2041 = vmatpush1.msra.mxu0 0.0
    %2042 = vmatprep.subr.mxu0 0.0
    %2043 = vmatpush1.msra.mxu0 0.0
    %2044 = vmatprep.subr.mxu0 0.0
    %2045 = vmatpush1.msra.mxu0 0.0
    %2046 = vmatprep.subr.mxu0 0.0
    %2047 = vmatpush1.msra.mxu0 0.0
    %2048 = vmatprep.subr.mxu0 0.0
    %2049 = vmatpush1.msra.mxu0 0.0
    %2050 = vmatprep.subr.mxu0 0.0
    %2051 = vmatpush1.msra.mxu0 0.0
    %2052 = vmatprep.subr.mxu0 0.0
    %2053 = vmatpush1.msra.mxu0 0.0
    %2054 = vmatprep.subr.mxu0 0.0
    %2055 = vmatpush1.msra.mxu0 0.0
    %2056 = vmatprep.mubr.f32.mxu0 0.0
    %2057 = vmatmul.mubr.f32.gmra.mrb[0].mxu0 %v1987
    %v2058 = vpop.f32.mrb[0].mxu0
    %v2059 = vadd.f32 %v1984, %v2058
    %v2060 = vpop.f32.mrb[0].mxu0
    %2061 = vmatprep.mubr.f32.mxu0 0.0
    %2062 = vmatmul.mubr.f32.gmra.mrb[0].mxu0 %v1990
    %v2063 = vpop.f32.mrb[0].mxu0
    %v2064 = vadd.f32 %v1984, %v2063
    %v2065 = vpop.f32.mrb[0].mxu0
    %2066 = vdwg.mxu0
    %2069 = vrot.lane.b32.xlu0 %v2059, 12
    %v2070 = vpop.permute.xlu0 %2069
    %2071 = vrot.lane.b32.xlu0 %v2064, 12
    %v2072 = vpop.permute.xlu0 %2071
    %2075 = vst.msk [vmem:[#allocation3] sm:$0xff] %vm823, %v2070
    %2076 = vst.msk [vmem:[#allocation3 + $0x8] sm:$0xff] %vm823, %v2072
    %v2077 = vsel %vm826, %v1542, %v1673
    %v2078 = vsel %vm826, %v1545, %v1676
    %v2079 = vsel %vm829, %v2077, %v1815
    %v2080 = vsel %vm829, %v2078, %v1818
    %v2081 = vsel %vm832, %v2079, %v1957
    %v2082 = vsel %vm832, %v2080, %v1960
    %v2083 = vsel %vm826, %v1558, %v1689
    %v2084 = vsel %vm826, %v1559, %v1690
    %v2085 = vsel %vm829, %v2083, %v1831
    %v2086 = vsel %vm829, %v2084, %v1832
    %v2087 = vsel %vm832, %v2085, %v1973
    %v2088 = vsel %vm832, %v2086, %v1974
    %2089 = vrot.lane.b32.xlu0 %v1477, 124
    %v2090 = vpop.permute.xlu0 %2089
    %2091 = vrot.lane.b32.xlu0 %v1482, 124
    %v2092 = vpop.permute.xlu0 %2091
    %2095 = vmatprep.subr.mxu0 0.0
    %2096 = vmatpush1.msra.mxu0 %v2090
    %2097 = vmatprep.subr.mxu0 0.0
    %2098 = vmatpush1.msra.mxu0 %v2092
    %2099 = vmatprep.subr.mxu0 0.0
    %2100 = vmatpush1.msra.mxu0 0.0
    %2101 = vmatprep.subr.mxu0 0.0
    %2102 = vmatpush1.msra.mxu0 0.0
    %2103 = vmatprep.subr.mxu0 0.0
    %2104 = vmatpush1.msra.mxu0 0.0
    %2105 = vmatprep.subr.mxu0 0.0
    %2106 = vmatpush1.msra.mxu0 0.0
    %2107 = vmatprep.subr.mxu0 0.0
    %2108 = vmatpush1.msra.mxu0 0.0
    %2109 = vmatprep.subr.mxu0 0.0
    %2110 = vmatpush1.msra.mxu0 0.0
    %2111 = vmatprep.subr.mxu0 0.0
    %2112 = vmatpush1.msra.mxu0 0.0
    %2113 = vmatprep.subr.mxu0 0.0
    %2114 = vmatpush1.msra.mxu0 0.0
    %2115 = vmatprep.subr.mxu0 0.0
    %2116 = vmatpush1.msra.mxu0 0.0
    %2117 = vmatprep.subr.mxu0 0.0
    %2118 = vmatpush1.msra.mxu0 0.0
    %2119 = vmatprep.subr.mxu0 0.0
    %2120 = vmatpush1.msra.mxu0 0.0
    %2121 = vmatprep.subr.mxu0 0.0
    %2122 = vmatpush1.msra.mxu0 0.0
    %2123 = vmatprep.subr.mxu0 0.0
    %2124 = vmatpush1.msra.mxu0 0.0
    %2125 = vmatprep.subr.mxu0 0.0
    %2126 = vmatpush1.msra.mxu0 0.0
    %2127 = vmatprep.subr.mxu0 0.0
    %2128 = vmatpush1.msra.mxu0 0.0
    %2129 = vmatprep.subr.mxu0 0.0
    %2130 = vmatpush1.msra.mxu0 0.0
    %2131 = vmatprep.subr.mxu0 0.0
    %2132 = vmatpush1.msra.mxu0 0.0
    %2133 = vmatprep.subr.mxu0 0.0
    %2134 = vmatpush1.msra.mxu0 0.0
    %2135 = vmatprep.subr.mxu0 0.0
    %2136 = vmatpush1.msra.mxu0 0.0
    %2137 = vmatprep.subr.mxu0 0.0
    %2138 = vmatpush1.msra.mxu0 0.0
    %2139 = vmatprep.subr.mxu0 0.0
    %2140 = vmatpush1.msra.mxu0 0.0
    %2141 = vmatprep.subr.mxu0 0.0
    %2142 = vmatpush1.msra.mxu0 0.0
    %2143 = vmatprep.subr.mxu0 0.0
    %2144 = vmatpush1.msra.mxu0 0.0
    %2145 = vmatprep.subr.mxu0 0.0
    %2146 = vmatpush1.msra.mxu0 0.0
    %2147 = vmatprep.subr.mxu0 0.0
    %2148 = vmatpush1.msra.mxu0 0.0
    %2149 = vmatprep.subr.mxu0 0.0
    %2150 = vmatpush1.msra.mxu0 0.0
    %2151 = vmatprep.subr.mxu0 0.0
    %2152 = vmatpush1.msra.mxu0 0.0
    %2153 = vmatprep.subr.mxu0 0.0
    %2154 = vmatpush1.msra.mxu0 0.0
    %2155 = vmatprep.subr.mxu0 0.0
    %2156 = vmatpush1.msra.mxu0 0.0
    %2157 = vmatprep.subr.mxu0 0.0
    %2158 = vmatpush1.msra.mxu0 0.0
    %2159 = vmatprep.mubr.f32.mxu0 0.0
    %2160 = vmatmul.mubr.f32.gmra.mrb[0].mxu0 %v848
    %v2161 = vpop.f32.mrb[0].mxu0
    %v2162 = vadd.f32 0.0, %v2161
    %v2163 = vpop.f32.mrb[0].mxu0
    %2164 = vmatprep.mubr.f32.mxu0 0.0
    %2165 = vmatmul.mubr.f32.gmra.mrb[0].mxu0 %v851
    %v2166 = vpop.f32.mrb[0].mxu0
    %v2167 = vadd.f32 0.0, %v2166
    %v2168 = vpop.f32.mrb[0].mxu0
    %2169 = vmatprep.mubr.f32.mxu0 0.0
    %2170 = vmatmul.mubr.f32.gmra.mrb[0].mxu0 %v854
    %v2171 = vpop.f32.mrb[0].mxu0
    %v2172 = vadd.f32 0.0, %v2171
    %v2173 = vpop.f32.mrb[0].mxu0
    %2174 = vmatprep.mubr.f32.mxu0 0.0
    %2175 = vmatmul.mubr.f32.gmra.mrb[0].mxu0 %v857
    %v2176 = vpop.f32.mrb[0].mxu0
    %v2177 = vadd.f32 0.0, %v2176
    %v2178 = vpop.f32.mrb[0].mxu0
    %2179 = vmatprep.mubr.f32.mxu0 0.0
    %2180 = vmatmul.mubr.f32.gmra.mrb[0].mxu0 %v860
    %v2181 = vpop.f32.mrb[0].mxu0
    %v2182 = vadd.f32 0.0, %v2181
    %v2183 = vpop.f32.mrb[0].mxu0
    %2184 = vmatprep.mubr.f32.mxu0 0.0
    %2185 = vmatmul.mubr.f32.gmra.mrb[0].mxu0 %v863
    %v2186 = vpop.f32.mrb[0].mxu0
    %v2187 = vadd.f32 0.0, %v2186
    %v2188 = vpop.f32.mrb[0].mxu0
    %2189 = vdwg.mxu0
    %2190 = vmatprep.subr.mxu0 0.0
    %2191 = vmatpush1.msra.mxu0 %v1477
    %2192 = vmatprep.subr.mxu0 0.0
    %2193 = vmatpush1.msra.mxu0 %v1482
    %2194 = vmatprep.subr.mxu0 0.0
    %2195 = vmatpush1.msra.mxu0 0.0
    %2196 = vmatprep.subr.mxu0 0.0
    %2197 = vmatpush1.msra.mxu0 0.0
    %2198 = vmatprep.subr.mxu0 0.0
    %2199 = vmatpush1.msra.mxu0 0.0
    %2200 = vmatprep.subr.mxu0 0.0
    %2201 = vmatpush1.msra.mxu0 0.0
    %2202 = vmatprep.subr.mxu0 0.0
    %2203 = vmatpush1.msra.mxu0 0.0
    %2204 = vmatprep.subr.mxu0 0.0
    %2205 = vmatpush1.msra.mxu0 0.0
    %2206 = vmatprep.subr.mxu0 0.0
    %2207 = vmatpush1.msra.mxu0 0.0
    %2208 = vmatprep.subr.mxu0 0.0
    %2209 = vmatpush1.msra.mxu0 0.0
    %2210 = vmatprep.subr.mxu0 0.0
    %2211 = vmatpush1.msra.mxu0 0.0
    %2212 = vmatprep.subr.mxu0 0.0
    %2213 = vmatpush1.msra.mxu0 0.0
    %2214 = vmatprep.subr.mxu0 0.0
    %2215 = vmatpush1.msra.mxu0 0.0
    %2216 = vmatprep.subr.mxu0 0.0
    %2217 = vmatpush1.msra.mxu0 0.0
    %2218 = vmatprep.subr.mxu0 0.0
    %2219 = vmatpush1.msra.mxu0 0.0
    %2220 = vmatprep.subr.mxu0 0.0
    %2221 = vmatpush1.msra.mxu0 0.0
    %2222 = vmatprep.subr.mxu0 0.0
    %2223 = vmatpush1.msra.mxu0 0.0
    %2224 = vmatprep.subr.mxu0 0.0
    %2225 = vmatpush1.msra.mxu0 0.0
    %2226 = vmatprep.subr.mxu0 0.0
    %2227 = vmatpush1.msra.mxu0 0.0
    %2228 = vmatprep.subr.mxu0 0.0
    %2229 = vmatpush1.msra.mxu0 0.0
    %2230 = vmatprep.subr.mxu0 0.0
    %2231 = vmatpush1.msra.mxu0 0.0
    %2232 = vmatprep.subr.mxu0 0.0
    %2233 = vmatpush1.msra.mxu0 0.0
    %2234 = vmatprep.subr.mxu0 0.0
    %2235 = vmatpush1.msra.mxu0 0.0
    %2236 = vmatprep.subr.mxu0 0.0
    %2237 = vmatpush1.msra.mxu0 0.0
    %2238 = vmatprep.subr.mxu0 0.0
    %2239 = vmatpush1.msra.mxu0 0.0
    %2240 = vmatprep.subr.mxu0 0.0
    %2241 = vmatpush1.msra.mxu0 0.0
    %2242 = vmatprep.subr.mxu0 0.0
    %2243 = vmatpush1.msra.mxu0 0.0
    %2244 = vmatprep.subr.mxu0 0.0
    %2245 = vmatpush1.msra.mxu0 0.0
    %2246 = vmatprep.subr.mxu0 0.0
    %2247 = vmatpush1.msra.mxu0 0.0
    %2248 = vmatprep.subr.mxu0 0.0
    %2249 = vmatpush1.msra.mxu0 0.0
    %2250 = vmatprep.subr.mxu0 0.0
    %2251 = vmatpush1.msra.mxu0 0.0
    %2252 = vmatprep.subr.mxu0 0.0
    %2253 = vmatpush1.msra.mxu0 0.0
    %2254 = vmatprep.mubr.f32.mxu0 0.0
    %2255 = vmatmul.mubr.f32.gmra.mrb[0].mxu0 %v961
    %v2256 = vpop.f32.mrb[0].mxu0
    %v2257 = vadd.f32 %v2162, %v2256
    %v2258 = vpop.f32.mrb[0].mxu0
    %2259 = vmatprep.mubr.f32.mxu0 0.0
    %2260 = vmatmul.mubr.f32.gmra.mrb[0].mxu0 %v964
    %v2261 = vpop.f32.mrb[0].mxu0
    %v2262 = vadd.f32 %v2167, %v2261
    %v2263 = vpop.f32.mrb[0].mxu0
    %2264 = vmatprep.mubr.f32.mxu0 0.0
    %2265 = vmatmul.mubr.f32.gmra.mrb[0].mxu0 %v967
    %v2266 = vpop.f32.mrb[0].mxu0
    %v2267 = vadd.f32 %v2172, %v2266
    %v2268 = vpop.f32.mrb[0].mxu0
    %2269 = vmatprep.mubr.f32.mxu0 0.0
    %2270 = vmatmul.mubr.f32.gmra.mrb[0].mxu0 %v970
    %v2271 = vpop.f32.mrb[0].mxu0
    %v2272 = vadd.f32 %v2177, %v2271
    %v2273 = vpop.f32.mrb[0].mxu0
    %2274 = vmatprep.mubr.f32.mxu0 0.0
    %2275 = vmatmul.mubr.f32.gmra.mrb[0].mxu0 %v973
    %v2276 = vpop.f32.mrb[0].mxu0
    %v2277 = vadd.f32 %v2182, %v2276
    %v2278 = vpop.f32.mrb[0].mxu0
    %2279 = vmatprep.mubr.f32.mxu0 0.0
    %2280 = vmatmul.mubr.f32.gmra.mrb[0].mxu0 %v976
    %v2281 = vpop.f32.mrb[0].mxu0
    %v2282 = vadd.f32 %v2187, %v2281
    %v2283 = vpop.f32.mrb[0].mxu0
    %2284 = vdwg.mxu0
    %v2285 = vmul.f32 %v2257, 0.2
    %v2286 = vmul.f32 %v2262, 0.2
    %v2287 = vmul.f32 %v2267, 0.2
    %v2288 = vmul.f32 %v2272, 0.2
    %v2289 = vmul.f32 %v2277, 0.2
    %v2290 = vmul.f32 %v2282, 0.2
    %v2291 = vmax.f32 %v2257, %v2285
    %v2292 = vmax.f32 %v2262, %v2286
    %v2293 = vmax.f32 %v2267, %v2287
    %v2294 = vmax.f32 %v2272, %v2288
    %v2295 = vmax.f32 %v2277, %v2289
    %v2296 = vmax.f32 %v2282, %v2290
    %2297 = vmatprep.subr.mxu0 0.0
    %2298 = vmatpush1.msra.mxu0 %v2081
    %2299 = vmatprep.subr.mxu0 0.0
    %2300 = vmatpush1.msra.mxu0 %v2082
    %2301 = vmatprep.subr.mxu0 0.0
    %2302 = vmatpush1.msra.mxu0 0.0
    %2303 = vmatprep.subr.mxu0 0.0
    %2304 = vmatpush1.msra.mxu0 0.0
    %2305 = vmatprep.subr.mxu0 0.0
    %2306 = vmatpush1.msra.mxu0 0.0
    %2307 = vmatprep.subr.mxu0 0.0
    %2308 = vmatpush1.msra.mxu0 0.0
    %2309 = vmatprep.subr.mxu0 0.0
    %2310 = vmatpush1.msra.mxu0 0.0
    %2311 = vmatprep.subr.mxu0 0.0
    %2312 = vmatpush1.msra.mxu0 0.0
    %2313 = vmatprep.subr.mxu0 0.0
    %2314 = vmatpush1.msra.mxu0 0.0
    %2315 = vmatprep.subr.mxu0 0.0
    %2316 = vmatpush1.msra.mxu0 0.0
    %2317 = vmatprep.subr.mxu0 0.0
    %2318 = vmatpush1.msra.mxu0 0.0
    %2319 = vmatprep.subr.mxu0 0.0
    %2320 = vmatpush1.msra.mxu0 0.0
    %2321 = vmatprep.subr.mxu0 0.0
    %2322 = vmatpush1.msra.mxu0 0.0
    %2323 = vmatprep.subr.mxu0 0.0
    %2324 = vmatpush1.msra.mxu0 0.0
    %2325 = vmatprep.subr.mxu0 0.0
    %2326 = vmatpush1.msra.mxu0 0.0
    %2327 = vmatprep.subr.mxu0 0.0
    %2328 = vmatpush1.msra.mxu0 0.0
    %2329 = vmatprep.subr.mxu0 0.0
    %2330 = vmatpush1.msra.mxu0 0.0
    %2331 = vmatprep.subr.mxu0 0.0
    %2332 = vmatpush1.msra.mxu0 0.0
    %2333 = vmatprep.subr.mxu0 0.0
    %2334 = vmatpush1.msra.mxu0 0.0
    %2335 = vmatprep.subr.mxu0 0.0
    %2336 = vmatpush1.msra.mxu0 0.0
    %2337 = vmatprep.subr.mxu0 0.0
    %2338 = vmatpush1.msra.mxu0 0.0
    %2339 = vmatprep.subr.mxu0 0.0
    %2340 = vmatpush1.msra.mxu0 0.0
    %2341 = vmatprep.subr.mxu0 0.0
    %2342 = vmatpush1.msra.mxu0 0.0
    %2343 = vmatprep.subr.mxu0 0.0
    %2344 = vmatpush1.msra.mxu0 0.0
    %2345 = vmatprep.subr.mxu0 0.0
    %2346 = vmatpush1.msra.mxu0 0.0
    %2347 = vmatprep.subr.mxu0 0.0
    %2348 = vmatpush1.msra.mxu0 0.0
    %2349 = vmatprep.subr.mxu0 0.0
    %2350 = vmatpush1.msra.mxu0 0.0
    %2351 = vmatprep.subr.mxu0 0.0
    %2352 = vmatpush1.msra.mxu0 0.0
    %2353 = vmatprep.subr.mxu0 0.0
    %2354 = vmatpush1.msra.mxu0 0.0
    %2355 = vmatprep.subr.mxu0 0.0
    %2356 = vmatpush1.msra.mxu0 0.0
    %2357 = vmatprep.subr.mxu0 0.0
    %2358 = vmatpush1.msra.mxu0 0.0
    %2359 = vmatprep.subr.mxu0 0.0
    %2360 = vmatpush1.msra.mxu0 0.0
    %2361 = vmatprep.mubr.f32.mxu0 0.0
    %2362 = vmatmul.mubr.f32.gmra.mrb[0].mxu0 %v848
    %v2363 = vpop.f32.mrb[0].mxu0
    %v2364 = vadd.f32 0.0, %v2363
    %v2365 = vpop.f32.mrb[0].mxu0
    %2366 = vmatprep.mubr.f32.mxu0 0.0
    %2367 = vmatmul.mubr.f32.gmra.mrb[0].mxu0 %v851
    %v2368 = vpop.f32.mrb[0].mxu0
    %v2369 = vadd.f32 0.0, %v2368
    %v2370 = vpop.f32.mrb[0].mxu0
    %2371 = vmatprep.mubr.f32.mxu0 0.0
    %2372 = vmatmul.mubr.f32.gmra.mrb[0].mxu0 %v854
    %v2373 = vpop.f32.mrb[0].mxu0
    %v2374 = vadd.f32 0.0, %v2373
    %v2375 = vpop.f32.mrb[0].mxu0
    %2376 = vmatprep.mubr.f32.mxu0 0.0
    %2377 = vmatmul.mubr.f32.gmra.mrb[0].mxu0 %v857
    %v2378 = vpop.f32.mrb[0].mxu0
    %v2379 = vadd.f32 0.0, %v2378
    %v2380 = vpop.f32.mrb[0].mxu0
    %2381 = vmatprep.mubr.f32.mxu0 0.0
    %2382 = vmatmul.mubr.f32.gmra.mrb[0].mxu0 %v860
    %v2383 = vpop.f32.mrb[0].mxu0
    %v2384 = vadd.f32 0.0, %v2383
    %v2385 = vpop.f32.mrb[0].mxu0
    %2386 = vmatprep.mubr.f32.mxu0 0.0
    %2387 = vmatmul.mubr.f32.gmra.mrb[0].mxu0 %v863
    %v2388 = vpop.f32.mrb[0].mxu0
    %v2389 = vadd.f32 0.0, %v2388
    %v2390 = vpop.f32.mrb[0].mxu0
    %2391 = vdwg.mxu0
    %v2392 = vsub.f32 %v2291, %v2364
    %v2393 = vsub.f32 %v2292, %v2369
    %v2394 = vsub.f32 %v2293, %v2374
    %v2395 = vsub.f32 %v2294, %v2379
    %v2396 = vsub.f32 %v2295, %v2384
    %v2397 = vsub.f32 %v2296, %v2389
    %v2398 = vmul.f32 %v2392, 1.442695
    %v2399 = vpow.pop %v2398
    %v2400 = vmul.f32 %v2393, 1.442695
    %v2401 = vpow.pop %v2400
    %v2402 = vmul.f32 %v2394, 1.442695
    %v2403 = vpow.pop %v2402
    %v2404 = vmul.f32 %v2395, 1.442695
    %v2405 = vpow.pop %v2404
    %v2406 = vmul.f32 %v2396, 1.442695
    %v2407 = vpow.pop %v2406
    %v2408 = vmul.f32 %v2397, 1.442695
    %v2409 = vpow.pop %v2408
    %2410 = vmatprep.subr.mxu0 0.0
    %2411 = vmatpush1.msra.mxu0 %v2087
    %2412 = vmatprep.subr.mxu0 0.0
    %2413 = vmatpush1.msra.mxu0 %v2088
    %2414 = vmatprep.subr.mxu0 0.0
    %2415 = vmatpush1.msra.mxu0 0.0
    %2416 = vmatprep.subr.mxu0 0.0
    %2417 = vmatpush1.msra.mxu0 0.0
    %2418 = vmatprep.subr.mxu0 0.0
    %2419 = vmatpush1.msra.mxu0 0.0
    %2420 = vmatprep.subr.mxu0 0.0
    %2421 = vmatpush1.msra.mxu0 0.0
    %2422 = vmatprep.subr.mxu0 0.0
    %2423 = vmatpush1.msra.mxu0 0.0
    %2424 = vmatprep.subr.mxu0 0.0
    %2425 = vmatpush1.msra.mxu0 0.0
    %2426 = vmatprep.subr.mxu0 0.0
    %2427 = vmatpush1.msra.mxu0 0.0
    %2428 = vmatprep.subr.mxu0 0.0
    %2429 = vmatpush1.msra.mxu0 0.0
    %2430 = vmatprep.subr.mxu0 0.0
    %2431 = vmatpush1.msra.mxu0 0.0
    %2432 = vmatprep.subr.mxu0 0.0
    %2433 = vmatpush1.msra.mxu0 0.0
    %2434 = vmatprep.subr.mxu0 0.0
    %2435 = vmatpush1.msra.mxu0 0.0
    %2436 = vmatprep.subr.mxu0 0.0
    %2437 = vmatpush1.msra.mxu0 0.0
    %2438 = vmatprep.subr.mxu0 0.0
    %2439 = vmatpush1.msra.mxu0 0.0
    %2440 = vmatprep.subr.mxu0 0.0
    %2441 = vmatpush1.msra.mxu0 0.0
    %2442 = vmatprep.subr.mxu0 0.0
    %2443 = vmatpush1.msra.mxu0 0.0
    %2444 = vmatprep.subr.mxu0 0.0
    %2445 = vmatpush1.msra.mxu0 0.0
    %2446 = vmatprep.subr.mxu0 0.0
    %2447 = vmatpush1.msra.mxu0 0.0
    %2448 = vmatprep.subr.mxu0 0.0
    %2449 = vmatpush1.msra.mxu0 0.0
    %2450 = vmatprep.subr.mxu0 0.0
    %2451 = vmatpush1.msra.mxu0 0.0
    %2452 = vmatprep.subr.mxu0 0.0
    %2453 = vmatpush1.msra.mxu0 0.0
    %2454 = vmatprep.subr.mxu0 0.0
    %2455 = vmatpush1.msra.mxu0 0.0
    %2456 = vmatprep.subr.mxu0 0.0
    %2457 = vmatpush1.msra.mxu0 0.0
    %2458 = vmatprep.subr.mxu0 0.0
    %2459 = vmatpush1.msra.mxu0 0.0
    %2460 = vmatprep.subr.mxu0 0.0
    %2461 = vmatpush1.msra.mxu0 0.0
    %2462 = vmatprep.subr.mxu0 0.0
    %2463 = vmatpush1.msra.mxu0 0.0
    %2464 = vmatprep.subr.mxu0 0.0
    %2465 = vmatpush1.msra.mxu0 0.0
    %2466 = vmatprep.subr.mxu0 0.0
    %2467 = vmatpush1.msra.mxu0 0.0
    %2468 = vmatprep.subr.mxu0 0.0
    %2469 = vmatpush1.msra.mxu0 0.0
    %2470 = vmatprep.subr.mxu0 0.0
    %2471 = vmatpush1.msra.mxu0 0.0
    %2472 = vmatprep.subr.mxu0 0.0
    %2473 = vmatpush1.msra.mxu0 0.0
    %2474 = vmatprep.mubr.f32.mxu0 0.0
    %2475 = vmatmul.mubr.f32.gmra.mrb[0].mxu0 %v848
    %v2476 = vpop.f32.mrb[0].mxu0
    %v2477 = vadd.f32 0.0, %v2476
    %v2478 = vpop.f32.mrb[0].mxu0
    %2479 = vmatprep.mubr.f32.mxu0 0.0
    %2480 = vmatmul.mubr.f32.gmra.mrb[0].mxu0 %v851
    %v2481 = vpop.f32.mrb[0].mxu0
    %v2482 = vadd.f32 0.0, %v2481
    %v2483 = vpop.f32.mrb[0].mxu0
    %2484 = vmatprep.mubr.f32.mxu0 0.0
    %2485 = vmatmul.mubr.f32.gmra.mrb[0].mxu0 %v854
    %v2486 = vpop.f32.mrb[0].mxu0
    %v2487 = vadd.f32 0.0, %v2486
    %v2488 = vpop.f32.mrb[0].mxu0
    %2489 = vmatprep.mubr.f32.mxu0 0.0
    %2490 = vmatmul.mubr.f32.gmra.mrb[0].mxu0 %v857
    %v2491 = vpop.f32.mrb[0].mxu0
    %v2492 = vadd.f32 0.0, %v2491
    %v2493 = vpop.f32.mrb[0].mxu0
    %2494 = vmatprep.mubr.f32.mxu0 0.0
    %2495 = vmatmul.mubr.f32.gmra.mrb[0].mxu0 %v860
    %v2496 = vpop.f32.mrb[0].mxu0
    %v2497 = vadd.f32 0.0, %v2496
    %v2498 = vpop.f32.mrb[0].mxu0
    %2499 = vmatprep.mubr.f32.mxu0 0.0
    %2500 = vmatmul.mubr.f32.gmra.mrb[0].mxu0 %v863
    %v2501 = vpop.f32.mrb[0].mxu0
    %v2502 = vadd.f32 0.0, %v2501
    %v2503 = vpop.f32.mrb[0].mxu0
    %2504 = vdwg.mxu0
    %v2505 = vmul.f32 %v2399, %v2477
    %v2506 = vmul.f32 %v2401, %v2482
    %v2507 = vmul.f32 %v2403, %v2487
    %v2508 = vmul.f32 %v2405, %v2492
    %v2509 = vmul.f32 %v2407, %v2497
    %v2510 = vmul.f32 %v2409, %v2502
    %2511 = vst.msk [vmem:[%s24] sm:$0xff] %vm394, %v2505
    %2512 = vst.msk [vmem:[%s24 + $0x8] sm:$0xff] %vm394, %v2506
    %2513 = vst.msk [vmem:[%s24 + $0x10] sm:$0xff] %vm394, %v2507
    %2514 = vst.msk [vmem:[%s24 + $0x18] sm:$0xff] %vm394, %v2508
    %2515 = vst.msk [vmem:[%s24 + $0x20] sm:$0xff] %vm394, %v2509
    %2516 = vst.msk [vmem:[%s24 + $0x28] sm:$0xff] %vm394, %v2510
    %v2517 = vld [vmem:[#allocation3] sm:$0xff]
    %v2518 = vld [vmem:[#allocation3 + $0x8] sm:$0xff]
    %v2519 = vld [vmem:[%s13] sm:$0x1]
    %v2520 = vld [vmem:[%s14] sm:$0x1]
    %v2521 = vsel %vm148, %v2517, 0.0
    %2522 = vadd.xlane.f32.xlu0 %v2521
    %v2523 = vpop.xlane.xlu0 %2522
    %v2524 = vsel %vm148, %v2518, 0.0
    %2525 = vadd.xlane.f32.xlu0 %v2524
    %v2526 = vpop.xlane.xlu0 %2525
    %v2527 = vmul.f32 %v2523, %v1315
    %v2528 = vmul.f32 %v2526, %v1315
    %v2529 = vsub.f32 %v2517, %v2527
    %v2530 = vsub.f32 %v2518, %v2528
    %v2531 = vmul.f32 %v2529, %v2529
    %v2532 = vmul.f32 %v2530, %v2530
    %v2533 = vsel %vm148, %v2531, 0.0
    %2534 = vadd.xlane.f32.xlu0 %v2533
    %v2535 = vpop.xlane.xlu0 %2534
    %v2536 = vsel %vm148, %v2532, 0.0
    %2537 = vadd.xlane.f32.xlu0 %v2536
    %v2538 = vpop.xlane.xlu0 %2537
    %v2539 = vmul.f32 %v2535, %v1315
    %v2540 = vmul.f32 %v2538, %v1315
    %v2541 = vadd.f32 %v2539, 1e-05
    %v2542 = vadd.f32 %v2540, 1e-05
    %v2543 = vrsqrt.pop %v2541
    %v2544 = vrsqrt.pop %v2542
    %v2545 = vmul.f32 %v2529, %v2543
    %v2546 = vmul.f32 %v2530, %v2544
    %v2548 = vlaneseq
    %v2549 = vshrl.u32 %v2548, 7
    %v2550 = vsub.s32 0, %v2549
    %v2551 = vrot.slane %v2519, %v2550
    %v2553 = vmul.f32 %v2545, %v2551
    %v2554 = vmul.f32 %v2546, %v2551
    %v2556 = vlaneseq
    %v2557 = vshrl.u32 %v2556, 7
    %v2558 = vsub.s32 0, %v2557
    %v2559 = vrot.slane %v2520, %v2558
    %v2561 = vadd.f32 %v2553, %v2559
    %v2562 = vadd.f32 %v2554, %v2559
    %v2563 = vmax.f32 %v2561, 0.0
    %v2564 = vmax.f32 %v2562, 0.0
    %v2565 = vld [vmem:[%s15] sm:$0xff]
    %v2566 = vld [vmem:[%s15 + $0x8] sm:$0xff]
    %v2567 = vpack.c.bf16 %v2564, %v2563
    %v2568 = vpack.c.bf16 %v2566, %v2565
    %v2570 = vsel %vm148, %v2567, 0
    %2572 = vmatprep.subr.bf16.mxu0 0
    %2573 = vmatpush1.bf16.msra.mxu0 %v2568
    %2574 = vmatprep.subr.bf16.mxu0 0
    %2575 = vmatpush1.bf16.msra.mxu0 0
    %2576 = vmatprep.subr.bf16.mxu0 0
    %2577 = vmatpush1.bf16.msra.mxu0 0
    %2578 = vmatprep.subr.bf16.mxu0 0
    %2579 = vmatpush1.bf16.msra.mxu0 0
    %2580 = vmatprep.subr.bf16.mxu0 0
    %2581 = vmatpush1.bf16.msra.mxu0 0
    %2582 = vmatprep.subr.bf16.mxu0 0
    %2583 = vmatpush1.bf16.msra.mxu0 0
    %2584 = vmatprep.subr.bf16.mxu0 0
    %2585 = vmatpush1.bf16.msra.mxu0 0
    %2586 = vmatprep.subr.bf16.mxu0 0
    %2587 = vmatpush1.bf16.msra.mxu0 0
    %2588 = vmatprep.subr.bf16.mxu0 0
    %2589 = vmatpush1.bf16.msra.mxu0 0
    %2590 = vmatprep.subr.bf16.mxu0 0
    %2591 = vmatpush1.bf16.msra.mxu0 0
    %2592 = vmatprep.subr.bf16.mxu0 0
    %2593 = vmatpush1.bf16.msra.mxu0 0
    %2594 = vmatprep.subr.bf16.mxu0 0
    %2595 = vmatpush1.bf16.msra.mxu0 0
    %2596 = vmatprep.subr.bf16.mxu0 0
    %2597 = vmatpush1.bf16.msra.mxu0 0
    %2598 = vmatprep.subr.bf16.mxu0 0
    %2599 = vmatpush1.bf16.msra.mxu0 0
    %2600 = vmatprep.subr.bf16.mxu0 0
    %2601 = vmatpush1.bf16.msra.mxu0 0
    %2602 = vmatprep.subr.bf16.mxu0 0
    %2603 = vmatpush1.bf16.msra.mxu0 0
    %2604 = vmatprep.mubr.bf16.mxu0 0
    %2605 = vmatmul.mubr.bf16.gmra.mrb[0].mxu0 %v2570
    %v2606 = vpop.f32.mrb[0].mxu0
    %v2607 = vadd.f32 0.0, %v2606
    %v2608 = vpop.f32.mrb[0].mxu0
    %v2609 = vpop.f32.mrb[0].mxu0
    %v2610 = vadd.f32 0.0, %v2609
    %v2611 = vpop.f32.mrb[0].mxu0
    %2612 = vdwg.mxu0
    %v2613 = vld [vmem:[%s16] sm:$0xff]
    %v2614 = vld [vmem:[%s16 + $0x8] sm:$0xf]
    %v2616 = vsel %vm97, %v2607, 0
    %v2619 = vsel %vm97, %v2610, 0
    %vm2621 = vcmask 1043456
    %v2623 = vsel %vm2621, %v2614, 0
    %2625 = vmatprep.subr.mxu0 0.0
    %2626 = vmatpush1.msra.mxu0 %v2613
    %2627 = vmatprep.subr.mxu0 0.0
    %2628 = vmatpush1.msra.mxu0 %v2623
    %2629 = vmatprep.subr.mxu0 0.0
    %2630 = vmatpush1.msra.mxu0 0.0
    %2631 = vmatprep.subr.mxu0 0.0
    %2632 = vmatpush1.msra.mxu0 0.0
    %2633 = vmatprep.subr.mxu0 0.0
    %2634 = vmatpush1.msra.mxu0 0.0
    %2635 = vmatprep.subr.mxu0 0.0
    %2636 = vmatpush1.msra.mxu0 0.0
    %2637 = vmatprep.subr.mxu0 0.0
    %2638 = vmatpush1.msra.mxu0 0.0
    %2639 = vmatprep.subr.mxu0 0.0
    %2640 = vmatpush1.msra.mxu0 0.0
    %2641 = vmatprep.subr.mxu0 0.0
    %2642 = vmatpush1.msra.mxu0 0.0
    %2643 = vmatprep.subr.mxu0 0.0
    %2644 = vmatpush1.msra.mxu0 0.0
    %2645 = vmatprep.subr.mxu0 0.0
    %2646 = vmatpush1.msra.mxu0 0.0
    %2647 = vmatprep.subr.mxu0 0.0
    %2648 = vmatpush1.msra.mxu0 0.0
    %2649 = vmatprep.subr.mxu0 0.0
    %2650 = vmatpush1.msra.mxu0 0.0
    %2651 = vmatprep.subr.mxu0 0.0
    %2652 = vmatpush1.msra.mxu0 0.0
    %2653 = vmatprep.subr.mxu0 0.0
    %2654 = vmatpush1.msra.mxu0 0.0
    %2655 = vmatprep.subr.mxu0 0.0
    %2656 = vmatpush1.msra.mxu0 0.0
    %2657 = vmatprep.subr.mxu0 0.0
    %2658 = vmatpush1.msra.mxu0 0.0
    %2659 = vmatprep.subr.mxu0 0.0
    %2660 = vmatpush1.msra.mxu0 0.0
    %2661 = vmatprep.subr.mxu0 0.0
    %2662 = vmatpush1.msra.mxu0 0.0
    %2663 = vmatprep.subr.mxu0 0.0
    %2664 = vmatpush1.msra.mxu0 0.0
    %2665 = vmatprep.subr.mxu0 0.0
    %2666 = vmatpush1.msra.mxu0 0.0
    %2667 = vmatprep.subr.mxu0 0.0
    %2668 = vmatpush1.msra.mxu0 0.0
    %2669 = vmatprep.subr.mxu0 0.0
    %2670 = vmatpush1.msra.mxu0 0.0
    %2671 = vmatprep.subr.mxu0 0.0
    %2672 = vmatpush1.msra.mxu0 0.0
    %2673 = vmatprep.subr.mxu0 0.0
    %2674 = vmatpush1.msra.mxu0 0.0
    %2675 = vmatprep.subr.mxu0 0.0
    %2676 = vmatpush1.msra.mxu0 0.0
    %2677 = vmatprep.subr.mxu0 0.0
    %2678 = vmatpush1.msra.mxu0 0.0
    %2679 = vmatprep.subr.mxu0 0.0
    %2680 = vmatpush1.msra.mxu0 0.0
    %2681 = vmatprep.subr.mxu0 0.0
    %2682 = vmatpush1.msra.mxu0 0.0
    %2683 = vmatprep.subr.mxu0 0.0
    %2684 = vmatpush1.msra.mxu0 0.0
    %2685 = vmatprep.subr.mxu0 0.0
    %2686 = vmatpush1.msra.mxu0 0.0
    %2687 = vmatprep.subr.mxu0 0.0
    %2688 = vmatpush1.msra.mxu0 0.0
    %2689 = vmatprep.mubr.f32.mxu0 0.0
    %2690 = vmatmul.mubr.f32.gmra.mrb[0].mxu0 %v2616
    %v2691 = vpop.f32.mrb[0].mxu0
    %v2692 = vadd.f32 0.0, %v2691
    %v2693 = vpop.f32.mrb[0].mxu0
    %2694 = vmatprep.mubr.f32.mxu0 0.0
    %2695 = vmatmul.mubr.f32.gmra.mrb[0].mxu0 %v2619
    %v2696 = vpop.f32.mrb[0].mxu0
    %v2697 = vadd.f32 0.0, %v2696
    %v2698 = vpop.f32.mrb[0].mxu0
    %2699 = vdwg.mxu0
    %2700 = vxpose.xlu0.b32.start [1/16] %v2692, 128
    %2701 = vxpose.xlu0.b32.cont [2/16] %v2697, 128
    %2702 = vxpose.xlu0.b32.cont [3/16] 0.0, 128
    %2703 = vxpose.xlu0.b32.cont [4/16] 0.0, 128
    %2704 = vxpose.xlu0.b32.cont [5/16] 0.0, 128
    %2705 = vxpose.xlu0.b32.cont [6/16] 0.0, 128
    %2706 = vxpose.xlu0.b32.cont [7/16] 0.0, 128
    %2707 = vxpose.xlu0.b32.cont [8/16] 0.0, 128
    %2708 = vxpose.xlu0.b32.cont [9/16] 0.0, 128
    %2709 = vxpose.xlu0.b32.cont [10/16] 0.0, 128
    %2710 = vxpose.xlu0.b32.cont [11/16] 0.0, 128
    %2711 = vxpose.xlu0.b32.cont [12/16] 0.0, 128
    %2712 = vxpose.xlu0.b32.cont [13/16] 0.0, 128
    %2713 = vxpose.xlu0.b32.cont [14/16] 0.0, 128
    %2714 = vxpose.xlu0.b32.cont [15/16] 0.0, 128
    %2715 = vxpose.xlu0.b32.end [16/16] 0.0, 128
    %v2716 = vpop.trf.xlu0
    %v2717 = vpop.trf.xlu0
    %v2718 = vpop.trf.xlu0
    %v2719 = vpop.trf.xlu0
    %v2720 = vpop.trf.xlu0
    %v2721 = vpop.trf.xlu0
    %v2722 = vpop.trf.xlu0
    %v2723 = vpop.trf.xlu0
    %v2724 = vpop.trf.xlu0
    %v2725 = vpop.trf.xlu0
    %v2726 = vpop.trf.xlu0
    %v2727 = vpop.trf.xlu0
    %v2728 = vpop.trf.xlu0
    %v2729 = vpop.trf.xlu0
    %v2730 = vpop.trf.xlu0
    %v2731 = vpop.trf.xlu0
    %v2732 = vld [vmem:[%s17] sm:$0x1]
    %2734 = vset.pattern.permute.xlu0 6
    %2735 = vperm.xlu0 %2734, %v2692
    %v2736 = vpop.permute.xlu0 %2735
    %2739 = vset.pattern.permute.xlu0 6
    %2740 = vperm.xlu0 %2739, %v2697
    %v2741 = vpop.permute.xlu0 %2740
    %v2743 = vlaneseq
    %v2744 = vshrl.u32 %v2743, 7
    %v2745 = vsub.s32 0, %v2744
    %v2746 = vrot.slane %v2716, %v2745
    %v2747 = vadd.f32 %v2736, %v2746
    %v2748 = vadd.f32 %v2741, %v2746
    %v2749 = vmul.f32 %v2747, 0.2
    %v2750 = vmul.f32 %v2748, 0.2
    %v2751 = vmax.f32 %v2747, %v2749
    %v2752 = vmax.f32 %v2748, %v2750
    %v2753 = vadd.f32 %v2751, %v77
    %v2754 = vadd.f32 %v2752, %v78
    %v2755 = vsel %vm148, %v2753, -inf
    %2756 = vmax.xlane.f32.xlu0 %v2755
    %v2757 = vpop.xlane.xlu0 %2756
    %v2758 = vsel %vm148, %v2754, -inf
    %2759 = vmax.xlane.f32.xlu0 %v2758
    %v2760 = vpop.xlane.xlu0 %2759
    %v2761 = vsub.f32 %v2753, %v2757
    %v2762 = vsub.f32 %v2754, %v2760
    %v2763 = vmul.f32 %v2761, 1.442695
    %v2764 = vpow.pop %v2763
    %v2765 = vmul.f32 %v2762, 1.442695
    %v2766 = vpow.pop %v2765
    %v2767 = vsel %vm148, %v2764, 0.0
    %2768 = vadd.xlane.f32.xlu0 %v2767
    %v2769 = vpop.xlane.xlu0 %2768
    %v2770 = vsel %vm148, %v2766, 0.0
    %2771 = vadd.xlane.f32.xlu0 %v2770
    %v2772 = vpop.xlane.xlu0 %2771
    %v2773 = vrcp.pop %v2769
    %v2774 = vrcp.pop %v2772
    %v2775 = vmul.f32 %v2764, %v2773
    %v2776 = vmul.f32 %v2766, %v2774
    %v2778 = vlaneseq
    %v2779 = vshrl.u32 %v2778, 7
    %v2780 = vsub.s32 0, %v2779
    %v2781 = vrot.slane %v2732, %v2780
    %v2784 = vsel %vm148, %v2775, 0
    %v2787 = vsel %vm148, %v2776, 0
    %2789 = vmatprep.subr.mxu0 0.0
    %2790 = vmatpush1.msra.mxu0 %v2607
    %2791 = vmatprep.subr.mxu0 0.0
    %2792 = vmatpush1.msra.mxu0 %v2610
    %2793 = vmatprep.subr.mxu0 0.0
    %2794 = vmatpush1.msra.mxu0 0.0
    %2795 = vmatprep.subr.mxu0 0.0
    %2796 = vmatpush1.msra.mxu0 0.0
    %2797 = vmatprep.subr.mxu0 0.0
    %2798 = vmatpush1.msra.mxu0 0.0
    %2799 = vmatprep.subr.mxu0 0.0
    %2800 = vmatpush1.msra.mxu0 0.0
    %2801 = vmatprep.subr.mxu0 0.0
    %2802 = vmatpush1.msra.mxu0 0.0
    %2803 = vmatprep.subr.mxu0 0.0
    %2804 = vmatpush1.msra.mxu0 0.0
    %2805 = vmatprep.subr.mxu0 0.0
    %2806 = vmatpush1.msra.mxu0 0.0
    %2807 = vmatprep.subr.mxu0 0.0
    %2808 = vmatpush1.msra.mxu0 0.0
    %2809 = vmatprep.subr.mxu0 0.0
    %2810 = vmatpush1.msra.mxu0 0.0
    %2811 = vmatprep.subr.mxu0 0.0
    %2812 = vmatpush1.msra.mxu0 0.0
    %2813 = vmatprep.subr.mxu0 0.0
    %2814 = vmatpush1.msra.mxu0 0.0
    %2815 = vmatprep.subr.mxu0 0.0
    %2816 = vmatpush1.msra.mxu0 0.0
    %2817 = vmatprep.subr.mxu0 0.0
    %2818 = vmatpush1.msra.mxu0 0.0
    %2819 = vmatprep.subr.mxu0 0.0
    %2820 = vmatpush1.msra.mxu0 0.0
    %2821 = vmatprep.subr.mxu0 0.0
    %2822 = vmatpush1.msra.mxu0 0.0
    %2823 = vmatprep.subr.mxu0 0.0
    %2824 = vmatpush1.msra.mxu0 0.0
    %2825 = vmatprep.subr.mxu0 0.0
    %2826 = vmatpush1.msra.mxu0 0.0
    %2827 = vmatprep.subr.mxu0 0.0
    %2828 = vmatpush1.msra.mxu0 0.0
    %2829 = vmatprep.subr.mxu0 0.0
    %2830 = vmatpush1.msra.mxu0 0.0
    %2831 = vmatprep.subr.mxu0 0.0
    %2832 = vmatpush1.msra.mxu0 0.0
    %2833 = vmatprep.subr.mxu0 0.0
    %2834 = vmatpush1.msra.mxu0 0.0
    %2835 = vmatprep.subr.mxu0 0.0
    %2836 = vmatpush1.msra.mxu0 0.0
    %2837 = vmatprep.subr.mxu0 0.0
    %2838 = vmatpush1.msra.mxu0 0.0
    %2839 = vmatprep.subr.mxu0 0.0
    %2840 = vmatpush1.msra.mxu0 0.0
    %2841 = vmatprep.subr.mxu0 0.0
    %2842 = vmatpush1.msra.mxu0 0.0
    %2843 = vmatprep.subr.mxu0 0.0
    %2844 = vmatpush1.msra.mxu0 0.0
    %2845 = vmatprep.subr.mxu0 0.0
    %2846 = vmatpush1.msra.mxu0 0.0
    %2847 = vmatprep.subr.mxu0 0.0
    %2848 = vmatpush1.msra.mxu0 0.0
    %2849 = vmatprep.subr.mxu0 0.0
    %2850 = vmatpush1.msra.mxu0 0.0
    %2851 = vmatprep.subr.mxu0 0.0
    %2852 = vmatpush1.msra.mxu0 0.0
    %2853 = vmatprep.mubr.f32.mxu0 0.0
    %2854 = vmatmul.mubr.f32.gmra.mrb[0].mxu0 %v2784
    %v2855 = vpop.f32.mrb[0].mxu0
    %v2856 = vadd.f32 %v2781, %v2855
    %v2857 = vpop.f32.mrb[0].mxu0
    %2858 = vmatprep.mubr.f32.mxu0 0.0
    %2859 = vmatmul.mubr.f32.gmra.mrb[0].mxu0 %v2787
    %v2860 = vpop.f32.mrb[0].mxu0
    %v2861 = vadd.f32 %v2781, %v2860
    %v2862 = vpop.f32.mrb[0].mxu0
    %2863 = vdwg.mxu0
    %2864 = vst.msk [vmem:[#allocation4] sm:$0xff] %vm829, %v2856
    %2865 = vst.msk [vmem:[#allocation4 + $0x8] sm:$0xff] %vm829, %v2861
    %2866 = vset.pattern.permute.xlu0 7
    %2867 = vperm.xlu0 %2866, %v2692
    %v2868 = vpop.permute.xlu0 %2867
    %2870 = vset.pattern.permute.xlu0 7
    %2871 = vperm.xlu0 %2870, %v2697
    %v2872 = vpop.permute.xlu0 %2871
    %v2874 = vlaneseq
    %v2875 = vshrl.u32 %v2874, 7
    %v2876 = vsub.s32 1, %v2875
    %v2877 = vrot.slane %v2716, %v2876
    %v2878 = vadd.f32 %v2868, %v2877
    %v2879 = vadd.f32 %v2872, %v2877
    %v2880 = vmul.f32 %v2878, 0.2
    %v2881 = vmul.f32 %v2879, 0.2
    %v2882 = vmax.f32 %v2878, %v2880
    %v2883 = vmax.f32 %v2879, %v2881
    %v2884 = vadd.f32 %v2882, %v77
    %v2885 = vadd.f32 %v2883, %v78
    %v2886 = vsel %vm148, %v2884, -inf
    %2887 = vmax.xlane.f32.xlu0 %v2886
    %v2888 = vpop.xlane.xlu0 %2887
    %v2889 = vsel %vm148, %v2885, -inf
    %2890 = vmax.xlane.f32.xlu0 %v2889
    %v2891 = vpop.xlane.xlu0 %2890
    %v2892 = vsub.f32 %v2884, %v2888
    %v2893 = vsub.f32 %v2885, %v2891
    %v2894 = vmul.f32 %v2892, 1.442695
    %v2895 = vpow.pop %v2894
    %v2896 = vmul.f32 %v2893, 1.442695
    %v2897 = vpow.pop %v2896
    %v2898 = vsel %vm148, %v2895, 0.0
    %2899 = vadd.xlane.f32.xlu0 %v2898
    %v2900 = vpop.xlane.xlu0 %2899
    %v2901 = vsel %vm148, %v2897, 0.0
    %2902 = vadd.xlane.f32.xlu0 %v2901
    %v2903 = vpop.xlane.xlu0 %2902
    %v2904 = vrcp.pop %v2900
    %v2905 = vrcp.pop %v2903
    %v2906 = vmul.f32 %v2895, %v2904
    %v2907 = vmul.f32 %v2897, %v2905
    %2908 = vrot.lane.b32.xlu0 %v2607, 126
    %v2909 = vpop.permute.xlu0 %2908
    %2910 = vrot.lane.b32.xlu0 %v2610, 126
    %v2911 = vpop.permute.xlu0 %2910
    %2914 = vrot.lane.b32.xlu0 %v2781, 126
    %v2915 = vpop.permute.xlu0 %2914
    %v2918 = vsel %vm148, %v2906, 0
    %v2921 = vsel %vm148, %v2907, 0
    %2923 = vmatprep.subr.mxu0 0.0
    %2924 = vmatpush1.msra.mxu0 %v2909
    %2925 = vmatprep.subr.mxu0 0.0
    %2926 = vmatpush1.msra.mxu0 %v2911
    %2927 = vmatprep.subr.mxu0 0.0
    %2928 = vmatpush1.msra.mxu0 0.0
    %2929 = vmatprep.subr.mxu0 0.0
    %2930 = vmatpush1.msra.mxu0 0.0
    %2931 = vmatprep.subr.mxu0 0.0
    %2932 = vmatpush1.msra.mxu0 0.0
    %2933 = vmatprep.subr.mxu0 0.0
    %2934 = vmatpush1.msra.mxu0 0.0
    %2935 = vmatprep.subr.mxu0 0.0
    %2936 = vmatpush1.msra.mxu0 0.0
    %2937 = vmatprep.subr.mxu0 0.0
    %2938 = vmatpush1.msra.mxu0 0.0
    %2939 = vmatprep.subr.mxu0 0.0
    %2940 = vmatpush1.msra.mxu0 0.0
    %2941 = vmatprep.subr.mxu0 0.0
    %2942 = vmatpush1.msra.mxu0 0.0
    %2943 = vmatprep.subr.mxu0 0.0
    %2944 = vmatpush1.msra.mxu0 0.0
    %2945 = vmatprep.subr.mxu0 0.0
    %2946 = vmatpush1.msra.mxu0 0.0
    %2947 = vmatprep.subr.mxu0 0.0
    %2948 = vmatpush1.msra.mxu0 0.0
    %2949 = vmatprep.subr.mxu0 0.0
    %2950 = vmatpush1.msra.mxu0 0.0
    %2951 = vmatprep.subr.mxu0 0.0
    %2952 = vmatpush1.msra.mxu0 0.0
    %2953 = vmatprep.subr.mxu0 0.0
    %2954 = vmatpush1.msra.mxu0 0.0
    %2955 = vmatprep.subr.mxu0 0.0
    %2956 = vmatpush1.msra.mxu0 0.0
    %2957 = vmatprep.subr.mxu0 0.0
    %2958 = vmatpush1.msra.mxu0 0.0
    %2959 = vmatprep.subr.mxu0 0.0
    %2960 = vmatpush1.msra.mxu0 0.0
    %2961 = vmatprep.subr.mxu0 0.0
    %2962 = vmatpush1.msra.mxu0 0.0
    %2963 = vmatprep.subr.mxu0 0.0
    %2964 = vmatpush1.msra.mxu0 0.0
    %2965 = vmatprep.subr.mxu0 0.0
    %2966 = vmatpush1.msra.mxu0 0.0
    %2967 = vmatprep.subr.mxu0 0.0
    %2968 = vmatpush1.msra.mxu0 0.0
    %2969 = vmatprep.subr.mxu0 0.0
    %2970 = vmatpush1.msra.mxu0 0.0
    %2971 = vmatprep.subr.mxu0 0.0
    %2972 = vmatpush1.msra.mxu0 0.0
    %2973 = vmatprep.subr.mxu0 0.0
    %2974 = vmatpush1.msra.mxu0 0.0
    %2975 = vmatprep.subr.mxu0 0.0
    %2976 = vmatpush1.msra.mxu0 0.0
    %2977 = vmatprep.subr.mxu0 0.0
    %2978 = vmatpush1.msra.mxu0 0.0
    %2979 = vmatprep.subr.mxu0 0.0
    %2980 = vmatpush1.msra.mxu0 0.0
    %2981 = vmatprep.subr.mxu0 0.0
    %2982 = vmatpush1.msra.mxu0 0.0
    %2983 = vmatprep.subr.mxu0 0.0
    %2984 = vmatpush1.msra.mxu0 0.0
    %2985 = vmatprep.subr.mxu0 0.0
    %2986 = vmatpush1.msra.mxu0 0.0
    %2987 = vmatprep.mubr.f32.mxu0 0.0
    %2988 = vmatmul.mubr.f32.gmra.mrb[0].mxu0 %v2918
    %v2989 = vpop.f32.mrb[0].mxu0
    %v2990 = vadd.f32 %v2915, %v2989
    %v2991 = vpop.f32.mrb[0].mxu0
    %2992 = vmatprep.mubr.f32.mxu0 0.0
    %2993 = vmatmul.mubr.f32.gmra.mrb[0].mxu0 %v2921
    %v2994 = vpop.f32.mrb[0].mxu0
    %v2995 = vadd.f32 %v2915, %v2994
    %v2996 = vpop.f32.mrb[0].mxu0
    %2997 = vdwg.mxu0
    %3000 = vrot.lane.b32.xlu0 %v2990, 2
    %v3001 = vpop.permute.xlu0 %3000
    %3002 = vrot.lane.b32.xlu0 %v2995, 2
    %v3003 = vpop.permute.xlu0 %3002
    %vm3006 = vcmask 31760
    %3007 = vst.msk [vmem:[#allocation4] sm:$0xff] %vm3006, %v3001
    %3008 = vst.msk [vmem:[#allocation4 + $0x8] sm:$0xff] %vm3006, %v3003
    %3009 = vset.pattern.permute.xlu0 8
    %3010 = vperm.xlu0 %3009, %v2692
    %v3011 = vpop.permute.xlu0 %3010
    %3013 = vset.pattern.permute.xlu0 8
    %3014 = vperm.xlu0 %3013, %v2697
    %v3015 = vpop.permute.xlu0 %3014
    %v3017 = vlaneseq
    %v3018 = vshrl.u32 %v3017, 7
    %v3019 = vsub.s32 2, %v3018
    %v3020 = vrot.slane %v2716, %v3019
    %v3021 = vadd.f32 %v3011, %v3020
    %v3022 = vadd.f32 %v3015, %v3020
    %v3023 = vmul.f32 %v3021, 0.2
    %v3024 = vmul.f32 %v3022, 0.2
    %v3025 = vmax.f32 %v3021, %v3023
    %v3026 = vmax.f32 %v3022, %v3024
    %v3027 = vadd.f32 %v3025, %v77
    %v3028 = vadd.f32 %v3026, %v78
    %v3029 = vsel %vm148, %v3027, -inf
    %3030 = vmax.xlane.f32.xlu0 %v3029
    %v3031 = vpop.xlane.xlu0 %3030
    %v3032 = vsel %vm148, %v3028, -inf
    %3033 = vmax.xlane.f32.xlu0 %v3032
    %v3034 = vpop.xlane.xlu0 %3033
    %v3035 = vsub.f32 %v3027, %v3031
    %v3036 = vsub.f32 %v3028, %v3034
    %v3037 = vmul.f32 %v3035, 1.442695
    %v3038 = vpow.pop %v3037
    %v3039 = vmul.f32 %v3036, 1.442695
    %v3040 = vpow.pop %v3039
    %v3041 = vsel %vm148, %v3038, 0.0
    %3042 = vadd.xlane.f32.xlu0 %v3041
    %v3043 = vpop.xlane.xlu0 %3042
    %v3044 = vsel %vm148, %v3040, 0.0
    %3045 = vadd.xlane.f32.xlu0 %v3044
    %v3046 = vpop.xlane.xlu0 %3045
    %v3047 = vrcp.pop %v3043
    %v3048 = vrcp.pop %v3046
    %v3049 = vmul.f32 %v3038, %v3047
    %v3050 = vmul.f32 %v3040, %v3048
    %3051 = vrot.lane.b32.xlu0 %v2607, 124
    %v3052 = vpop.permute.xlu0 %3051
    %3053 = vrot.lane.b32.xlu0 %v2610, 124
    %v3054 = vpop.permute.xlu0 %3053
    %3057 = vrot.lane.b32.xlu0 %v2781, 124
    %v3058 = vpop.permute.xlu0 %3057
    %v3061 = vsel %vm148, %v3049, 0
    %v3064 = vsel %vm148, %v3050, 0
    %3066 = vmatprep.subr.mxu0 0.0
    %3067 = vmatpush1.msra.mxu0 %v3052
    %3068 = vmatprep.subr.mxu0 0.0
    %3069 = vmatpush1.msra.mxu0 %v3054
    %3070 = vmatprep.subr.mxu0 0.0
    %3071 = vmatpush1.msra.mxu0 0.0
    %3072 = vmatprep.subr.mxu0 0.0
    %3073 = vmatpush1.msra.mxu0 0.0
    %3074 = vmatprep.subr.mxu0 0.0
    %3075 = vmatpush1.msra.mxu0 0.0
    %3076 = vmatprep.subr.mxu0 0.0
    %3077 = vmatpush1.msra.mxu0 0.0
    %3078 = vmatprep.subr.mxu0 0.0
    %3079 = vmatpush1.msra.mxu0 0.0
    %3080 = vmatprep.subr.mxu0 0.0
    %3081 = vmatpush1.msra.mxu0 0.0
    %3082 = vmatprep.subr.mxu0 0.0
    %3083 = vmatpush1.msra.mxu0 0.0
    %3084 = vmatprep.subr.mxu0 0.0
    %3085 = vmatpush1.msra.mxu0 0.0
    %3086 = vmatprep.subr.mxu0 0.0
    %3087 = vmatpush1.msra.mxu0 0.0
    %3088 = vmatprep.subr.mxu0 0.0
    %3089 = vmatpush1.msra.mxu0 0.0
    %3090 = vmatprep.subr.mxu0 0.0
    %3091 = vmatpush1.msra.mxu0 0.0
    %3092 = vmatprep.subr.mxu0 0.0
    %3093 = vmatpush1.msra.mxu0 0.0
    %3094 = vmatprep.subr.mxu0 0.0
    %3095 = vmatpush1.msra.mxu0 0.0
    %3096 = vmatprep.subr.mxu0 0.0
    %3097 = vmatpush1.msra.mxu0 0.0
    %3098 = vmatprep.subr.mxu0 0.0
    %3099 = vmatpush1.msra.mxu0 0.0
    %3100 = vmatprep.subr.mxu0 0.0
    %3101 = vmatpush1.msra.mxu0 0.0
    %3102 = vmatprep.subr.mxu0 0.0
    %3103 = vmatpush1.msra.mxu0 0.0
    %3104 = vmatprep.subr.mxu0 0.0
    %3105 = vmatpush1.msra.mxu0 0.0
    %3106 = vmatprep.subr.mxu0 0.0
    %3107 = vmatpush1.msra.mxu0 0.0
    %3108 = vmatprep.subr.mxu0 0.0
    %3109 = vmatpush1.msra.mxu0 0.0
    %3110 = vmatprep.subr.mxu0 0.0
    %3111 = vmatpush1.msra.mxu0 0.0
    %3112 = vmatprep.subr.mxu0 0.0
    %3113 = vmatpush1.msra.mxu0 0.0
    %3114 = vmatprep.subr.mxu0 0.0
    %3115 = vmatpush1.msra.mxu0 0.0
    %3116 = vmatprep.subr.mxu0 0.0
    %3117 = vmatpush1.msra.mxu0 0.0
    %3118 = vmatprep.subr.mxu0 0.0
    %3119 = vmatpush1.msra.mxu0 0.0
    %3120 = vmatprep.subr.mxu0 0.0
    %3121 = vmatpush1.msra.mxu0 0.0
    %3122 = vmatprep.subr.mxu0 0.0
    %3123 = vmatpush1.msra.mxu0 0.0
    %3124 = vmatprep.subr.mxu0 0.0
    %3125 = vmatpush1.msra.mxu0 0.0
    %3126 = vmatprep.subr.mxu0 0.0
    %3127 = vmatpush1.msra.mxu0 0.0
    %3128 = vmatprep.subr.mxu0 0.0
    %3129 = vmatpush1.msra.mxu0 0.0
    %3130 = vmatprep.mubr.f32.mxu0 0.0
    %3131 = vmatmul.mubr.f32.gmra.mrb[0].mxu0 %v3061
    %v3132 = vpop.f32.mrb[0].mxu0
    %v3133 = vadd.f32 %v3058, %v3132
    %v3134 = vpop.f32.mrb[0].mxu0
    %3135 = vmatprep.mubr.f32.mxu0 0.0
    %3136 = vmatmul.mubr.f32.gmra.mrb[0].mxu0 %v3064
    %v3137 = vpop.f32.mrb[0].mxu0
    %v3138 = vadd.f32 %v3058, %v3137
    %v3139 = vpop.f32.mrb[0].mxu0
    %3140 = vdwg.mxu0
    %3143 = vrot.lane.b32.xlu0 %v3133, 4
    %v3144 = vpop.permute.xlu0 %3143
    %3145 = vrot.lane.b32.xlu0 %v3138, 4
    %v3146 = vpop.permute.xlu0 %3145
    %vm3149 = vcmask 48160
    %3150 = vst.msk [vmem:[#allocation4] sm:$0xff] %vm3149, %v3144
    %3151 = vst.msk [vmem:[#allocation4 + $0x8] sm:$0xff] %vm3149, %v3146
    %3152 = vset.pattern.permute.xlu0 9
    %3153 = vperm.xlu0 %3152, %v2692
    %v3154 = vpop.permute.xlu0 %3153
    %3156 = vset.pattern.permute.xlu0 9
    %3157 = vperm.xlu0 %3156, %v2697
    %v3158 = vpop.permute.xlu0 %3157
    %v3160 = vlaneseq
    %v3161 = vshrl.u32 %v3160, 7
    %v3162 = vsub.s32 3, %v3161
    %v3163 = vrot.slane %v2716, %v3162
    %v3164 = vadd.f32 %v3154, %v3163
    %v3165 = vadd.f32 %v3158, %v3163
    %v3166 = vmul.f32 %v3164, 0.2
    %v3167 = vmul.f32 %v3165, 0.2
    %v3168 = vmax.f32 %v3164, %v3166
    %v3169 = vmax.f32 %v3165, %v3167
    %v3170 = vadd.f32 %v3168, %v77
    %v3171 = vadd.f32 %v3169, %v78
    %v3172 = vsel %vm148, %v3170, -inf
    %3173 = vmax.xlane.f32.xlu0 %v3172
    %v3174 = vpop.xlane.xlu0 %3173
    %v3175 = vsel %vm148, %v3171, -inf
    %3176 = vmax.xlane.f32.xlu0 %v3175
    %v3177 = vpop.xlane.xlu0 %3176
    %v3178 = vsub.f32 %v3170, %v3174
    %v3179 = vsub.f32 %v3171, %v3177
    %v3180 = vmul.f32 %v3178, 1.442695
    %v3181 = vpow.pop %v3180
    %v3182 = vmul.f32 %v3179, 1.442695
    %v3183 = vpow.pop %v3182
    %v3184 = vsel %vm148, %v3181, 0.0
    %3185 = vadd.xlane.f32.xlu0 %v3184
    %v3186 = vpop.xlane.xlu0 %3185
    %v3187 = vsel %vm148, %v3183, 0.0
    %3188 = vadd.xlane.f32.xlu0 %v3187
    %v3189 = vpop.xlane.xlu0 %3188
    %v3190 = vrcp.pop %v3186
    %v3191 = vrcp.pop %v3189
    %v3192 = vmul.f32 %v3181, %v3190
    %v3193 = vmul.f32 %v3183, %v3191
    %3194 = vrot.lane.b32.xlu0 %v2607, 122
    %v3195 = vpop.permute.xlu0 %3194
    %3196 = vrot.lane.b32.xlu0 %v2610, 122
    %v3197 = vpop.permute.xlu0 %3196
    %3200 = vrot.lane.b32.xlu0 %v2781, 122
    %v3201 = vpop.permute.xlu0 %3200
    %v3204 = vsel %vm148, %v3192, 0
    %v3207 = vsel %vm148, %v3193, 0
    %3209 = vmatprep.subr.mxu0 0.0
    %3210 = vmatpush1.msra.mxu0 %v3195
    %3211 = vmatprep.subr.mxu0 0.0
    %3212 = vmatpush1.msra.mxu0 %v3197
    %3213 = vmatprep.subr.mxu0 0.0
    %3214 = vmatpush1.msra.mxu0 0.0
    %3215 = vmatprep.subr.mxu0 0.0
    %3216 = vmatpush1.msra.mxu0 0.0
    %3217 = vmatprep.subr.mxu0 0.0
    %3218 = vmatpush1.msra.mxu0 0.0
    %3219 = vmatprep.subr.mxu0 0.0
    %3220 = vmatpush1.msra.mxu0 0.0
    %3221 = vmatprep.subr.mxu0 0.0
    %3222 = vmatpush1.msra.mxu0 0.0
    %3223 = vmatprep.subr.mxu0 0.0
    %3224 = vmatpush1.msra.mxu0 0.0
    %3225 = vmatprep.subr.mxu0 0.0
    %3226 = vmatpush1.msra.mxu0 0.0
    %3227 = vmatprep.subr.mxu0 0.0
    %3228 = vmatpush1.msra.mxu0 0.0
    %3229 = vmatprep.subr.mxu0 0.0
    %3230 = vmatpush1.msra.mxu0 0.0
    %3231 = vmatprep.subr.mxu0 0.0
    %3232 = vmatpush1.msra.mxu0 0.0
    %3233 = vmatprep.subr.mxu0 0.0
    %3234 = vmatpush1.msra.mxu0 0.0
    %3235 = vmatprep.subr.mxu0 0.0
    %3236 = vmatpush1.msra.mxu0 0.0
    %3237 = vmatprep.subr.mxu0 0.0
    %3238 = vmatpush1.msra.mxu0 0.0
    %3239 = vmatprep.subr.mxu0 0.0
    %3240 = vmatpush1.msra.mxu0 0.0
    %3241 = vmatprep.subr.mxu0 0.0
    %3242 = vmatpush1.msra.mxu0 0.0
    %3243 = vmatprep.subr.mxu0 0.0
    %3244 = vmatpush1.msra.mxu0 0.0
    %3245 = vmatprep.subr.mxu0 0.0
    %3246 = vmatpush1.msra.mxu0 0.0
    %3247 = vmatprep.subr.mxu0 0.0
    %3248 = vmatpush1.msra.mxu0 0.0
    %3249 = vmatprep.subr.mxu0 0.0
    %3250 = vmatpush1.msra.mxu0 0.0
    %3251 = vmatprep.subr.mxu0 0.0
    %3252 = vmatpush1.msra.mxu0 0.0
    %3253 = vmatprep.subr.mxu0 0.0
    %3254 = vmatpush1.msra.mxu0 0.0
    %3255 = vmatprep.subr.mxu0 0.0
    %3256 = vmatpush1.msra.mxu0 0.0
    %3257 = vmatprep.subr.mxu0 0.0
    %3258 = vmatpush1.msra.mxu0 0.0
    %3259 = vmatprep.subr.mxu0 0.0
    %3260 = vmatpush1.msra.mxu0 0.0
    %3261 = vmatprep.subr.mxu0 0.0
    %3262 = vmatpush1.msra.mxu0 0.0
    %3263 = vmatprep.subr.mxu0 0.0
    %3264 = vmatpush1.msra.mxu0 0.0
    %3265 = vmatprep.subr.mxu0 0.0
    %3266 = vmatpush1.msra.mxu0 0.0
    %3267 = vmatprep.subr.mxu0 0.0
    %3268 = vmatpush1.msra.mxu0 0.0
    %3269 = vmatprep.subr.mxu0 0.0
    %3270 = vmatpush1.msra.mxu0 0.0
    %3271 = vmatprep.subr.mxu0 0.0
    %3272 = vmatpush1.msra.mxu0 0.0
    %3273 = vmatprep.mubr.f32.mxu0 0.0
    %3274 = vmatmul.mubr.f32.gmra.mrb[0].mxu0 %v3204
    %v3275 = vpop.f32.mrb[0].mxu0
    %v3276 = vadd.f32 %v3201, %v3275
    %v3277 = vpop.f32.mrb[0].mxu0
    %3278 = vmatprep.mubr.f32.mxu0 0.0
    %3279 = vmatmul.mubr.f32.gmra.mrb[0].mxu0 %v3207
    %v3280 = vpop.f32.mrb[0].mxu0
    %v3281 = vadd.f32 %v3201, %v3280
    %v3282 = vpop.f32.mrb[0].mxu0
    %3283 = vdwg.mxu0
    %3286 = vrot.lane.b32.xlu0 %v3276, 6
    %v3287 = vpop.permute.xlu0 %3286
    %3288 = vrot.lane.b32.xlu0 %v3281, 6
    %v3289 = vpop.permute.xlu0 %3288
    %vm3292 = vcmask 64560
    %3293 = vst.msk [vmem:[#allocation4] sm:$0xff] %vm3292, %v3287
    %3294 = vst.msk [vmem:[#allocation4 + $0x8] sm:$0xff] %vm3292, %v3289
    %3295 = vset.pattern.permute.xlu0 10
    %3296 = vperm.xlu0 %3295, %v2692
    %v3297 = vpop.permute.xlu0 %3296
    %3299 = vset.pattern.permute.xlu0 10
    %3300 = vperm.xlu0 %3299, %v2697
    %v3301 = vpop.permute.xlu0 %3300
    %v3303 = vlaneseq
    %v3304 = vshrl.u32 %v3303, 7
    %v3305 = vsub.s32 4, %v3304
    %v3306 = vrot.slane %v2716, %v3305
    %v3307 = vadd.f32 %v3297, %v3306
    %v3308 = vadd.f32 %v3301, %v3306
    %v3309 = vmul.f32 %v3307, 0.2
    %v3310 = vmul.f32 %v3308, 0.2
    %v3311 = vmax.f32 %v3307, %v3309
    %v3312 = vmax.f32 %v3308, %v3310
    %v3313 = vadd.f32 %v3311, %v77
    %v3314 = vadd.f32 %v3312, %v78
    %v3315 = vsel %vm148, %v3313, -inf
    %3316 = vmax.xlane.f32.xlu0 %v3315
    %v3317 = vpop.xlane.xlu0 %3316
    %v3318 = vsel %vm148, %v3314, -inf
    %3319 = vmax.xlane.f32.xlu0 %v3318
    %v3320 = vpop.xlane.xlu0 %3319
    %v3321 = vsub.f32 %v3313, %v3317
    %v3322 = vsub.f32 %v3314, %v3320
    %v3323 = vmul.f32 %v3321, 1.442695
    %v3324 = vpow.pop %v3323
    %v3325 = vmul.f32 %v3322, 1.442695
    %v3326 = vpow.pop %v3325
    %v3327 = vsel %vm148, %v3324, 0.0
    %3328 = vadd.xlane.f32.xlu0 %v3327
    %v3329 = vpop.xlane.xlu0 %3328
    %v3330 = vsel %vm148, %v3326, 0.0
    %3331 = vadd.xlane.f32.xlu0 %v3330
    %v3332 = vpop.xlane.xlu0 %3331
    %v3333 = vrcp.pop %v3329
    %v3334 = vrcp.pop %v3332
    %v3335 = vmul.f32 %v3324, %v3333
    %v3336 = vmul.f32 %v3326, %v3334
    %3337 = vrot.lane.b32.xlu0 %v2607, 120
    %v3338 = vpop.permute.xlu0 %3337
    %3339 = vrot.lane.b32.xlu0 %v2610, 120
    %v3340 = vpop.permute.xlu0 %3339
    %3343 = vrot.lane.b32.xlu0 %v2781, 120
    %v3344 = vpop.permute.xlu0 %3343
    %v3347 = vsel %vm148, %v3335, 0
    %v3350 = vsel %vm148, %v3336, 0
    %3352 = vmatprep.subr.mxu0 0.0
    %3353 = vmatpush1.msra.mxu0 %v3338
    %3354 = vmatprep.subr.mxu0 0.0
    %3355 = vmatpush1.msra.mxu0 %v3340
    %3356 = vmatprep.subr.mxu0 0.0
    %3357 = vmatpush1.msra.mxu0 0.0
    %3358 = vmatprep.subr.mxu0 0.0
    %3359 = vmatpush1.msra.mxu0 0.0
    %3360 = vmatprep.subr.mxu0 0.0
    %3361 = vmatpush1.msra.mxu0 0.0
    %3362 = vmatprep.subr.mxu0 0.0
    %3363 = vmatpush1.msra.mxu0 0.0
    %3364 = vmatprep.subr.mxu0 0.0
    %3365 = vmatpush1.msra.mxu0 0.0
    %3366 = vmatprep.subr.mxu0 0.0
    %3367 = vmatpush1.msra.mxu0 0.0
    %3368 = vmatprep.subr.mxu0 0.0
    %3369 = vmatpush1.msra.mxu0 0.0
    %3370 = vmatprep.subr.mxu0 0.0
    %3371 = vmatpush1.msra.mxu0 0.0
    %3372 = vmatprep.subr.mxu0 0.0
    %3373 = vmatpush1.msra.mxu0 0.0
    %3374 = vmatprep.subr.mxu0 0.0
    %3375 = vmatpush1.msra.mxu0 0.0
    %3376 = vmatprep.subr.mxu0 0.0
    %3377 = vmatpush1.msra.mxu0 0.0
    %3378 = vmatprep.subr.mxu0 0.0
    %3379 = vmatpush1.msra.mxu0 0.0
    %3380 = vmatprep.subr.mxu0 0.0
    %3381 = vmatpush1.msra.mxu0 0.0
    %3382 = vmatprep.subr.mxu0 0.0
    %3383 = vmatpush1.msra.mxu0 0.0
    %3384 = vmatprep.subr.mxu0 0.0
    %3385 = vmatpush1.msra.mxu0 0.0
    %3386 = vmatprep.subr.mxu0 0.0
    %3387 = vmatpush1.msra.mxu0 0.0
    %3388 = vmatprep.subr.mxu0 0.0
    %3389 = vmatpush1.msra.mxu0 0.0
    %3390 = vmatprep.subr.mxu0 0.0
    %3391 = vmatpush1.msra.mxu0 0.0
    %3392 = vmatprep.subr.mxu0 0.0
    %3393 = vmatpush1.msra.mxu0 0.0
    %3394 = vmatprep.subr.mxu0 0.0
    %3395 = vmatpush1.msra.mxu0 0.0
    %3396 = vmatprep.subr.mxu0 0.0
    %3397 = vmatpush1.msra.mxu0 0.0
    %3398 = vmatprep.subr.mxu0 0.0
    %3399 = vmatpush1.msra.mxu0 0.0
    %3400 = vmatprep.subr.mxu0 0.0
    %3401 = vmatpush1.msra.mxu0 0.0
    %3402 = vmatprep.subr.mxu0 0.0
    %3403 = vmatpush1.msra.mxu0 0.0
    %3404 = vmatprep.subr.mxu0 0.0
    %3405 = vmatpush1.msra.mxu0 0.0
    %3406 = vmatprep.subr.mxu0 0.0
    %3407 = vmatpush1.msra.mxu0 0.0
    %3408 = vmatprep.subr.mxu0 0.0
    %3409 = vmatpush1.msra.mxu0 0.0
    %3410 = vmatprep.subr.mxu0 0.0
    %3411 = vmatpush1.msra.mxu0 0.0
    %3412 = vmatprep.subr.mxu0 0.0
    %3413 = vmatpush1.msra.mxu0 0.0
    %3414 = vmatprep.subr.mxu0 0.0
    %3415 = vmatpush1.msra.mxu0 0.0
    %3416 = vmatprep.mubr.f32.mxu0 0.0
    %3417 = vmatmul.mubr.f32.gmra.mrb[0].mxu0 %v3347
    %v3418 = vpop.f32.mrb[0].mxu0
    %v3419 = vadd.f32 %v3344, %v3418
    %v3420 = vpop.f32.mrb[0].mxu0
    %3421 = vmatprep.mubr.f32.mxu0 0.0
    %3422 = vmatmul.mubr.f32.gmra.mrb[0].mxu0 %v3350
    %v3423 = vpop.f32.mrb[0].mxu0
    %v3424 = vadd.f32 %v3344, %v3423
    %v3425 = vpop.f32.mrb[0].mxu0
    %3426 = vdwg.mxu0
    %3429 = vrot.lane.b32.xlu0 %v3419, 8
    %v3430 = vpop.permute.xlu0 %3429
    %3431 = vrot.lane.b32.xlu0 %v3424, 8
    %v3432 = vpop.permute.xlu0 %3431
    %vm3435 = vcmask 80960
    %3436 = vst.msk [vmem:[#allocation4] sm:$0xff] %vm3435, %v3430
    %3437 = vst.msk [vmem:[#allocation4 + $0x8] sm:$0xff] %vm3435, %v3432
    %3438 = vset.pattern.permute.xlu0 11
    %3439 = vperm.xlu0 %3438, %v2692
    %v3440 = vpop.permute.xlu0 %3439
    %3442 = vset.pattern.permute.xlu0 11
    %3443 = vperm.xlu0 %3442, %v2697
    %v3444 = vpop.permute.xlu0 %3443
    %v3446 = vlaneseq
    %v3447 = vshrl.u32 %v3446, 7
    %v3448 = vsub.s32 5, %v3447
    %v3449 = vrot.slane %v2716, %v3448
    %v3450 = vadd.f32 %v3440, %v3449
    %v3451 = vadd.f32 %v3444, %v3449
    %v3452 = vmul.f32 %v3450, 0.2
    %v3453 = vmul.f32 %v3451, 0.2
    %v3454 = vmax.f32 %v3450, %v3452
    %v3455 = vmax.f32 %v3451, %v3453
    %v3456 = vadd.f32 %v3454, %v77
    %v3457 = vadd.f32 %v3455, %v78
    %v3458 = vsel %vm148, %v3456, -inf
    %3459 = vmax.xlane.f32.xlu0 %v3458
    %v3460 = vpop.xlane.xlu0 %3459
    %v3461 = vsel %vm148, %v3457, -inf
    %3462 = vmax.xlane.f32.xlu0 %v3461
    %v3463 = vpop.xlane.xlu0 %3462
    %v3464 = vsub.f32 %v3456, %v3460
    %v3465 = vsub.f32 %v3457, %v3463
    %v3466 = vmul.f32 %v3464, 1.442695
    %v3467 = vpow.pop %v3466
    %v3468 = vmul.f32 %v3465, 1.442695
    %v3469 = vpow.pop %v3468
    %v3470 = vsel %vm148, %v3467, 0.0
    %3471 = vadd.xlane.f32.xlu0 %v3470
    %v3472 = vpop.xlane.xlu0 %3471
    %v3473 = vsel %vm148, %v3469, 0.0
    %3474 = vadd.xlane.f32.xlu0 %v3473
    %v3475 = vpop.xlane.xlu0 %3474
    %v3476 = vrcp.pop %v3472
    %v3477 = vrcp.pop %v3475
    %v3478 = vmul.f32 %v3467, %v3476
    %v3479 = vmul.f32 %v3469, %v3477
    %3480 = vrot.lane.b32.xlu0 %v2607, 118
    %v3481 = vpop.permute.xlu0 %3480
    %3482 = vrot.lane.b32.xlu0 %v2610, 118
    %v3483 = vpop.permute.xlu0 %3482
    %3486 = vrot.lane.b32.xlu0 %v2781, 118
    %v3487 = vpop.permute.xlu0 %3486
    %v3490 = vsel %vm148, %v3478, 0
    %v3493 = vsel %vm148, %v3479, 0
    %3495 = vmatprep.subr.mxu0 0.0
    %3496 = vmatpush1.msra.mxu0 %v3481
    %3497 = vmatprep.subr.mxu0 0.0
    %3498 = vmatpush1.msra.mxu0 %v3483
    %3499 = vmatprep.subr.mxu0 0.0
    %3500 = vmatpush1.msra.mxu0 0.0
    %3501 = vmatprep.subr.mxu0 0.0
    %3502 = vmatpush1.msra.mxu0 0.0
    %3503 = vmatprep.subr.mxu0 0.0
    %3504 = vmatpush1.msra.mxu0 0.0
    %3505 = vmatprep.subr.mxu0 0.0
    %3506 = vmatpush1.msra.mxu0 0.0
    %3507 = vmatprep.subr.mxu0 0.0
    %3508 = vmatpush1.msra.mxu0 0.0
    %3509 = vmatprep.subr.mxu0 0.0
    %3510 = vmatpush1.msra.mxu0 0.0
    %3511 = vmatprep.subr.mxu0 0.0
    %3512 = vmatpush1.msra.mxu0 0.0
    %3513 = vmatprep.subr.mxu0 0.0
    %3514 = vmatpush1.msra.mxu0 0.0
    %3515 = vmatprep.subr.mxu0 0.0
    %3516 = vmatpush1.msra.mxu0 0.0
    %3517 = vmatprep.subr.mxu0 0.0
    %3518 = vmatpush1.msra.mxu0 0.0
    %3519 = vmatprep.subr.mxu0 0.0
    %3520 = vmatpush1.msra.mxu0 0.0
    %3521 = vmatprep.subr.mxu0 0.0
    %3522 = vmatpush1.msra.mxu0 0.0
    %3523 = vmatprep.subr.mxu0 0.0
    %3524 = vmatpush1.msra.mxu0 0.0
    %3525 = vmatprep.subr.mxu0 0.0
    %3526 = vmatpush1.msra.mxu0 0.0
    %3527 = vmatprep.subr.mxu0 0.0
    %3528 = vmatpush1.msra.mxu0 0.0
    %3529 = vmatprep.subr.mxu0 0.0
    %3530 = vmatpush1.msra.mxu0 0.0
    %3531 = vmatprep.subr.mxu0 0.0
    %3532 = vmatpush1.msra.mxu0 0.0
    %3533 = vmatprep.subr.mxu0 0.0
    %3534 = vmatpush1.msra.mxu0 0.0
    %3535 = vmatprep.subr.mxu0 0.0
    %3536 = vmatpush1.msra.mxu0 0.0
    %3537 = vmatprep.subr.mxu0 0.0
    %3538 = vmatpush1.msra.mxu0 0.0
    %3539 = vmatprep.subr.mxu0 0.0
    %3540 = vmatpush1.msra.mxu0 0.0
    %3541 = vmatprep.subr.mxu0 0.0
    %3542 = vmatpush1.msra.mxu0 0.0
    %3543 = vmatprep.subr.mxu0 0.0
    %3544 = vmatpush1.msra.mxu0 0.0
    %3545 = vmatprep.subr.mxu0 0.0
    %3546 = vmatpush1.msra.mxu0 0.0
    %3547 = vmatprep.subr.mxu0 0.0
    %3548 = vmatpush1.msra.mxu0 0.0
    %3549 = vmatprep.subr.mxu0 0.0
    %3550 = vmatpush1.msra.mxu0 0.0
    %3551 = vmatprep.subr.mxu0 0.0
    %3552 = vmatpush1.msra.mxu0 0.0
    %3553 = vmatprep.subr.mxu0 0.0
    %3554 = vmatpush1.msra.mxu0 0.0
    %3555 = vmatprep.subr.mxu0 0.0
    %3556 = vmatpush1.msra.mxu0 0.0
    %3557 = vmatprep.subr.mxu0 0.0
    %3558 = vmatpush1.msra.mxu0 0.0
    %3559 = vmatprep.mubr.f32.mxu0 0.0
    %3560 = vmatmul.mubr.f32.gmra.mrb[0].mxu0 %v3490
    %v3561 = vpop.f32.mrb[0].mxu0
    %v3562 = vadd.f32 %v3487, %v3561
    %v3563 = vpop.f32.mrb[0].mxu0
    %3564 = vmatprep.mubr.f32.mxu0 0.0
    %3565 = vmatmul.mubr.f32.gmra.mrb[0].mxu0 %v3493
    %v3566 = vpop.f32.mrb[0].mxu0
    %v3567 = vadd.f32 %v3487, %v3566
    %v3568 = vpop.f32.mrb[0].mxu0
    %3569 = vdwg.mxu0
    %3572 = vrot.lane.b32.xlu0 %v3562, 10
    %v3573 = vpop.permute.xlu0 %3572
    %3574 = vrot.lane.b32.xlu0 %v3567, 10
    %v3575 = vpop.permute.xlu0 %3574
    %vm3578 = vcmask 97360
    %3579 = vst.msk [vmem:[#allocation4] sm:$0xff] %vm3578, %v3573
    %3580 = vst.msk [vmem:[#allocation4 + $0x8] sm:$0xff] %vm3578, %v3575
    %v3581 = vsel %vm826, %v2757, %v2888
    %v3582 = vsel %vm826, %v2760, %v2891
    %v3583 = vsel %vm829, %v3581, %v3031
    %v3584 = vsel %vm829, %v3582, %v3034
    %v3585 = vsel %vm832, %v3583, %v3174
    %v3586 = vsel %vm832, %v3584, %v3177
    %v3587 = vsel %vm394, %v3585, %v3317
    %v3588 = vsel %vm394, %v3586, %v3320
    %vm3589 = vcmask 39936
    %v3590 = vsel %vm3589, %v3587, %v3460
    %v3591 = vsel %vm3589, %v3588, %v3463
    %v3592 = vsel %vm826, %v2773, %v2904
    %v3593 = vsel %vm826, %v2774, %v2905
    %v3594 = vsel %vm829, %v3592, %v3047
    %v3595 = vsel %vm829, %v3593, %v3048
    %v3596 = vsel %vm832, %v3594, %v3190
    %v3597 = vsel %vm832, %v3595, %v3191
    %v3598 = vsel %vm394, %v3596, %v3333
    %v3599 = vsel %vm394, %v3597, %v3334
    %v3600 = vsel %vm3589, %v3598, %v3476
    %v3601 = vsel %vm3589, %v3599, %v3477
    %3602 = vrot.lane.b32.xlu0 %v2692, 122
    %v3603 = vpop.permute.xlu0 %3602
    %3604 = vrot.lane.b32.xlu0 %v2697, 122
    %v3605 = vpop.permute.xlu0 %3604
    %3608 = vmatprep.subr.mxu0 0.0
    %3609 = vmatpush1.msra.mxu0 %v3603
    %3610 = vmatprep.subr.mxu0 0.0
    %3611 = vmatpush1.msra.mxu0 %v3605
    %3612 = vmatprep.subr.mxu0 0.0
    %3613 = vmatpush1.msra.mxu0 0.0
    %3614 = vmatprep.subr.mxu0 0.0
    %3615 = vmatpush1.msra.mxu0 0.0
    %3616 = vmatprep.subr.mxu0 0.0
    %3617 = vmatpush1.msra.mxu0 0.0
    %3618 = vmatprep.subr.mxu0 0.0
    %3619 = vmatpush1.msra.mxu0 0.0
    %3620 = vmatprep.subr.mxu0 0.0
    %3621 = vmatpush1.msra.mxu0 0.0
    %3622 = vmatprep.subr.mxu0 0.0
    %3623 = vmatpush1.msra.mxu0 0.0
    %3624 = vmatprep.subr.mxu0 0.0
    %3625 = vmatpush1.msra.mxu0 0.0
    %3626 = vmatprep.subr.mxu0 0.0
    %3627 = vmatpush1.msra.mxu0 0.0
    %3628 = vmatprep.subr.mxu0 0.0
    %3629 = vmatpush1.msra.mxu0 0.0
    %3630 = vmatprep.subr.mxu0 0.0
    %3631 = vmatpush1.msra.mxu0 0.0
    %3632 = vmatprep.subr.mxu0 0.0
    %3633 = vmatpush1.msra.mxu0 0.0
    %3634 = vmatprep.subr.mxu0 0.0
    %3635 = vmatpush1.msra.mxu0 0.0
    %3636 = vmatprep.subr.mxu0 0.0
    %3637 = vmatpush1.msra.mxu0 0.0
    %3638 = vmatprep.subr.mxu0 0.0
    %3639 = vmatpush1.msra.mxu0 0.0
    %3640 = vmatprep.subr.mxu0 0.0
    %3641 = vmatpush1.msra.mxu0 0.0
    %3642 = vmatprep.subr.mxu0 0.0
    %3643 = vmatpush1.msra.mxu0 0.0
    %3644 = vmatprep.subr.mxu0 0.0
    %3645 = vmatpush1.msra.mxu0 0.0
    %3646 = vmatprep.subr.mxu0 0.0
    %3647 = vmatpush1.msra.mxu0 0.0
    %3648 = vmatprep.subr.mxu0 0.0
    %3649 = vmatpush1.msra.mxu0 0.0
    %3650 = vmatprep.subr.mxu0 0.0
    %3651 = vmatpush1.msra.mxu0 0.0
    %3652 = vmatprep.subr.mxu0 0.0
    %3653 = vmatpush1.msra.mxu0 0.0
    %3654 = vmatprep.subr.mxu0 0.0
    %3655 = vmatpush1.msra.mxu0 0.0
    %3656 = vmatprep.subr.mxu0 0.0
    %3657 = vmatpush1.msra.mxu0 0.0
    %3658 = vmatprep.subr.mxu0 0.0
    %3659 = vmatpush1.msra.mxu0 0.0
    %3660 = vmatprep.subr.mxu0 0.0
    %3661 = vmatpush1.msra.mxu0 0.0
    %3662 = vmatprep.subr.mxu0 0.0
    %3663 = vmatpush1.msra.mxu0 0.0
    %3664 = vmatprep.subr.mxu0 0.0
    %3665 = vmatpush1.msra.mxu0 0.0
    %3666 = vmatprep.subr.mxu0 0.0
    %3667 = vmatpush1.msra.mxu0 0.0
    %3668 = vmatprep.subr.mxu0 0.0
    %3669 = vmatpush1.msra.mxu0 0.0
    %3670 = vmatprep.subr.mxu0 0.0
    %3671 = vmatpush1.msra.mxu0 0.0
    %3672 = vmatprep.mubr.f32.mxu0 0.0
    %3673 = vmatmul.mubr.f32.gmra.mrb[0].mxu0 %v848
    %v3674 = vpop.f32.mrb[0].mxu0
    %v3675 = vadd.f32 0.0, %v3674
    %v3676 = vpop.f32.mrb[0].mxu0
    %3677 = vmatprep.mubr.f32.mxu0 0.0
    %3678 = vmatmul.mubr.f32.gmra.mrb[0].mxu0 %v851
    %v3679 = vpop.f32.mrb[0].mxu0
    %v3680 = vadd.f32 0.0, %v3679
    %v3681 = vpop.f32.mrb[0].mxu0
    %3682 = vmatprep.mubr.f32.mxu0 0.0
    %3683 = vmatmul.mubr.f32.gmra.mrb[0].mxu0 %v854
    %v3684 = vpop.f32.mrb[0].mxu0
    %v3685 = vadd.f32 0.0, %v3684
    %v3686 = vpop.f32.mrb[0].mxu0
    %3687 = vmatprep.mubr.f32.mxu0 0.0
    %3688 = vmatmul.mubr.f32.gmra.mrb[0].mxu0 %v857
    %v3689 = vpop.f32.mrb[0].mxu0
    %v3690 = vadd.f32 0.0, %v3689
    %v3691 = vpop.f32.mrb[0].mxu0
    %3692 = vmatprep.mubr.f32.mxu0 0.0
    %3693 = vmatmul.mubr.f32.gmra.mrb[0].mxu0 %v860
    %v3694 = vpop.f32.mrb[0].mxu0
    %v3695 = vadd.f32 0.0, %v3694
    %v3696 = vpop.f32.mrb[0].mxu0
    %3697 = vmatprep.mubr.f32.mxu0 0.0
    %3698 = vmatmul.mubr.f32.gmra.mrb[0].mxu0 %v863
    %v3699 = vpop.f32.mrb[0].mxu0
    %v3700 = vadd.f32 0.0, %v3699
    %v3701 = vpop.f32.mrb[0].mxu0
    %3702 = vdwg.mxu0
    %3703 = vmatprep.subr.mxu0 0.0
    %3704 = vmatpush1.msra.mxu0 %v2692
    %3705 = vmatprep.subr.mxu0 0.0
    %3706 = vmatpush1.msra.mxu0 %v2697
    %3707 = vmatprep.subr.mxu0 0.0
    %3708 = vmatpush1.msra.mxu0 0.0
    %3709 = vmatprep.subr.mxu0 0.0
    %3710 = vmatpush1.msra.mxu0 0.0
    %3711 = vmatprep.subr.mxu0 0.0
    %3712 = vmatpush1.msra.mxu0 0.0
    %3713 = vmatprep.subr.mxu0 0.0
    %3714 = vmatpush1.msra.mxu0 0.0
    %3715 = vmatprep.subr.mxu0 0.0
    %3716 = vmatpush1.msra.mxu0 0.0
    %3717 = vmatprep.subr.mxu0 0.0
    %3718 = vmatpush1.msra.mxu0 0.0
    %3719 = vmatprep.subr.mxu0 0.0
    %3720 = vmatpush1.msra.mxu0 0.0
    %3721 = vmatprep.subr.mxu0 0.0
    %3722 = vmatpush1.msra.mxu0 0.0
    %3723 = vmatprep.subr.mxu0 0.0
    %3724 = vmatpush1.msra.mxu0 0.0
    %3725 = vmatprep.subr.mxu0 0.0
    %3726 = vmatpush1.msra.mxu0 0.0
    %3727 = vmatprep.subr.mxu0 0.0
    %3728 = vmatpush1.msra.mxu0 0.0
    %3729 = vmatprep.subr.mxu0 0.0
    %3730 = vmatpush1.msra.mxu0 0.0
    %3731 = vmatprep.subr.mxu0 0.0
    %3732 = vmatpush1.msra.mxu0 0.0
    %3733 = vmatprep.subr.mxu0 0.0
    %3734 = vmatpush1.msra.mxu0 0.0
    %3735 = vmatprep.subr.mxu0 0.0
    %3736 = vmatpush1.msra.mxu0 0.0
    %3737 = vmatprep.subr.mxu0 0.0
    %3738 = vmatpush1.msra.mxu0 0.0
    %3739 = vmatprep.subr.mxu0 0.0
    %3740 = vmatpush1.msra.mxu0 0.0
    %3741 = vmatprep.subr.mxu0 0.0
    %3742 = vmatpush1.msra.mxu0 0.0
    %3743 = vmatprep.subr.mxu0 0.0
    %3744 = vmatpush1.msra.mxu0 0.0
    %3745 = vmatprep.subr.mxu0 0.0
    %3746 = vmatpush1.msra.mxu0 0.0
    %3747 = vmatprep.subr.mxu0 0.0
    %3748 = vmatpush1.msra.mxu0 0.0
    %3749 = vmatprep.subr.mxu0 0.0
    %3750 = vmatpush1.msra.mxu0 0.0
    %3751 = vmatprep.subr.mxu0 0.0
    %3752 = vmatpush1.msra.mxu0 0.0
    %3753 = vmatprep.subr.mxu0 0.0
    %3754 = vmatpush1.msra.mxu0 0.0
    %3755 = vmatprep.subr.mxu0 0.0
    %3756 = vmatpush1.msra.mxu0 0.0
    %3757 = vmatprep.subr.mxu0 0.0
    %3758 = vmatpush1.msra.mxu0 0.0
    %3759 = vmatprep.subr.mxu0 0.0
    %3760 = vmatpush1.msra.mxu0 0.0
    %3761 = vmatprep.subr.mxu0 0.0
    %3762 = vmatpush1.msra.mxu0 0.0
    %3763 = vmatprep.subr.mxu0 0.0
    %3764 = vmatpush1.msra.mxu0 0.0
    %3765 = vmatprep.subr.mxu0 0.0
    %3766 = vmatpush1.msra.mxu0 0.0
    %3767 = vmatprep.mubr.f32.mxu0 0.0
    %3768 = vmatmul.mubr.f32.gmra.mrb[0].mxu0 %v961
    %v3769 = vpop.f32.mrb[0].mxu0
    %v3770 = vadd.f32 %v3675, %v3769
    %v3771 = vpop.f32.mrb[0].mxu0
    %3772 = vmatprep.mubr.f32.mxu0 0.0
    %3773 = vmatmul.mubr.f32.gmra.mrb[0].mxu0 %v964
    %v3774 = vpop.f32.mrb[0].mxu0
    %v3775 = vadd.f32 %v3680, %v3774
    %v3776 = vpop.f32.mrb[0].mxu0
    %3777 = vmatprep.mubr.f32.mxu0 0.0
    %3778 = vmatmul.mubr.f32.gmra.mrb[0].mxu0 %v967
    %v3779 = vpop.f32.mrb[0].mxu0
    %v3780 = vadd.f32 %v3685, %v3779
    %v3781 = vpop.f32.mrb[0].mxu0
    %3782 = vmatprep.mubr.f32.mxu0 0.0
    %3783 = vmatmul.mubr.f32.gmra.mrb[0].mxu0 %v970
    %v3784 = vpop.f32.mrb[0].mxu0
    %v3785 = vadd.f32 %v3690, %v3784
    %v3786 = vpop.f32.mrb[0].mxu0
    %3787 = vmatprep.mubr.f32.mxu0 0.0
    %3788 = vmatmul.mubr.f32.gmra.mrb[0].mxu0 %v973
    %v3789 = vpop.f32.mrb[0].mxu0
    %v3790 = vadd.f32 %v3695, %v3789
    %v3791 = vpop.f32.mrb[0].mxu0
    %3792 = vmatprep.mubr.f32.mxu0 0.0
    %3793 = vmatmul.mubr.f32.gmra.mrb[0].mxu0 %v976
    %v3794 = vpop.f32.mrb[0].mxu0
    %v3795 = vadd.f32 %v3700, %v3794
    %v3796 = vpop.f32.mrb[0].mxu0
    %3797 = vdwg.mxu0
    %v3798 = vmul.f32 %v3770, 0.2
    %v3799 = vmul.f32 %v3775, 0.2
    %v3800 = vmul.f32 %v3780, 0.2
    %v3801 = vmul.f32 %v3785, 0.2
    %v3802 = vmul.f32 %v3790, 0.2
    %v3803 = vmul.f32 %v3795, 0.2
    %v3804 = vmax.f32 %v3770, %v3798
    %v3805 = vmax.f32 %v3775, %v3799
    %v3806 = vmax.f32 %v3780, %v3800
    %v3807 = vmax.f32 %v3785, %v3801
    %v3808 = vmax.f32 %v3790, %v3802
    %v3809 = vmax.f32 %v3795, %v3803
    %3810 = vmatprep.subr.mxu0 0.0
    %3811 = vmatpush1.msra.mxu0 %v3590
    %3812 = vmatprep.subr.mxu0 0.0
    %3813 = vmatpush1.msra.mxu0 %v3591
    %3814 = vmatprep.subr.mxu0 0.0
    %3815 = vmatpush1.msra.mxu0 0.0
    %3816 = vmatprep.subr.mxu0 0.0
    %3817 = vmatpush1.msra.mxu0 0.0
    %3818 = vmatprep.subr.mxu0 0.0
    %3819 = vmatpush1.msra.mxu0 0.0
    %3820 = vmatprep.subr.mxu0 0.0
    %3821 = vmatpush1.msra.mxu0 0.0
    %3822 = vmatprep.subr.mxu0 0.0
    %3823 = vmatpush1.msra.mxu0 0.0
    %3824 = vmatprep.subr.mxu0 0.0
    %3825 = vmatpush1.msra.mxu0 0.0
    %3826 = vmatprep.subr.mxu0 0.0
    %3827 = vmatpush1.msra.mxu0 0.0
    %3828 = vmatprep.subr.mxu0 0.0
    %3829 = vmatpush1.msra.mxu0 0.0
    %3830 = vmatprep.subr.mxu0 0.0
    %3831 = vmatpush1.msra.mxu0 0.0
    %3832 = vmatprep.subr.mxu0 0.0
    %3833 = vmatpush1.msra.mxu0 0.0
    %3834 = vmatprep.subr.mxu0 0.0
    %3835 = vmatpush1.msra.mxu0 0.0
    %3836 = vmatprep.subr.mxu0 0.0
    %3837 = vmatpush1.msra.mxu0 0.0
    %3838 = vmatprep.subr.mxu0 0.0
    %3839 = vmatpush1.msra.mxu0 0.0
    %3840 = vmatprep.subr.mxu0 0.0
    %3841 = vmatpush1.msra.mxu0 0.0
    %3842 = vmatprep.subr.mxu0 0.0
    %3843 = vmatpush1.msra.mxu0 0.0
    %3844 = vmatprep.subr.mxu0 0.0
    %3845 = vmatpush1.msra.mxu0 0.0
    %3846 = vmatprep.subr.mxu0 0.0
    %3847 = vmatpush1.msra.mxu0 0.0
    %3848 = vmatprep.subr.mxu0 0.0
    %3849 = vmatpush1.msra.mxu0 0.0
    %3850 = vmatprep.subr.mxu0 0.0
    %3851 = vmatpush1.msra.mxu0 0.0
    %3852 = vmatprep.subr.mxu0 0.0
    %3853 = vmatpush1.msra.mxu0 0.0
    %3854 = vmatprep.subr.mxu0 0.0
    %3855 = vmatpush1.msra.mxu0 0.0
    %3856 = vmatprep.subr.mxu0 0.0
    %3857 = vmatpush1.msra.mxu0 0.0
    %3858 = vmatprep.subr.mxu0 0.0
    %3859 = vmatpush1.msra.mxu0 0.0
    %3860 = vmatprep.subr.mxu0 0.0
    %3861 = vmatpush1.msra.mxu0 0.0
    %3862 = vmatprep.subr.mxu0 0.0
    %3863 = vmatpush1.msra.mxu0 0.0
    %3864 = vmatprep.subr.mxu0 0.0
    %3865 = vmatpush1.msra.mxu0 0.0
    %3866 = vmatprep.subr.mxu0 0.0
    %3867 = vmatpush1.msra.mxu0 0.0
    %3868 = vmatprep.subr.mxu0 0.0
    %3869 = vmatpush1.msra.mxu0 0.0
    %3870 = vmatprep.subr.mxu0 0.0
    %3871 = vmatpush1.msra.mxu0 0.0
    %3872 = vmatprep.subr.mxu0 0.0
    %3873 = vmatpush1.msra.mxu0 0.0
    %3874 = vmatprep.mubr.f32.mxu0 0.0
    %3875 = vmatmul.mubr.f32.gmra.mrb[0].mxu0 %v848
    %v3876 = vpop.f32.mrb[0].mxu0
    %v3877 = vadd.f32 0.0, %v3876
    %v3878 = vpop.f32.mrb[0].mxu0
    %3879 = vmatprep.mubr.f32.mxu0 0.0
    %3880 = vmatmul.mubr.f32.gmra.mrb[0].mxu0 %v851
    %v3881 = vpop.f32.mrb[0].mxu0
    %v3882 = vadd.f32 0.0, %v3881
    %v3883 = vpop.f32.mrb[0].mxu0
    %3884 = vmatprep.mubr.f32.mxu0 0.0
    %3885 = vmatmul.mubr.f32.gmra.mrb[0].mxu0 %v854
    %v3886 = vpop.f32.mrb[0].mxu0
    %v3887 = vadd.f32 0.0, %v3886
    %v3888 = vpop.f32.mrb[0].mxu0
    %3889 = vmatprep.mubr.f32.mxu0 0.0
    %3890 = vmatmul.mubr.f32.gmra.mrb[0].mxu0 %v857
    %v3891 = vpop.f32.mrb[0].mxu0
    %v3892 = vadd.f32 0.0, %v3891
    %v3893 = vpop.f32.mrb[0].mxu0
    %3894 = vmatprep.mubr.f32.mxu0 0.0
    %3895 = vmatmul.mubr.f32.gmra.mrb[0].mxu0 %v860
    %v3896 = vpop.f32.mrb[0].mxu0
    %v3897 = vadd.f32 0.0, %v3896
    %v3898 = vpop.f32.mrb[0].mxu0
    %3899 = vmatprep.mubr.f32.mxu0 0.0
    %3900 = vmatmul.mubr.f32.gmra.mrb[0].mxu0 %v863
    %v3901 = vpop.f32.mrb[0].mxu0
    %v3902 = vadd.f32 0.0, %v3901
    %v3903 = vpop.f32.mrb[0].mxu0
    %3904 = vdwg.mxu0
    %v3905 = vsub.f32 %v3804, %v3877
    %v3906 = vsub.f32 %v3805, %v3882
    %v3907 = vsub.f32 %v3806, %v3887
    %v3908 = vsub.f32 %v3807, %v3892
    %v3909 = vsub.f32 %v3808, %v3897
    %v3910 = vsub.f32 %v3809, %v3902
    %v3911 = vmul.f32 %v3905, 1.442695
    %v3912 = vpow.pop %v3911
    %v3913 = vmul.f32 %v3906, 1.442695
    %v3914 = vpow.pop %v3913
    %v3915 = vmul.f32 %v3907, 1.442695
    %v3916 = vpow.pop %v3915
    %v3917 = vmul.f32 %v3908, 1.442695
    %v3918 = vpow.pop %v3917
    %v3919 = vmul.f32 %v3909, 1.442695
    %v3920 = vpow.pop %v3919
    %v3921 = vmul.f32 %v3910, 1.442695
    %v3922 = vpow.pop %v3921
    %3923 = vmatprep.subr.mxu0 0.0
    %3924 = vmatpush1.msra.mxu0 %v3600
    %3925 = vmatprep.subr.mxu0 0.0
    %3926 = vmatpush1.msra.mxu0 %v3601
    %3927 = vmatprep.subr.mxu0 0.0
    %3928 = vmatpush1.msra.mxu0 0.0
    %3929 = vmatprep.subr.mxu0 0.0
    %3930 = vmatpush1.msra.mxu0 0.0
    %3931 = vmatprep.subr.mxu0 0.0
    %3932 = vmatpush1.msra.mxu0 0.0
    %3933 = vmatprep.subr.mxu0 0.0
    %3934 = vmatpush1.msra.mxu0 0.0
    %3935 = vmatprep.subr.mxu0 0.0
    %3936 = vmatpush1.msra.mxu0 0.0
    %3937 = vmatprep.subr.mxu0 0.0
    %3938 = vmatpush1.msra.mxu0 0.0
    %3939 = vmatprep.subr.mxu0 0.0
    %3940 = vmatpush1.msra.mxu0 0.0
    %3941 = vmatprep.subr.mxu0 0.0
    %3942 = vmatpush1.msra.mxu0 0.0
    %3943 = vmatprep.subr.mxu0 0.0
    %3944 = vmatpush1.msra.mxu0 0.0
    %3945 = vmatprep.subr.mxu0 0.0
    %3946 = vmatpush1.msra.mxu0 0.0
    %3947 = vmatprep.subr.mxu0 0.0
    %3948 = vmatpush1.msra.mxu0 0.0
    %3949 = vmatprep.subr.mxu0 0.0
    %3950 = vmatpush1.msra.mxu0 0.0
    %3951 = vmatprep.subr.mxu0 0.0
    %3952 = vmatpush1.msra.mxu0 0.0
    %3953 = vmatprep.subr.mxu0 0.0
    %3954 = vmatpush1.msra.mxu0 0.0
    %3955 = vmatprep.subr.mxu0 0.0
    %3956 = vmatpush1.msra.mxu0 0.0
    %3957 = vmatprep.subr.mxu0 0.0
    %3958 = vmatpush1.msra.mxu0 0.0
    %3959 = vmatprep.subr.mxu0 0.0
    %3960 = vmatpush1.msra.mxu0 0.0
    %3961 = vmatprep.subr.mxu0 0.0
    %3962 = vmatpush1.msra.mxu0 0.0
    %3963 = vmatprep.subr.mxu0 0.0
    %3964 = vmatpush1.msra.mxu0 0.0
    %3965 = vmatprep.subr.mxu0 0.0
    %3966 = vmatpush1.msra.mxu0 0.0
    %3967 = vmatprep.subr.mxu0 0.0
    %3968 = vmatpush1.msra.mxu0 0.0
    %3969 = vmatprep.subr.mxu0 0.0
    %3970 = vmatpush1.msra.mxu0 0.0
    %3971 = vmatprep.subr.mxu0 0.0
    %3972 = vmatpush1.msra.mxu0 0.0
    %3973 = vmatprep.subr.mxu0 0.0
    %3974 = vmatpush1.msra.mxu0 0.0
    %3975 = vmatprep.subr.mxu0 0.0
    %3976 = vmatpush1.msra.mxu0 0.0
    %3977 = vmatprep.subr.mxu0 0.0
    %3978 = vmatpush1.msra.mxu0 0.0
    %3979 = vmatprep.subr.mxu0 0.0
    %3980 = vmatpush1.msra.mxu0 0.0
    %3981 = vmatprep.subr.mxu0 0.0
    %3982 = vmatpush1.msra.mxu0 0.0
    %3983 = vmatprep.subr.mxu0 0.0
    %3984 = vmatpush1.msra.mxu0 0.0
    %3985 = vmatprep.subr.mxu0 0.0
    %3986 = vmatpush1.msra.mxu0 0.0
    %3987 = vmatprep.mubr.f32.mxu0 0.0
    %3988 = vmatmul.mubr.f32.gmra.mrb[0].mxu0 %v848
    %v3989 = vpop.f32.mrb[0].mxu0
    %v3990 = vadd.f32 0.0, %v3989
    %v3991 = vpop.f32.mrb[0].mxu0
    %3992 = vmatprep.mubr.f32.mxu0 0.0
    %3993 = vmatmul.mubr.f32.gmra.mrb[0].mxu0 %v851
    %v3994 = vpop.f32.mrb[0].mxu0
    %v3995 = vadd.f32 0.0, %v3994
    %v3996 = vpop.f32.mrb[0].mxu0
    %3997 = vmatprep.mubr.f32.mxu0 0.0
    %3998 = vmatmul.mubr.f32.gmra.mrb[0].mxu0 %v854
    %v3999 = vpop.f32.mrb[0].mxu0
    %v4000 = vadd.f32 0.0, %v3999
    %v4001 = vpop.f32.mrb[0].mxu0
    %4002 = vmatprep.mubr.f32.mxu0 0.0
    %4003 = vmatmul.mubr.f32.gmra.mrb[0].mxu0 %v857
    %v4004 = vpop.f32.mrb[0].mxu0
    %v4005 = vadd.f32 0.0, %v4004
    %v4006 = vpop.f32.mrb[0].mxu0
    %4007 = vmatprep.mubr.f32.mxu0 0.0
    %4008 = vmatmul.mubr.f32.gmra.mrb[0].mxu0 %v860
    %v4009 = vpop.f32.mrb[0].mxu0
    %v4010 = vadd.f32 0.0, %v4009
    %v4011 = vpop.f32.mrb[0].mxu0
    %4012 = vmatprep.mubr.f32.mxu0 0.0
    %4013 = vmatmul.mubr.f32.gmra.mrb[0].mxu0 %v863
    %v4014 = vpop.f32.mrb[0].mxu0
    %v4015 = vadd.f32 0.0, %v4014
    %v4016 = vpop.f32.mrb[0].mxu0
    %4017 = vdwg.mxu0
    %v4018 = vmul.f32 %v3912, %v3990
    %v4019 = vmul.f32 %v3914, %v3995
    %v4020 = vmul.f32 %v3916, %v4000
    %v4021 = vmul.f32 %v3918, %v4005
    %v4022 = vmul.f32 %v3920, %v4010
    %v4023 = vmul.f32 %v3922, %v4015
    %vm4024 = vcmask 48128
    %4025 = vst.msk [vmem:[%s25] sm:$0xff] %vm4024, %v4018
    %4026 = vst.msk [vmem:[%s25 + $0x8] sm:$0xff] %vm4024, %v4019
    %4027 = vst.msk [vmem:[%s25 + $0x10] sm:$0xff] %vm4024, %v4020
    %4028 = vst.msk [vmem:[%s25 + $0x18] sm:$0xff] %vm4024, %v4021
    %4029 = vst.msk [vmem:[%s25 + $0x20] sm:$0xff] %vm4024, %v4022
    %4030 = vst.msk [vmem:[%s25 + $0x28] sm:$0xff] %vm4024, %v4023
    %v4031 = vld [vmem:[#allocation4] sm:$0xff]
    %v4032 = vld [vmem:[#allocation4 + $0x8] sm:$0xff]
    %v4033 = vmax.f32 %v4031, 0.0
    %v4034 = vmax.f32 %v4032, 0.0
    %v4035 = vadd.f32 %v91, %v4033
    %v4036 = vadd.f32 %v92, %v4034
    %v4037 = vld [vmem:[%s4] sm:$0x3]
    %v4039 = vsel %vm148, %v4037, 0
    %4041 = vmatprep.subr.mxu0 0.0
    %4042 = vmatpush1.msra.mxu0 %v4035
    %4043 = vmatprep.subr.mxu0 0.0
    %4044 = vmatpush1.msra.mxu0 %v4036
    %4045 = vmatprep.subr.mxu0 0.0
    %4046 = vmatpush1.msra.mxu0 0.0
    %4047 = vmatprep.subr.mxu0 0.0
    %4048 = vmatpush1.msra.mxu0 0.0
    %4049 = vmatprep.subr.mxu0 0.0
    %4050 = vmatpush1.msra.mxu0 0.0
    %4051 = vmatprep.subr.mxu0 0.0
    %4052 = vmatpush1.msra.mxu0 0.0
    %4053 = vmatprep.subr.mxu0 0.0
    %4054 = vmatpush1.msra.mxu0 0.0
    %4055 = vmatprep.subr.mxu0 0.0
    %4056 = vmatpush1.msra.mxu0 0.0
    %4057 = vmatprep.subr.mxu0 0.0
    %4058 = vmatpush1.msra.mxu0 0.0
    %4059 = vmatprep.subr.mxu0 0.0
    %4060 = vmatpush1.msra.mxu0 0.0
    %4061 = vmatprep.subr.mxu0 0.0
    %4062 = vmatpush1.msra.mxu0 0.0
    %4063 = vmatprep.subr.mxu0 0.0
    %4064 = vmatpush1.msra.mxu0 0.0
    %4065 = vmatprep.subr.mxu0 0.0
    %4066 = vmatpush1.msra.mxu0 0.0
    %4067 = vmatprep.subr.mxu0 0.0
    %4068 = vmatpush1.msra.mxu0 0.0
    %4069 = vmatprep.subr.mxu0 0.0
    %4070 = vmatpush1.msra.mxu0 0.0
    %4071 = vmatprep.subr.mxu0 0.0
    %4072 = vmatpush1.msra.mxu0 0.0
    %4073 = vmatprep.subr.mxu0 0.0
    %4074 = vmatpush1.msra.mxu0 0.0
    %4075 = vmatprep.subr.mxu0 0.0
    %4076 = vmatpush1.msra.mxu0 0.0
    %4077 = vmatprep.subr.mxu0 0.0
    %4078 = vmatpush1.msra.mxu0 0.0
    %4079 = vmatprep.subr.mxu0 0.0
    %4080 = vmatpush1.msra.mxu0 0.0
    %4081 = vmatprep.subr.mxu0 0.0
    %4082 = vmatpush1.msra.mxu0 0.0
    %4083 = vmatprep.subr.mxu0 0.0
    %4084 = vmatpush1.msra.mxu0 0.0
    %4085 = vmatprep.subr.mxu0 0.0
    %4086 = vmatpush1.msra.mxu0 0.0
    %4087 = vmatprep.subr.mxu0 0.0
    %4088 = vmatpush1.msra.mxu0 0.0
    %4089 = vmatprep.subr.mxu0 0.0
    %4090 = vmatpush1.msra.mxu0 0.0
    %4091 = vmatprep.subr.mxu0 0.0
    %4092 = vmatpush1.msra.mxu0 0.0
    %4093 = vmatprep.subr.mxu0 0.0
    %4094 = vmatpush1.msra.mxu0 0.0
    %4095 = vmatprep.subr.mxu0 0.0
    %4096 = vmatpush1.msra.mxu0 0.0
    %4097 = vmatprep.subr.mxu0 0.0
    %4098 = vmatpush1.msra.mxu0 0.0
    %4099 = vmatprep.subr.mxu0 0.0
    %4100 = vmatpush1.msra.mxu0 0.0
    %4101 = vmatprep.subr.mxu0 0.0
    %4102 = vmatpush1.msra.mxu0 0.0
    %4103 = vmatprep.subr.mxu0 0.0
    %4104 = vmatpush1.msra.mxu0 0.0
    %4105 = vmatprep.mubr.f32.mxu0 0.0
    %4106 = vmatmul.mubr.f32.gmra.mrb[0].mxu0 %v4039
    %v4107 = vpop.f32.mrb[0].mxu0
    %v4108 = vadd.f32 0.0, %v4107
    %v4109 = vpop.f32.mrb[0].mxu0
    %4110 = vdwg.mxu0
    %v4111 = vld [vmem:[%s18] sm:$0xff]
    %v4112 = vld [vmem:[%s18 + $0x8] sm:$0xf]
    %v4113 = vpack.c.bf16 %v4108, %v4108
    %v4114 = vpack.c.bf16 %v4112, %v4111
    %v4115 = vld [vmem:[%s19] sm:$0x1]
    %v4117 = vlaneseq
    %v4118 = vshrl.u32 %v4117, 7
    %v4119 = vsub.s32 0, %v4118
    %v4120 = vrot.slane %v4115, %v4119
    %v4123 = vsel %vm97, %v4113, 0
    %v4126 = vsel %vm101, %v4114, 0
    %4128 = vmatprep.subr.bf16.mxu0 0
    %4129 = vmatpush1.bf16.msra.mxu0 %v4126
    %4130 = vmatprep.subr.bf16.mxu0 0
    %4131 = vmatpush1.bf16.msra.mxu0 0
    %4132 = vmatprep.subr.bf16.mxu0 0
    %4133 = vmatpush1.bf16.msra.mxu0 0
    %4134 = vmatprep.subr.bf16.mxu0 0
    %4135 = vmatpush1.bf16.msra.mxu0 0
    %4136 = vmatprep.subr.bf16.mxu0 0
    %4137 = vmatpush1.bf16.msra.mxu0 0
    %4138 = vmatprep.subr.bf16.mxu0 0
    %4139 = vmatpush1.bf16.msra.mxu0 0
    %4140 = vmatprep.subr.bf16.mxu0 0
    %4141 = vmatpush1.bf16.msra.mxu0 0
    %4142 = vmatprep.subr.bf16.mxu0 0
    %4143 = vmatpush1.bf16.msra.mxu0 0
    %4144 = vmatprep.subr.bf16.mxu0 0
    %4145 = vmatpush1.bf16.msra.mxu0 0
    %4146 = vmatprep.subr.bf16.mxu0 0
    %4147 = vmatpush1.bf16.msra.mxu0 0
    %4148 = vmatprep.subr.bf16.mxu0 0
    %4149 = vmatpush1.bf16.msra.mxu0 0
    %4150 = vmatprep.subr.bf16.mxu0 0
    %4151 = vmatpush1.bf16.msra.mxu0 0
    %4152 = vmatprep.subr.bf16.mxu0 0
    %4153 = vmatpush1.bf16.msra.mxu0 0
    %4154 = vmatprep.subr.bf16.mxu0 0
    %4155 = vmatpush1.bf16.msra.mxu0 0
    %4156 = vmatprep.subr.bf16.mxu0 0
    %4157 = vmatpush1.bf16.msra.mxu0 0
    %4158 = vmatprep.subr.bf16.mxu0 0
    %4159 = vmatpush1.bf16.msra.mxu0 0
    %4160 = vmatprep.mubr.bf16.mxu0 0
    %4161 = vmatmul.mubr.bf16.gmra.mrb[0].mxu0 %v4123
    %v4162 = vpop.f32.mrb[0].mxu0
    %v4163 = vadd.f32 %v4120, %v4162
    %v4164 = vpop.f32.mrb[0].mxu0
    %v4165 = vpop.f32.mrb[0].mxu0
    %v4166 = vpop.f32.mrb[0].mxu0
    %4167 = vdwg.mxu0
    %v4168 = vmax.f32 %v4163, 0.0
    %v4169 = vld [vmem:[%s20] sm:$0xff]
    %v4170 = vld [vmem:[%s20 + $0x8] sm:$0xff]
    %v4171 = vld [vmem:[%s20 + $0x10] sm:$0xff]
    %v4172 = vld [vmem:[%s20 + $0x18] sm:$0xff]
    %v4173 = vpack.c.bf16 %v4168, %v4168
    %v4174 = vpack.c.bf16 %v4170, %v4169
    %v4175 = vpack.c.bf16 %v4172, %v4171
    %v4176 = vld [vmem:[%s21] sm:$0x1]
    %v4178 = vlaneseq
    %v4179 = vshrl.u32 %v4178, 7
    %v4180 = vsub.s32 0, %v4179
    %v4181 = vrot.slane %v4176, %v4180
    %vm4183 = vcmask 261120
    %v4185 = vsel %vm4183, %v4173, 0
    %4187 = vmatprep.subr.bf16.mxu0 0
    %4188 = vmatpush1.bf16.msra.mxu0 %v4174
    %4189 = vmatprep.subr.bf16.mxu0 0
    %4190 = vmatpush1.bf16.msra.mxu0 %v4175
    %4191 = vmatprep.subr.bf16.mxu0 0
    %4192 = vmatpush1.bf16.msra.mxu0 0
    %4193 = vmatprep.subr.bf16.mxu0 0
    %4194 = vmatpush1.bf16.msra.mxu0 0
    %4195 = vmatprep.subr.bf16.mxu0 0
    %4196 = vmatpush1.bf16.msra.mxu0 0
    %4197 = vmatprep.subr.bf16.mxu0 0
    %4198 = vmatpush1.bf16.msra.mxu0 0
    %4199 = vmatprep.subr.bf16.mxu0 0
    %4200 = vmatpush1.bf16.msra.mxu0 0
    %4201 = vmatprep.subr.bf16.mxu0 0
    %4202 = vmatpush1.bf16.msra.mxu0 0
    %4203 = vmatprep.subr.bf16.mxu0 0
    %4204 = vmatpush1.bf16.msra.mxu0 0
    %4205 = vmatprep.subr.bf16.mxu0 0
    %4206 = vmatpush1.bf16.msra.mxu0 0
    %4207 = vmatprep.subr.bf16.mxu0 0
    %4208 = vmatpush1.bf16.msra.mxu0 0
    %4209 = vmatprep.subr.bf16.mxu0 0
    %4210 = vmatpush1.bf16.msra.mxu0 0
    %4211 = vmatprep.subr.bf16.mxu0 0
    %4212 = vmatpush1.bf16.msra.mxu0 0
    %4213 = vmatprep.subr.bf16.mxu0 0
    %4214 = vmatpush1.bf16.msra.mxu0 0
    %4215 = vmatprep.subr.bf16.mxu0 0
    %4216 = vmatpush1.bf16.msra.mxu0 0
    %4217 = vmatprep.subr.bf16.mxu0 0
    %4218 = vmatpush1.bf16.msra.mxu0 0
    %4219 = vmatprep.mubr.bf16.mxu0 0
    %4220 = vmatmul.mubr.bf16.gmra.mrb[0].mxu0 %v4185
    %v4221 = vpop.f32.mrb[0].mxu0
    %v4222 = vadd.f32 %v4181, %v4221
    %v4223 = vpop.f32.mrb[0].mxu0
    %v4224 = vpop.f32.mrb[0].mxu0
    %v4225 = vpop.f32.mrb[0].mxu0
    %4226 = vdwg.mxu0
    %vm4227 = vcmask 17408
    %4228 = vst.msk [vmem:[#allocation5] sm:$0x3] %vm4227, %v4222
    // Predicated region
    $region90: #{gat_forward.1} parent=1 // pred_check
      _
    $region91: #{gat_forward.1} parent=1 // pred_check_branch
      %4230 = sbr.rel (0) target = $region93
    $region92: #{gat_forward.1} parent=1 // pred_region
      %s4232 = ssub.s32 32, 32
      %4233 = vsyncadd [#allocation6], %s4232
      %s4235 = sshll.u32 [#allocation5], 4
      %s4236 = int_to_ptr.vmem [resolvable:$true] %s4235
      %4238 = dma.vmem_to_hbm [thread:$0]  %s4236, 32, %s22, [#allocation6]
    $region93: #{gat_forward.1} parent=1 // pred_fallthru
      _
    // Predicated region
    $region94: #{gat_forward.1} parent=1 // pred_check
      _
    $region95: #{gat_forward.1} parent=1 // pred_check_branch
      %4240 = sbr.rel (0) target = $region97
    $region96: #{gat_forward.1} parent=1 // pred_region
      _
    $region97: #{gat_forward.1} parent=1 // pred_fallthru
      _
    // Predicated region
    $region98: #{gat_forward.1} parent=1 // pred_check
      _
    $region99: #{gat_forward.1} parent=1 // pred_check_branch
      %4242 = sbr.rel (0) target = $region101
    $region100: #{gat_forward.1} parent=1 // pred_region
      _
    $region101: #{gat_forward.1} parent=1 // pred_fallthru
      _
    // Predicated region
    $region102: #{gat_forward.1} parent=1 // pred_check
      _
    $region103: #{gat_forward.1} parent=1 // pred_check_branch
      %4244 = sbr.rel (0) target = $region105
    $region104: #{gat_forward.1} parent=1 // pred_region
      _
    $region105: #{gat_forward.1} parent=1 // pred_fallthru
      _
    // Predicated region
    $region106: #{gat_forward.1} parent=1 // pred_check
      _
    $region107: #{gat_forward.1} parent=1 // pred_check_branch
      %4246 = sbr.rel (0) target = $region109
    $region108: #{gat_forward.1} parent=1 // pred_region
      %4247 = dma.done [#allocation6], 32
    $region109: #{gat_forward.1} parent=1 // pred_fallthru
      _
    // Predicated region
    $region110: #{gat_forward.1} parent=1 // pred_check
      _
    $region111: #{gat_forward.1} parent=1 // pred_check_branch
      %4249 = sbr.rel (0) target = $region113
    $region112: #{gat_forward.1} parent=1 // pred_region
      _
    $region113: #{gat_forward.1} parent=1 // pred_fallthru
      _
    // Predicated region
    $region114: #{gat_forward.1} parent=1 // pred_check
      _
    $region115: #{gat_forward.1} parent=1 // pred_check_branch
      %4251 = sbr.rel (0) target = $region117
    $region116: #{gat_forward.1} parent=1 // pred_region
      _
    $region117: #{gat_forward.1} parent=1 // pred_fallthru
      _
    // Predicated region
    $region118: #{gat_forward.1} parent=1 // pred_check
      _
    $region119: #{gat_forward.1} parent=1 // pred_check_branch
      %4253 = sbr.rel (0) target = $region121
    $region120: #{gat_forward.1} parent=1 // pred_region
      _
    $region121: #{gat_forward.1} parent=1 // pred_fallthru
      _
    %4254 = vsyncpa [#allocation6], 1

</llo_original>
